<compile_context>
chip_gen: v7x
topology: tpu7x:2x2x1
jax: 0.10.0
libtpu: 0.0.40
codegen_flags: <defaults>
</compile_context>

<pallas_src>
import functools

import jax
import jax.numpy as jnp
import numpy as np
from jax import lax
from jax.experimental import pallas as pl
from jax.experimental.pallas import tpu as pltpu

NEG = -1e30  # finite "-inf": keeps the 0 * NEG = 0 one-hot gather NaN-free


def _round_up(x, m):
    return ((x + m - 1) // m) * m


def _divisor_tile(total, target, quantum):
    """Largest divisor of `total` that is a multiple of `quantum` and <= target."""
    best = quantum
    t = quantum
    while t <= total:
        if total % t == 0 and t <= target:
            best = t
        t += quantum
    return best


def _local_pool_pointnet_kernel(p_ref, wpos_ref, bpos_ref,
                                w0_ref, b0_ref, w1_ref, b1_ref, ws_ref,
                                wc_ref, bc_ref,
                                grid_ref,
                                idx_ref, net_ref, pooled_ref, c_ref,
                                *, n_blocks, grid_resolution, n_valid, nc, gt):
    R = grid_resolution
    p = p_ref[0]                                     # (Np, in_dim) f32
    Np, in_dim = p.shape
    h = b0_ref.shape[1]                              # hidden_dim
    F = wc_ref.shape[1]                              # output_dim
    G_pad = grid_ref.shape[-1]                       # padded number of cells
    n_chunks = Np // nc
    n_gtiles = G_pad // gt

    # ---- normalize_3d_coordinate (padding branch is dead in the reference) --
    p_norm = p + 1.0
    p_norm = jnp.where(p_norm >= 2.0, 2.0 - 1e-4, p_norm)
    p_norm = jnp.where(p_norm < 0.0, 0.0, p_norm)

    # ---- coordinates2index: truncation == floor since p_norm >= 0 -----------
    q = (p_norm / 2.0 * R).astype(jnp.int32)                        # (Np, 3)
    idx = q[:, 0:1] + R * q[:, 1:2] + (R * R) * q[:, 2:3]           # (Np, 1)
    # Padded rows get index -1 so they never match any cell in the scatters.
    row = lax.broadcasted_iota(jnp.int32, (Np, 1), 0)
    idx_ref[...] = jnp.where(row < n_valid, idx, -1)

    # ---- fc_pos as input_dim broadcast FMAs on the VPU (no K=3 MXU matmul) --
    wpos = wpos_ref[...]                                            # (in, 2h)
    net = p[:, 0:1] * wpos[0:1, :]
    for d in range(1, in_dim):
        net = net + p[:, d:d + 1] * wpos[d:d + 1, :]
    net = net + bpos_ref[...]                                       # (Np, 2h)

    def resnet_block(i, x):
        # ResnetBlockFC(2h -> h): a = relu(x)@W0+b0; dx = relu(a)@W1+b1; xs = x@WS
        a = jnp.dot(jnp.maximum(x, 0.0), w0_ref[i],
                    preferred_element_type=jnp.float32) + b0_ref[i][None, :]
        dx = jnp.dot(jnp.maximum(a, 0.0), w1_ref[i],
                     preferred_element_type=jnp.float32) + b1_ref[i][None, :]
        xs = jnp.dot(x, ws_ref[i], preferred_element_type=jnp.float32)
        return xs + dx                                              # (Np, h)

    net = resnet_block(0, net)

    for i in range(1, n_blocks):
        # ---- pool_local: per-cell max, lane-dense in G, tiled over G --------
        net_ref[...] = net
        pooled_ref[...] = jnp.zeros_like(pooled_ref)

        @pl.loop(0, n_gtiles)
        def _(gi):
            g0 = pl.multiple_of(gi * gt, 128)
            cell = lax.broadcasted_iota(jnp.int32, (1, gt), 1) + g0  # (1, gt)

            def cm_body(ci, cm):
                s = pl.multiple_of(ci * nc, 8)
                idx_c = idx_ref[pl.ds(s, nc), :]                    # (nc, 1)
                net_c = net_ref[pl.ds(s, nc), :]                    # (nc, h)
                hit = idx_c == cell                                 # (nc, gt)
                m = jnp.where(hit[:, None, :], net_c[:, :, None], NEG)
                return jnp.maximum(cm, jnp.max(m, axis=0))          # (h, gt)

            cm = lax.fori_loop(0, n_chunks, cm_body,
                               jnp.full((h, gt), NEG, jnp.float32))

            @pl.loop(0, n_chunks)
            def _(ci):
                s = pl.multiple_of(ci * nc, 8)
                idx_c = idx_ref[pl.ds(s, nc), :]
                hit_f = (idx_c == cell).astype(jnp.float32)         # (nc, gt)
                # Exact one-hot gather: each valid row has exactly one 1, and
                # exactly one G-tile contributes (others add 0).
                pc = lax.dot_general(hit_f, cm, (((1,), (1,)), ((), ())),
                                     preferred_element_type=jnp.float32)
                pooled_ref[pl.ds(s, nc), :] = (
                    pooled_ref[pl.ds(s, nc), :] + pc)               # (nc, h)

        net = jnp.concatenate([net, pooled_ref[...]], axis=-1)      # (Np, 2h)
        net = resnet_block(i, net)

    # ---- fc_c ----------------------------------------------------------------
    c_ref[...] = (jnp.dot(net, wc_ref[...],
                          preferred_element_type=jnp.float32)
                  + bc_ref[...])                                     # (Np, F)

    # ---- generate_grid_features: G-tiled scatter-max, lane-dense writeback ---
    @pl.loop(0, n_gtiles)
    def _(gi):
        g0 = pl.multiple_of(gi * gt, 128)
        cell = lax.broadcasted_iota(jnp.int32, (1, gt), 1) + g0

        def body(ci, acc):
            s = pl.multiple_of(ci * nc, 8)
            idx_c = idx_ref[pl.ds(s, nc), :]
            c_c = c_ref[pl.ds(s, nc), :]                             # (nc, F)
            hit = idx_c == cell
            m = jnp.where(hit[:, None, :], c_c[:, :, None], NEG)    # (nc, F, gt)
            return jnp.maximum(acc, jnp.max(m, axis=0))

        acc = lax.fori_loop(0, n_chunks, body,
                            jnp.full((F, gt), NEG, jnp.float32))
        # zero init participates in the max: empty cells and negative maxima -> 0
        grid_ref[0, :, pl.ds(g0, gt)] = jnp.maximum(acc, 0.0)


def local_pool_pointnet(p, params, *, n_blocks, grid_resolution, output_dim,
                        n_chunk=32, g_tile=2048):
    """p: (B, N, input_dim) in [-1, 1]^3.  Returns (B, output_dim, R, R, R)."""
    B, N, in_dim = p.shape
    R = grid_resolution
    G = R ** 3
    h = params["b0"].shape[1]
    F = output_dim

    # Pad N so the chunk size divides it; pad G up to a multiple of 128 so the
    # scatter/gather phases and the output writeback are lane-dense.
    nc = min(_round_up(N, 8), _round_up(n_chunk, 8))
    N_pad = _round_up(N, nc)
    G_pad = _round_up(G, 128)
    gt = _divisor_tile(G_pad, max(g_tile, 128), 128)

    p_pad = p if N_pad == N else jnp.pad(p, ((0, 0), (0, N_pad - N), (0, 0)))

    kernel = functools.partial(_local_pool_pointnet_kernel,
                               n_blocks=n_blocks,
                               grid_resolution=R,
                               n_valid=N, nc=nc, gt=gt)

    def full(a):
        shp = a.shape
        return pl.BlockSpec(shp, lambda b, _n=len(shp): (0,) * _n)

    # Advisory cost estimate (matmuls + masked-max work) for the XLA scheduler.
    mm = 2 * N_pad * (in_dim * 2 * h
                      + n_blocks * (2 * h * h + h * h + 2 * h * h)
                      + h * F) + (n_blocks - 1) * 2 * N_pad * G_pad * h
    vp = (n_blocks - 1) * 3 * N_pad * G_pad * h + 3 * N_pad * G_pad * F
    cost = pl.CostEstimate(flops=int(B * (mm + vp)), transcendentals=0,
                           bytes_accessed=int(p_pad.size * 4 + B * F * G_pad * 4))

    out = pl.pallas_call(
        kernel,
        out_shape=jax.ShapeDtypeStruct((B, F, G_pad), jnp.float32),
        grid_spec=pltpu.PrefetchScalarGridSpec(
            num_scalar_prefetch=0,
            grid=(B,),
            in_specs=[
                pl.BlockSpec((1, N_pad, in_dim), lambda b: (b, 0, 0)),
                full(params["w_pos"]), full(params["b_pos"]),
                full(params["w0"]), full(params["b0"]),
                full(params["w1"]), full(params["b1"]),
                full(params["ws"]),
                full(params["w_c"]), full(params["b_c"]),
            ],
            out_specs=pl.BlockSpec((1, F, G_pad), lambda b: (b, 0, 0)),
            scratch_shapes=[
                pltpu.VMEM((N_pad, 1), jnp.int32),     # per-point cell index
                pltpu.VMEM((N_pad, h), jnp.float32),   # net snapshot for pooling
                pltpu.VMEM((N_pad, h), jnp.float32),   # pooled features
                pltpu.VMEM((N_pad, F), jnp.float32),   # fc_c output for scatter
            ]),
        compiler_params=pltpu.CompilerParams(
            dimension_semantics=("parallel",),
            vmem_limit_bytes=48 * 1024 * 1024),
        cost_estimate=cost,
    )(p_pad, params["w_pos"], params["b_pos"],
      params["w0"], params["b0"], params["w1"], params["b1"], params["ws"],
      params["w_c"], params["b_c"])

    # Slice off the G padding; (B, F, G) is already PyTorch's layout.
    return out[:, :, :G].reshape(B, F, R, R, R)


def init_params(key, input_dim, output_dim, hidden_dim, n_blocks):
    h = hidden_dim
    ks = jax.random.split(key, 10)

    def w(k, shape, fan_in):
        return (jax.random.uniform(k, shape, jnp.float32, -1.0, 1.0)
                / jnp.sqrt(jnp.float32(fan_in)))

    return dict(
        w_pos=w(ks[0], (input_dim, 2 * h), input_dim),
        b_pos=w(ks[1], (1, 2 * h), input_dim),
        w0=w(ks[2], (n_blocks, 2 * h, h), 2 * h),
        b0=w(ks[3], (n_blocks, h), 2 * h),
        # NOTE: the original __init__ zero-inits fc_1.weight; random init here
        # (synthetic weights) — forward semantics are unchanged.
        w1=w(ks[4], (n_blocks, h, h), h),
        b1=w(ks[5], (n_blocks, h), h),
        ws=w(ks[6], (n_blocks, 2 * h, h), 2 * h),
        w_c=w(ks[7], (h, output_dim), h),
        b_c=w(ks[8], (1, output_dim), h),
    )


def reference_forward(p, params, *, n_blocks, grid_resolution, output_dim):
    """Pure-JAX reference (uses segment_max for the scatter ops)."""
    B, N, _ = p.shape
    R = grid_resolution
    G = R ** 3
    p_norm = p + 1.0
    p_norm = jnp.where(p_norm >= 2.0, 2.0 - 1e-4, p_norm)
    p_norm = jnp.where(p_norm < 0.0, 0.0, p_norm)
    q = (p_norm / 2.0 * R).astype(jnp.int32)
    index = q[..., 0] + R * (q[..., 1] + R * q[..., 2])            # (B, N)

    net = p @ params["w_pos"] + params["b_pos"]

    def block(i, x):
        a = jnp.maximum(x, 0.0) @ params["w0"][i] + params["b0"][i]
        dx = jnp.maximum(a, 0.0) @ params["w1"][i] + params["b1"][i]
        return x @ params["ws"][i] + dx

    net = block(0, net)
    for i in range(1, n_blocks):
        pooled = []
        for b in range(B):
            cellmax = jax.ops.segment_max(net[b], index[b], num_segments=G)
            pooled.append(cellmax[index[b]])
        net = jnp.concatenate([net, jnp.stack(pooled)], axis=-1)
        net = block(i, net)
    c = net @ params["w_c"] + params["b_c"]

    grids = []
    for b in range(B):
        g = jax.ops.segment_max(c[b], index[b], num_segments=G)
        g = jnp.maximum(jnp.where(jnp.isfinite(g), g, 0.0), 0.0)
        grids.append(g)
    grid = jnp.stack(grids)                                        # (B, G, F)
    return grid.transpose(0, 2, 1).reshape(B, output_dim, R, R, R)


if __name__ == "__main__":
    input_dim = 3
    output_dim = 8
    hidden_dim = 32
    n_blocks = 3
    grid_resolution = 4
    B, N = 2, 16

    key = jax.random.PRNGKey(0)
    kp, kw = jax.random.split(key)
    p = jax.random.uniform(kp, (B, N, input_dim), jnp.float32, -1.0, 1.0)
    params = init_params(kw, input_dim, output_dim, hidden_dim, n_blocks)

    out = local_pool_pointnet(p, params,
                              n_blocks=n_blocks,
                              grid_resolution=grid_resolution,
                              output_dim=output_dim)
    out = jax.block_until_ready(out)

    ref = reference_forward(p, params,
                            n_blocks=n_blocks,
                            grid_resolution=grid_resolution,
                            output_dim=output_dim)
    ref = jax.block_until_ready(ref)

    assert out.shape == (B, output_dim, grid_resolution,
                         grid_resolution, grid_resolution)
    np.testing.assert_allclose(np.asarray(out), np.asarray(ref),
                               rtol=3e-3, atol=3e-3)
    print("KERNEL_OK")
</pallas_src>

<mosaic_0001>
module attributes {stable_mosaic.version = 11 : i64} {
  func.func @_local_pool_pointnet_kernel(%arg0: i32, %arg1: memref<1x16x3xf32, #tpu.memory_space<vmem>>, %arg2: memref<3x64xf32, #tpu.memory_space<vmem>>, %arg3: memref<1x64xf32, #tpu.memory_space<vmem>>, %arg4: memref<3x64x32xf32, #tpu.memory_space<vmem>>, %arg5: memref<3x32xf32, #tpu.memory_space<vmem>>, %arg6: memref<3x32x32xf32, #tpu.memory_space<vmem>>, %arg7: memref<3x32xf32, #tpu.memory_space<vmem>>, %arg8: memref<3x64x32xf32, #tpu.memory_space<vmem>>, %arg9: memref<32x8xf32, #tpu.memory_space<vmem>>, %arg10: memref<1x8xf32, #tpu.memory_space<vmem>>, %arg11: memref<1x8x128xf32, #tpu.memory_space<vmem>>, %arg12: memref<16x1xi32, #tpu.memory_space<vmem>>, %arg13: memref<16x32xf32, #tpu.memory_space<vmem>>, %arg14: memref<16x32xf32, #tpu.memory_space<vmem>>, %arg15: memref<16x8xf32, #tpu.memory_space<vmem>>) attributes {dimension_semantics = [#tpu.dimension_semantics<parallel>], iteration_bounds = array<i64: 2>, scalar_prefetch = 0 : i64, scratch_operands = 4 : i64, tpu.core_type = #tpu.core_type<tc>, window_params = [{transform_indices = @transform_0, window_bounds = array<i64: 1, 16, 3>}, {pipeline_mode = #tpu.pipeline_mode<synchronous>, transform_indices = @transform_1, window_bounds = array<i64: 3, 64>}, {pipeline_mode = #tpu.pipeline_mode<synchronous>, transform_indices = @transform_2, window_bounds = array<i64: 1, 64>}, {pipeline_mode = #tpu.pipeline_mode<synchronous>, transform_indices = @transform_3, window_bounds = array<i64: 3, 64, 32>}, {pipeline_mode = #tpu.pipeline_mode<synchronous>, transform_indices = @transform_4, window_bounds = array<i64: 3, 32>}, {pipeline_mode = #tpu.pipeline_mode<synchronous>, transform_indices = @transform_5, window_bounds = array<i64: 3, 32, 32>}, {pipeline_mode = #tpu.pipeline_mode<synchronous>, transform_indices = @transform_6, window_bounds = array<i64: 3, 32>}, {pipeline_mode = #tpu.pipeline_mode<synchronous>, transform_indices = @transform_7, window_bounds = array<i64: 3, 64, 32>}, {pipeline_mode = #tpu.pipeline_mode<synchronous>, transform_indices = @transform_8, window_bounds = array<i64: 32, 8>}, {pipeline_mode = #tpu.pipeline_mode<synchronous>, transform_indices = @transform_9, window_bounds = array<i64: 1, 8>}, {transform_indices = @transform_10, window_bounds = array<i64: 1, 8, 128>}]} {
    %c0 = arith.constant 0 : index
    %c0_0 = arith.constant 0 : index
    %c0_1 = arith.constant 0 : index
    %0 = vector.load %arg1[%c0, %c0_0, %c0_1] : memref<1x16x3xf32, #tpu.memory_space<vmem>>, vector<1x16x3xf32>
    %1 = vector.shape_cast %0 : vector<1x16x3xf32> to vector<16x3xf32>
    %cst = arith.constant 1.000000e+00 : f32
    %2 = vector.broadcast %cst : f32 to vector<16x3xf32>
    %3 = arith.addf %1, %2 : vector<16x3xf32>
    %cst_2 = arith.constant 2.000000e+00 : f32
    %4 = vector.broadcast %cst_2 : f32 to vector<16x3xf32>
    %5 = arith.cmpf oge, %3, %4 : vector<16x3xf32>
    %cst_3 = arith.constant 1.999900e+00 : f32
    %6 = vector.broadcast %cst_3 : f32 to vector<16x3xf32>
    %7 = arith.select %5, %6, %3 : vector<16x3xi1>, vector<16x3xf32>
    %cst_4 = arith.constant 0.000000e+00 : f32
    %8 = vector.broadcast %cst_4 : f32 to vector<16x3xf32>
    %9 = arith.cmpf olt, %7, %8 : vector<16x3xf32>
    %cst_5 = arith.constant 0.000000e+00 : f32
    %10 = vector.broadcast %cst_5 : f32 to vector<16x3xf32>
    %11 = arith.select %9, %10, %7 : vector<16x3xi1>, vector<16x3xf32>
    %cst_6 = arith.constant 2.000000e+00 : f32
    %12 = vector.broadcast %cst_6 : f32 to vector<16x3xf32>
    %13 = arith.divf %11, %12 : vector<16x3xf32>
    %cst_7 = arith.constant 4.000000e+00 : f32
    %14 = vector.broadcast %cst_7 : f32 to vector<16x3xf32>
    %15 = arith.mulf %13, %14 : vector<16x3xf32>
    %16 = arith.fptosi %15 : vector<16x3xf32> to vector<16x3xi32>
    %17 = vector.extract_strided_slice %16 {offsets = [0, 0], sizes = [16, 1], strides = [1, 1]} : vector<16x3xi32> to vector<16x1xi32>
    %18 = vector.extract_strided_slice %16 {offsets = [0, 1], sizes = [16, 1], strides = [1, 1]} : vector<16x3xi32> to vector<16x1xi32>
    %c4_i32 = arith.constant 4 : i32
    %19 = vector.broadcast %c4_i32 : i32 to vector<16x1xi32>
    %20 = arith.muli %19, %18 : vector<16x1xi32>
    %21 = arith.addi %17, %20 : vector<16x1xi32>
    %22 = vector.extract_strided_slice %16 {offsets = [0, 2], sizes = [16, 1], strides = [1, 1]} : vector<16x3xi32> to vector<16x1xi32>
    %c16_i32 = arith.constant 16 : i32
    %23 = vector.broadcast %c16_i32 : i32 to vector<16x1xi32>
    %24 = arith.muli %23, %22 : vector<16x1xi32>
    %25 = arith.addi %21, %24 : vector<16x1xi32>
    %26 = tpu.iota {dimensions = array<i32: 0>} : vector<16x1xi32>
    %c16_i32_8 = arith.constant 16 : i32
    %27 = vector.broadcast %c16_i32_8 : i32 to vector<16x1xi32>
    %28 = arith.cmpi slt, %26, %27 : vector<16x1xi32>
    %c-1_i32 = arith.constant -1 : i32
    %29 = vector.broadcast %c-1_i32 : i32 to vector<16x1xi32>
    %30 = arith.select %28, %25, %29 : vector<16x1xi1>, vector<16x1xi32>
    %c0_9 = arith.constant 0 : index
    %c0_10 = arith.constant 0 : index
    %31 = vector.load %arg12[%c0_9, %c0_10] : memref<16x1xi32, #tpu.memory_space<vmem>>, vector<16x1xi32>
    tpu.vector_store %arg12[%c0_9, %c0_10], %30 {strides = array<i32>} : memref<16x1xi32, #tpu.memory_space<vmem>>, vector<16x1xi32>,
    %c0_11 = arith.constant 0 : index
    %c0_12 = arith.constant 0 : index
    %32 = vector.load %arg2[%c0_11, %c0_12] : memref<3x64xf32, #tpu.memory_space<vmem>>, vector<3x64xf32>
    %33 = vector.extract_strided_slice %1 {offsets = [0, 0], sizes = [16, 1], strides = [1, 1]} : vector<16x3xf32> to vector<16x1xf32>
    %34 = vector.extract_strided_slice %32 {offsets = [0, 0], sizes = [1, 64], strides = [1, 1]} : vector<3x64xf32> to vector<1x64xf32>
    %35 = vector.broadcast %33 : vector<16x1xf32> to vector<16x64xf32>
    %36 = vector.broadcast %34 : vector<1x64xf32> to vector<16x64xf32>
    %37 = arith.mulf %35, %36 : vector<16x64xf32>
    %38 = vector.extract_strided_slice %1 {offsets = [0, 1], sizes = [16, 1], strides = [1, 1]} : vector<16x3xf32> to vector<16x1xf32>
    %39 = vector.extract_strided_slice %32 {offsets = [1, 0], sizes = [1, 64], strides = [1, 1]} : vector<3x64xf32> to vector<1x64xf32>
    %40 = vector.broadcast %38 : vector<16x1xf32> to vector<16x64xf32>
    %41 = vector.broadcast %39 : vector<1x64xf32> to vector<16x64xf32>
    %42 = arith.mulf %40, %41 : vector<16x64xf32>
    %43 = arith.addf %37, %42 : vector<16x64xf32>
    %44 = vector.extract_strided_slice %1 {offsets = [0, 2], sizes = [16, 1], strides = [1, 1]} : vector<16x3xf32> to vector<16x1xf32>
    %45 = vector.extract_strided_slice %32 {offsets = [2, 0], sizes = [1, 64], strides = [1, 1]} : vector<3x64xf32> to vector<1x64xf32>
    %46 = vector.broadcast %44 : vector<16x1xf32> to vector<16x64xf32>
    %47 = vector.broadcast %45 : vector<1x64xf32> to vector<16x64xf32>
    %48 = arith.mulf %46, %47 : vector<16x64xf32>
    %49 = arith.addf %43, %48 : vector<16x64xf32>
    %c0_13 = arith.constant 0 : index
    %c0_14 = arith.constant 0 : index
    %50 = vector.load %arg3[%c0_13, %c0_14] : memref<1x64xf32, #tpu.memory_space<vmem>>, vector<1x64xf32>
    %51 = vector.broadcast %50 : vector<1x64xf32> to vector<16x64xf32>
    %52 = arith.addf %49, %51 : vector<16x64xf32>
    %cst_15 = arith.constant 0.000000e+00 : f32
    %53 = vector.broadcast %cst_15 : f32 to vector<16x64xf32>
    %54 = arith.maximumf %52, %53 : vector<16x64xf32>
    %c0_16 = arith.constant 0 : index
    %c0_17 = arith.constant 0 : index
    %c0_18 = arith.constant 0 : index
    %55 = vector.load %arg4[%c0_16, %c0_17, %c0_18] : memref<3x64x32xf32, #tpu.memory_space<vmem>>, vector<1x64x32xf32>
    %56 = vector.shape_cast %55 : vector<1x64x32xf32> to vector<64x32xf32>
    %cst_19 = arith.constant dense<0.000000e+00> : vector<16x32xf32>
    %57 = tpu.matmul %54, %56, %cst_19 {dimension_numbers = #tpu.dot_dimension_numbers<[1], [0], [0], [1], [0, 0, 1, 1], [], []>} : vector<16x64xf32>, vector<64x32xf32>, vector<16x32xf32> -> vector<16x32xf32>
    %c0_20 = arith.constant 0 : index
    %c0_21 = arith.constant 0 : index
    %58 = vector.load %arg5[%c0_20, %c0_21] : memref<3x32xf32, #tpu.memory_space<vmem>>, vector<1x32xf32>
    %59 = vector.shape_cast %58 : vector<1x32xf32> to vector<32xf32>
    %60 = vector.shape_cast %59 : vector<32xf32> to vector<1x32xf32>
    %61 = vector.broadcast %60 : vector<1x32xf32> to vector<16x32xf32>
    %62 = arith.addf %57, %61 : vector<16x32xf32>
    %cst_22 = arith.constant 0.000000e+00 : f32
    %63 = vector.broadcast %cst_22 : f32 to vector<16x32xf32>
    %64 = arith.maximumf %62, %63 : vector<16x32xf32>
    %c0_23 = arith.constant 0 : index
    %c0_24 = arith.constant 0 : index
    %c0_25 = arith.constant 0 : index
    %65 = vector.load %arg6[%c0_23, %c0_24, %c0_25] : memref<3x32x32xf32, #tpu.memory_space<vmem>>, vector<1x32x32xf32>
    %66 = vector.shape_cast %65 : vector<1x32x32xf32> to vector<32x32xf32>
    %cst_26 = arith.constant dense<0.000000e+00> : vector<16x32xf32>
    %67 = tpu.matmul %64, %66, %cst_26 {dimension_numbers = #tpu.dot_dimension_numbers<[1], [0], [0], [1], [0, 0, 1, 1], [], []>} : vector<16x32xf32>, vector<32x32xf32>, vector<16x32xf32> -> vector<16x32xf32>
    %c0_27 = arith.constant 0 : index
    %c0_28 = arith.constant 0 : index
    %68 = vector.load %arg7[%c0_27, %c0_28] : memref<3x32xf32, #tpu.memory_space<vmem>>, vector<1x32xf32>
    %69 = vector.shape_cast %68 : vector<1x32xf32> to vector<32xf32>
    %70 = vector.shape_cast %69 : vector<32xf32> to vector<1x32xf32>
    %71 = vector.broadcast %70 : vector<1x32xf32> to vector<16x32xf32>
    %72 = arith.addf %67, %71 : vector<16x32xf32>
    %c0_29 = arith.constant 0 : index
    %c0_30 = arith.constant 0 : index
    %c0_31 = arith.constant 0 : index
    %73 = vector.load %arg8[%c0_29, %c0_30, %c0_31] : memref<3x64x32xf32, #tpu.memory_space<vmem>>, vector<1x64x32xf32>
    %74 = vector.shape_cast %73 : vector<1x64x32xf32> to vector<64x32xf32>
    %cst_32 = arith.constant dense<0.000000e+00> : vector<16x32xf32>
    %75 = tpu.matmul %52, %74, %cst_32 {dimension_numbers = #tpu.dot_dimension_numbers<[1], [0], [0], [1], [0, 0, 1, 1], [], []>} : vector<16x64xf32>, vector<64x32xf32>, vector<16x32xf32> -> vector<16x32xf32>
    %76 = arith.addf %75, %72 : vector<16x32xf32>
    %c0_33 = arith.constant 0 : index
    %c0_34 = arith.constant 0 : index
    %77 = vector.load %arg13[%c0_33, %c0_34] : memref<16x32xf32, #tpu.memory_space<vmem>>, vector<16x32xf32>
    tpu.vector_store %arg13[%c0_33, %c0_34], %76 {strides = array<i32>} : memref<16x32xf32, #tpu.memory_space<vmem>>, vector<16x32xf32>,
    %cst_35 = arith.constant 0.000000e+00 : f32
    %78 = vector.broadcast %cst_35 : f32 to vector<16x32xf32>
    %c0_36 = arith.constant 0 : index
    %c0_37 = arith.constant 0 : index
    %79 = vector.load %arg14[%c0_36, %c0_37] : memref<16x32xf32, #tpu.memory_space<vmem>>, vector<16x32xf32>
    tpu.vector_store %arg14[%c0_36, %c0_37], %78 {strides = array<i32>} : memref<16x32xf32, #tpu.memory_space<vmem>>, vector<16x32xf32>,
    %c0_i32 = arith.constant 0 : i32
    %c1_i32 = arith.constant 1 : i32
    %80 = arith.muli %c0_i32, %c1_i32 : i32
    %c0_i32_38 = arith.constant 0 : i32
    %81 = arith.addi %c0_i32_38, %80 : i32
    %c128_i32 = arith.constant 128 : i32
    %82 = arith.muli %81, %c128_i32 : i32
    %83 = tpu.assume_multiple %82, 128 : i32
    %84 = tpu.iota {dimensions = array<i32: 1>} : vector<1x128xi32>
    %85 = vector.broadcast %83 : i32 to vector<1x128xi32>
    %86 = arith.addi %84, %85 : vector<1x128xi32>
    %cst_39 = arith.constant -1.000000e+30 : f32
    %87 = vector.broadcast %cst_39 : f32 to vector<32x128xf32>
    %c0_i32_40 = arith.constant 0 : i32
    %c16_i32_41 = arith.constant 16 : i32
    %88 = arith.muli %c0_i32_40, %c16_i32_41 : i32
    %89 = tpu.assume_multiple %88, 8 : i32
    %90 = arith.index_cast %89 : i32 to index
    %c0_42 = arith.constant 0 : index
    %91 = vector.load %arg12[%90, %c0_42] : memref<16x1xi32, #tpu.memory_space<vmem>>, vector<16x1xi32>
    %92 = arith.index_cast %89 : i32 to index
    %c0_43 = arith.constant 0 : index
    %93 = vector.load %arg13[%92, %c0_43] : memref<16x32xf32, #tpu.memory_space<vmem>>, vector<16x32xf32>
    %94 = vector.broadcast %91 : vector<16x1xi32> to vector<16x128xi32>
    %95 = vector.broadcast %86 : vector<1x128xi32> to vector<16x128xi32>
    %96 = arith.cmpi eq, %94, %95 : vector<16x128xi32>
    %97 = vector.shape_cast %96 : vector<16x128xi1> to vector<16x1x128xi1>
    %98 = vector.shape_cast %93 : vector<16x32xf32> to vector<16x32x1xf32>
    %cst_44 = arith.constant -1.000000e+30 : f32
    %99 = vector.shape_cast %97 : vector<16x1x128xi1> to vector<16x1x128xi1>
    %100 = vector.broadcast %99 : vector<16x1x128xi1> to vector<16x32x128xi1>
    %101 = vector.shape_cast %98 : vector<16x32x1xf32> to vector<16x32x1xf32>
    %102 = vector.broadcast %101 : vector<16x32x1xf32> to vector<16x32x128xf32>
    %103 = vector.broadcast %cst_44 : f32 to vector<16x32x128xf32>
    %104 = arith.select %100, %102, %103 : vector<16x32x128xi1>, vector<16x32x128xf32>
    %cst_45 = arith.constant dense<0xFF800000> : vector<32x128xf32>
    %105 = vector.multi_reduction <maximumf>, %104, %cst_45 [0] : vector<16x32x128xf32> to vector<32x128xf32>
    %106 = arith.maximumf %87, %105 : vector<32x128xf32>
    %c1_i32_46 = arith.constant 1 : i32
    %c0_i32_47 = arith.constant 0 : i32
    %c1_i32_48 = arith.constant 1 : i32
    %107 = arith.muli %c0_i32_47, %c1_i32_48 : i32
    %c0_i32_49 = arith.constant 0 : i32
    %108 = arith.addi %c0_i32_49, %107 : i32
    %c16_i32_50 = arith.constant 16 : i32
    %109 = arith.muli %108, %c16_i32_50 : i32
    %110 = tpu.assume_multiple %109, 8 : i32
    %111 = arith.index_cast %110 : i32 to index
    %c0_51 = arith.constant 0 : index
    %112 = vector.load %arg12[%111, %c0_51] : memref<16x1xi32, #tpu.memory_space<vmem>>, vector<16x1xi32>
    %113 = vector.broadcast %112 : vector<16x1xi32> to vector<16x128xi32>
    %114 = vector.broadcast %86 : vector<1x128xi32> to vector<16x128xi32>
    %115 = arith.cmpi eq, %113, %114 : vector<16x128xi32>
    %116 = arith.extui %115 : vector<16x128xi1> to vector<16x128xi32>
    %117 = arith.sitofp %116 : vector<16x128xi32> to vector<16x128xf32>
    %cst_52 = arith.constant dense<0.000000e+00> : vector<16x32xf32>
    %118 = tpu.matmul %117, %106, %cst_52 {dimension_numbers = #tpu.dot_dimension_numbers<[1], [1], [0], [0], [0, 0, 1, 0], [], []>} : vector<16x128xf32>, vector<32x128xf32>, vector<16x32xf32> -> vector<16x32xf32>
    %119 = arith.index_cast %110 : i32 to index
    %c0_53 = arith.constant 0 : index
    %120 = vector.load %arg14[%119, %c0_53] : memref<16x32xf32, #tpu.memory_space<vmem>>, vector<16x32xf32>
    %121 = arith.addf %120, %118 : vector<16x32xf32>
    %122 = arith.index_cast %110 : i32 to index
    %c0_54 = arith.constant 0 : index
    %123 = vector.load %arg14[%122, %c0_54] : memref<16x32xf32, #tpu.memory_space<vmem>>, vector<16x32xf32>
    tpu.vector_store %arg14[%122, %c0_54], %121 {strides = array<i32>} : memref<16x32xf32, #tpu.memory_space<vmem>>, vector<16x32xf32>,
    %c1_i32_55 = arith.constant 1 : i32
    %c1_i32_56 = arith.constant 1 : i32
    %c0_57 = arith.constant 0 : index
    %c0_58 = arith.constant 0 : index
    %124 = vector.load %arg14[%c0_57, %c0_58] : memref<16x32xf32, #tpu.memory_space<vmem>>, vector<16x32xf32>
    %125 = tpu.concatenate %76, %124 in 1 : vector<16x32xf32>, vector<16x32xf32> -> vector<16x64xf32>
    %cst_59 = arith.constant 0.000000e+00 : f32
    %126 = vector.broadcast %cst_59 : f32 to vector<16x64xf32>
    %127 = arith.maximumf %125, %126 : vector<16x64xf32>
    %c1 = arith.constant 1 : index
    %c0_60 = arith.constant 0 : index
    %c0_61 = arith.constant 0 : index
    %128 = vector.load %arg4[%c1, %c0_60, %c0_61] : memref<3x64x32xf32, #tpu.memory_space<vmem>>, vector<1x64x32xf32>
    %129 = vector.shape_cast %128 : vector<1x64x32xf32> to vector<64x32xf32>
    %cst_62 = arith.constant dense<0.000000e+00> : vector<16x32xf32>
    %130 = tpu.matmul %127, %129, %cst_62 {dimension_numbers = #tpu.dot_dimension_numbers<[1], [0], [0], [1], [0, 0, 1, 1], [], []>} : vector<16x64xf32>, vector<64x32xf32>, vector<16x32xf32> -> vector<16x32xf32>
    %c1_63 = arith.constant 1 : index
    %c0_64 = arith.constant 0 : index
    %131 = vector.load %arg5[%c1_63, %c0_64] : memref<3x32xf32, #tpu.memory_space<vmem>>, vector<1x32xf32>
    %132 = vector.shape_cast %131 : vector<1x32xf32> to vector<32xf32>
    %133 = vector.shape_cast %132 : vector<32xf32> to vector<1x32xf32>
    %134 = vector.broadcast %133 : vector<1x32xf32> to vector<16x32xf32>
    %135 = arith.addf %130, %134 : vector<16x32xf32>
    %cst_65 = arith.constant 0.000000e+00 : f32
    %136 = vector.broadcast %cst_65 : f32 to vector<16x32xf32>
    %137 = arith.maximumf %135, %136 : vector<16x32xf32>
    %c1_66 = arith.constant 1 : index
    %c0_67 = arith.constant 0 : index
    %c0_68 = arith.constant 0 : index
    %138 = vector.load %arg6[%c1_66, %c0_67, %c0_68] : memref<3x32x32xf32, #tpu.memory_space<vmem>>, vector<1x32x32xf32>
    %139 = vector.shape_cast %138 : vector<1x32x32xf32> to vector<32x32xf32>
    %cst_69 = arith.constant dense<0.000000e+00> : vector<16x32xf32>
    %140 = tpu.matmul %137, %139, %cst_69 {dimension_numbers = #tpu.dot_dimension_numbers<[1], [0], [0], [1], [0, 0, 1, 1], [], []>} : vector<16x32xf32>, vector<32x32xf32>, vector<16x32xf32> -> vector<16x32xf32>
    %c1_70 = arith.constant 1 : index
    %c0_71 = arith.constant 0 : index
    %141 = vector.load %arg7[%c1_70, %c0_71] : memref<3x32xf32, #tpu.memory_space<vmem>>, vector<1x32xf32>
    %142 = vector.shape_cast %141 : vector<1x32xf32> to vector<32xf32>
    %143 = vector.shape_cast %142 : vector<32xf32> to vector<1x32xf32>
    %144 = vector.broadcast %143 : vector<1x32xf32> to vector<16x32xf32>
    %145 = arith.addf %140, %144 : vector<16x32xf32>
    %c1_72 = arith.constant 1 : index
    %c0_73 = arith.constant 0 : index
    %c0_74 = arith.constant 0 : index
    %146 = vector.load %arg8[%c1_72, %c0_73, %c0_74] : memref<3x64x32xf32, #tpu.memory_space<vmem>>, vector<1x64x32xf32>
    %147 = vector.shape_cast %146 : vector<1x64x32xf32> to vector<64x32xf32>
    %cst_75 = arith.constant dense<0.000000e+00> : vector<16x32xf32>
    %148 = tpu.matmul %125, %147, %cst_75 {dimension_numbers = #tpu.dot_dimension_numbers<[1], [0], [0], [1], [0, 0, 1, 1], [], []>} : vector<16x64xf32>, vector<64x32xf32>, vector<16x32xf32> -> vector<16x32xf32>
    %149 = arith.addf %148, %145 : vector<16x32xf32>
    %c0_76 = arith.constant 0 : index
    %c0_77 = arith.constant 0 : index
    %150 = vector.load %arg13[%c0_76, %c0_77] : memref<16x32xf32, #tpu.memory_space<vmem>>, vector<16x32xf32>
    tpu.vector_store %arg13[%c0_76, %c0_77], %149 {strides = array<i32>} : memref<16x32xf32, #tpu.memory_space<vmem>>, vector<16x32xf32>,
    %cst_78 = arith.constant 0.000000e+00 : f32
    %151 = vector.broadcast %cst_78 : f32 to vector<16x32xf32>
    %c0_79 = arith.constant 0 : index
    %c0_80 = arith.constant 0 : index
    %152 = vector.load %arg14[%c0_79, %c0_80] : memref<16x32xf32, #tpu.memory_space<vmem>>, vector<16x32xf32>
    tpu.vector_store %arg14[%c0_79, %c0_80], %151 {strides = array<i32>} : memref<16x32xf32, #tpu.memory_space<vmem>>, vector<16x32xf32>,
    %c0_i32_81 = arith.constant 0 : i32
    %c1_i32_82 = arith.constant 1 : i32
    %153 = arith.muli %c0_i32_81, %c1_i32_82 : i32
    %c0_i32_83 = arith.constant 0 : i32
    %154 = arith.addi %c0_i32_83, %153 : i32
    %c128_i32_84 = arith.constant 128 : i32
    %155 = arith.muli %154, %c128_i32_84 : i32
    %156 = tpu.assume_multiple %155, 128 : i32
    %157 = tpu.iota {dimensions = array<i32: 1>} : vector<1x128xi32>
    %158 = vector.broadcast %156 : i32 to vector<1x128xi32>
    %159 = arith.addi %157, %158 : vector<1x128xi32>
    %cst_85 = arith.constant -1.000000e+30 : f32
    %160 = vector.broadcast %cst_85 : f32 to vector<32x128xf32>
    %c0_i32_86 = arith.constant 0 : i32
    %c16_i32_87 = arith.constant 16 : i32
    %161 = arith.muli %c0_i32_86, %c16_i32_87 : i32
    %162 = tpu.assume_multiple %161, 8 : i32
    %163 = arith.index_cast %162 : i32 to index
    %c0_88 = arith.constant 0 : index
    %164 = vector.load %arg12[%163, %c0_88] : memref<16x1xi32, #tpu.memory_space<vmem>>, vector<16x1xi32>
    %165 = arith.index_cast %162 : i32 to index
    %c0_89 = arith.constant 0 : index
    %166 = vector.load %arg13[%165, %c0_89] : memref<16x32xf32, #tpu.memory_space<vmem>>, vector<16x32xf32>
    %167 = vector.broadcast %164 : vector<16x1xi32> to vector<16x128xi32>
    %168 = vector.broadcast %159 : vector<1x128xi32> to vector<16x128xi32>
    %169 = arith.cmpi eq, %167, %168 : vector<16x128xi32>
    %170 = vector.shape_cast %169 : vector<16x128xi1> to vector<16x1x128xi1>
    %171 = vector.shape_cast %166 : vector<16x32xf32> to vector<16x32x1xf32>
    %cst_90 = arith.constant -1.000000e+30 : f32
    %172 = vector.shape_cast %170 : vector<16x1x128xi1> to vector<16x1x128xi1>
    %173 = vector.broadcast %172 : vector<16x1x128xi1> to vector<16x32x128xi1>
    %174 = vector.shape_cast %171 : vector<16x32x1xf32> to vector<16x32x1xf32>
    %175 = vector.broadcast %174 : vector<16x32x1xf32> to vector<16x32x128xf32>
    %176 = vector.broadcast %cst_90 : f32 to vector<16x32x128xf32>
    %177 = arith.select %173, %175, %176 : vector<16x32x128xi1>, vector<16x32x128xf32>
    %cst_91 = arith.constant dense<0xFF800000> : vector<32x128xf32>
    %178 = vector.multi_reduction <maximumf>, %177, %cst_91 [0] : vector<16x32x128xf32> to vector<32x128xf32>
    %179 = arith.maximumf %160, %178 : vector<32x128xf32>
    %c1_i32_92 = arith.constant 1 : i32
    %c0_i32_93 = arith.constant 0 : i32
    %c1_i32_94 = arith.constant 1 : i32
    %180 = arith.muli %c0_i32_93, %c1_i32_94 : i32
    %c0_i32_95 = arith.constant 0 : i32
    %181 = arith.addi %c0_i32_95, %180 : i32
    %c16_i32_96 = arith.constant 16 : i32
    %182 = arith.muli %181, %c16_i32_96 : i32
    %183 = tpu.assume_multiple %182, 8 : i32
    %184 = arith.index_cast %183 : i32 to index
    %c0_97 = arith.constant 0 : index
    %185 = vector.load %arg12[%184, %c0_97] : memref<16x1xi32, #tpu.memory_space<vmem>>, vector<16x1xi32>
    %186 = vector.broadcast %185 : vector<16x1xi32> to vector<16x128xi32>
    %187 = vector.broadcast %159 : vector<1x128xi32> to vector<16x128xi32>
    %188 = arith.cmpi eq, %186, %187 : vector<16x128xi32>
    %189 = arith.extui %188 : vector<16x128xi1> to vector<16x128xi32>
    %190 = arith.sitofp %189 : vector<16x128xi32> to vector<16x128xf32>
    %cst_98 = arith.constant dense<0.000000e+00> : vector<16x32xf32>
    %191 = tpu.matmul %190, %179, %cst_98 {dimension_numbers = #tpu.dot_dimension_numbers<[1], [1], [0], [0], [0, 0, 1, 0], [], []>} : vector<16x128xf32>, vector<32x128xf32>, vector<16x32xf32> -> vector<16x32xf32>
    %192 = arith.index_cast %183 : i32 to index
    %c0_99 = arith.constant 0 : index
    %193 = vector.load %arg14[%192, %c0_99] : memref<16x32xf32, #tpu.memory_space<vmem>>, vector<16x32xf32>
    %194 = arith.addf %193, %191 : vector<16x32xf32>
    %195 = arith.index_cast %183 : i32 to index
    %c0_100 = arith.constant 0 : index
    %196 = vector.load %arg14[%195, %c0_100] : memref<16x32xf32, #tpu.memory_space<vmem>>, vector<16x32xf32>
    tpu.vector_store %arg14[%195, %c0_100], %194 {strides = array<i32>} : memref<16x32xf32, #tpu.memory_space<vmem>>, vector<16x32xf32>,
    %c1_i32_101 = arith.constant 1 : i32
    %c1_i32_102 = arith.constant 1 : i32
    %c0_103 = arith.constant 0 : index
    %c0_104 = arith.constant 0 : index
    %197 = vector.load %arg14[%c0_103, %c0_104] : memref<16x32xf32, #tpu.memory_space<vmem>>, vector<16x32xf32>
    %198 = tpu.concatenate %149, %197 in 1 : vector<16x32xf32>, vector<16x32xf32> -> vector<16x64xf32>
    %cst_105 = arith.constant 0.000000e+00 : f32
    %199 = vector.broadcast %cst_105 : f32 to vector<16x64xf32>
    %200 = arith.maximumf %198, %199 : vector<16x64xf32>
    %c2 = arith.constant 2 : index
    %c0_106 = arith.constant 0 : index
    %c0_107 = arith.constant 0 : index
    %201 = vector.load %arg4[%c2, %c0_106, %c0_107] : memref<3x64x32xf32, #tpu.memory_space<vmem>>, vector<1x64x32xf32>
    %202 = vector.shape_cast %201 : vector<1x64x32xf32> to vector<64x32xf32>
    %cst_108 = arith.constant dense<0.000000e+00> : vector<16x32xf32>
    %203 = tpu.matmul %200, %202, %cst_108 {dimension_numbers = #tpu.dot_dimension_numbers<[1], [0], [0], [1], [0, 0, 1, 1], [], []>} : vector<16x64xf32>, vector<64x32xf32>, vector<16x32xf32> -> vector<16x32xf32>
    %c2_109 = arith.constant 2 : index
    %c0_110 = arith.constant 0 : index
    %204 = vector.load %arg5[%c2_109, %c0_110] : memref<3x32xf32, #tpu.memory_space<vmem>>, vector<1x32xf32>
    %205 = vector.shape_cast %204 : vector<1x32xf32> to vector<32xf32>
    %206 = vector.shape_cast %205 : vector<32xf32> to vector<1x32xf32>
    %207 = vector.broadcast %206 : vector<1x32xf32> to vector<16x32xf32>
    %208 = arith.addf %203, %207 : vector<16x32xf32>
    %cst_111 = arith.constant 0.000000e+00 : f32
    %209 = vector.broadcast %cst_111 : f32 to vector<16x32xf32>
    %210 = arith.maximumf %208, %209 : vector<16x32xf32>
    %c2_112 = arith.constant 2 : index
    %c0_113 = arith.constant 0 : index
    %c0_114 = arith.constant 0 : index
    %211 = vector.load %arg6[%c2_112, %c0_113, %c0_114] : memref<3x32x32xf32, #tpu.memory_space<vmem>>, vector<1x32x32xf32>
    %212 = vector.shape_cast %211 : vector<1x32x32xf32> to vector<32x32xf32>
    %cst_115 = arith.constant dense<0.000000e+00> : vector<16x32xf32>
    %213 = tpu.matmul %210, %212, %cst_115 {dimension_numbers = #tpu.dot_dimension_numbers<[1], [0], [0], [1], [0, 0, 1, 1], [], []>} : vector<16x32xf32>, vector<32x32xf32>, vector<16x32xf32> -> vector<16x32xf32>
    %c2_116 = arith.constant 2 : index
    %c0_117 = arith.constant 0 : index
    %214 = vector.load %arg7[%c2_116, %c0_117] : memref<3x32xf32, #tpu.memory_space<vmem>>, vector<1x32xf32>
    %215 = vector.shape_cast %214 : vector<1x32xf32> to vector<32xf32>
    %216 = vector.shape_cast %215 : vector<32xf32> to vector<1x32xf32>
    %217 = vector.broadcast %216 : vector<1x32xf32> to vector<16x32xf32>
    %218 = arith.addf %213, %217 : vector<16x32xf32>
    %c2_118 = arith.constant 2 : index
    %c0_119 = arith.constant 0 : index
    %c0_120 = arith.constant 0 : index
    %219 = vector.load %arg8[%c2_118, %c0_119, %c0_120] : memref<3x64x32xf32, #tpu.memory_space<vmem>>, vector<1x64x32xf32>
    %220 = vector.shape_cast %219 : vector<1x64x32xf32> to vector<64x32xf32>
    %cst_121 = arith.constant dense<0.000000e+00> : vector<16x32xf32>
    %221 = tpu.matmul %198, %220, %cst_121 {dimension_numbers = #tpu.dot_dimension_numbers<[1], [0], [0], [1], [0, 0, 1, 1], [], []>} : vector<16x64xf32>, vector<64x32xf32>, vector<16x32xf32> -> vector<16x32xf32>
    %222 = arith.addf %221, %218 : vector<16x32xf32>
    %c0_122 = arith.constant 0 : index
    %c0_123 = arith.constant 0 : index
    %223 = vector.load %arg9[%c0_122, %c0_123] : memref<32x8xf32, #tpu.memory_space<vmem>>, vector<32x8xf32>
    %cst_124 = arith.constant dense<0.000000e+00> : vector<16x8xf32>
    %224 = tpu.matmul %222, %223, %cst_124 {dimension_numbers = #tpu.dot_dimension_numbers<[1], [0], [0], [1], [0, 0, 1, 1], [], []>} : vector<16x32xf32>, vector<32x8xf32>, vector<16x8xf32> -> vector<16x8xf32>
    %c0_125 = arith.constant 0 : index
    %c0_126 = arith.constant 0 : index
    %225 = vector.load %arg10[%c0_125, %c0_126] : memref<1x8xf32, #tpu.memory_space<vmem>>, vector<1x8xf32>
    %226 = vector.broadcast %225 : vector<1x8xf32> to vector<16x8xf32>
    %227 = arith.addf %224, %226 : vector<16x8xf32>
    %c0_127 = arith.constant 0 : index
    %c0_128 = arith.constant 0 : index
    %228 = vector.load %arg15[%c0_127, %c0_128] : memref<16x8xf32, #tpu.memory_space<vmem>>, vector<16x8xf32>
    tpu.vector_store %arg15[%c0_127, %c0_128], %227 {strides = array<i32>} : memref<16x8xf32, #tpu.memory_space<vmem>>, vector<16x8xf32>,
    %c0_i32_129 = arith.constant 0 : i32
    %c1_i32_130 = arith.constant 1 : i32
    %229 = arith.muli %c0_i32_129, %c1_i32_130 : i32
    %c0_i32_131 = arith.constant 0 : i32
    %230 = arith.addi %c0_i32_131, %229 : i32
    %c128_i32_132 = arith.constant 128 : i32
    %231 = arith.muli %230, %c128_i32_132 : i32
    %232 = tpu.assume_multiple %231, 128 : i32
    %233 = tpu.iota {dimensions = array<i32: 1>} : vector<1x128xi32>
    %234 = vector.broadcast %232 : i32 to vector<1x128xi32>
    %235 = arith.addi %233, %234 : vector<1x128xi32>
    %cst_133 = arith.constant -1.000000e+30 : f32
    %236 = vector.broadcast %cst_133 : f32 to vector<8x128xf32>
    %c0_i32_134 = arith.constant 0 : i32
    %c16_i32_135 = arith.constant 16 : i32
    %237 = arith.muli %c0_i32_134, %c16_i32_135 : i32
    %238 = tpu.assume_multiple %237, 8 : i32
    %239 = arith.index_cast %238 : i32 to index
    %c0_136 = arith.constant 0 : index
    %240 = vector.load %arg12[%239, %c0_136] : memref<16x1xi32, #tpu.memory_space<vmem>>, vector<16x1xi32>
    %241 = arith.index_cast %238 : i32 to index
    %c0_137 = arith.constant 0 : index
    %242 = vector.load %arg15[%241, %c0_137] : memref<16x8xf32, #tpu.memory_space<vmem>>, vector<16x8xf32>
    %243 = vector.broadcast %240 : vector<16x1xi32> to vector<16x128xi32>
    %244 = vector.broadcast %235 : vector<1x128xi32> to vector<16x128xi32>
    %245 = arith.cmpi eq, %243, %244 : vector<16x128xi32>
    %246 = vector.shape_cast %245 : vector<16x128xi1> to vector<16x1x128xi1>
    %247 = vector.shape_cast %242 : vector<16x8xf32> to vector<16x8x1xf32>
    %cst_138 = arith.constant -1.000000e+30 : f32
    %248 = vector.shape_cast %246 : vector<16x1x128xi1> to vector<16x1x128xi1>
    %249 = vector.broadcast %248 : vector<16x1x128xi1> to vector<16x8x128xi1>
    %250 = vector.shape_cast %247 : vector<16x8x1xf32> to vector<16x8x1xf32>
    %251 = vector.broadcast %250 : vector<16x8x1xf32> to vector<16x8x128xf32>
    %252 = vector.broadcast %cst_138 : f32 to vector<16x8x128xf32>
    %253 = arith.select %249, %251, %252 : vector<16x8x128xi1>, vector<16x8x128xf32>
    %cst_139 = arith.constant dense<0xFF800000> : vector<8x128xf32>
    %254 = vector.multi_reduction <maximumf>, %253, %cst_139 [0] : vector<16x8x128xf32> to vector<8x128xf32>
    %255 = arith.maximumf %236, %254 : vector<8x128xf32>
    %c1_i32_140 = arith.constant 1 : i32
    %cst_141 = arith.constant 0.000000e+00 : f32
    %256 = vector.broadcast %cst_141 : f32 to vector<8x128xf32>
    %257 = arith.maximumf %255, %256 : vector<8x128xf32>
    %c0_142 = arith.constant 0 : index
    %c0_143 = arith.constant 0 : index
    %258 = arith.index_cast %232 : i32 to index
    %259 = vector.load %arg11[%c0_142, %c0_143, %258] : memref<1x8x128xf32, #tpu.memory_space<vmem>>, vector<1x8x128xf32>
    %260 = vector.shape_cast %259 : vector<1x8x128xf32> to vector<8x128xf32>
    %261 = vector.shape_cast %257 : vector<8x128xf32> to vector<1x8x128xf32>
    tpu.vector_store %arg11[%c0_142, %c0_143, %258], %261 {strides = array<i32>} : memref<1x8x128xf32, #tpu.memory_space<vmem>>, vector<1x8x128xf32>,
    %c1_i32_144 = arith.constant 1 : i32
    return
  }
  func.func @transform_0(%arg0: i32) -> (i32, i32, i32) {
    %c0_i32 = arith.constant 0 : i32
    %c0_i32_0 = arith.constant 0 : i32
    %c0_i32_1 = arith.constant 0 : i32
    return %arg0, %c0_i32, %c0_i32_0 : i32, i32, i32
  }
  func.func @transform_1(%arg0: i32) -> (i32, i32) {
    %c0_i32 = arith.constant 0 : i32
    %c0_i32_0 = arith.constant 0 : i32
    %c0_i32_1 = arith.constant 0 : i32
    return %c0_i32, %c0_i32_0 : i32, i32
  }
  func.func @transform_2(%arg0: i32) -> (i32, i32) {
    %c0_i32 = arith.constant 0 : i32
    %c0_i32_0 = arith.constant 0 : i32
    %c0_i32_1 = arith.constant 0 : i32
    return %c0_i32, %c0_i32_0 : i32, i32
  }
  func.func @transform_3(%arg0: i32) -> (i32, i32, i32) {
    %c0_i32 = arith.constant 0 : i32
    %c0_i32_0 = arith.constant 0 : i32
    %c0_i32_1 = arith.constant 0 : i32
    %c0_i32_2 = arith.constant 0 : i32
    return %c0_i32, %c0_i32_0, %c0_i32_1 : i32, i32, i32
  }
  func.func @transform_4(%arg0: i32) -> (i32, i32) {
    %c0_i32 = arith.constant 0 : i32
    %c0_i32_0 = arith.constant 0 : i32
    %c0_i32_1 = arith.constant 0 : i32
    return %c0_i32, %c0_i32_0 : i32, i32
  }
  func.func @transform_5(%arg0: i32) -> (i32, i32, i32) {
    %c0_i32 = arith.constant 0 : i32
    %c0_i32_0 = arith.constant 0 : i32
    %c0_i32_1 = arith.constant 0 : i32
    %c0_i32_2 = arith.constant 0 : i32
    return %c0_i32, %c0_i32_0, %c0_i32_1 : i32, i32, i32
  }
  func.func @transform_6(%arg0: i32) -> (i32, i32) {
    %c0_i32 = arith.constant 0 : i32
    %c0_i32_0 = arith.constant 0 : i32
    %c0_i32_1 = arith.constant 0 : i32
    return %c0_i32, %c0_i32_0 : i32, i32
  }
  func.func @transform_7(%arg0: i32) -> (i32, i32, i32) {
    %c0_i32 = arith.constant 0 : i32
    %c0_i32_0 = arith.constant 0 : i32
    %c0_i32_1 = arith.constant 0 : i32
    %c0_i32_2 = arith.constant 0 : i32
    return %c0_i32, %c0_i32_0, %c0_i32_1 : i32, i32, i32
  }
  func.func @transform_8(%arg0: i32) -> (i32, i32) {
    %c0_i32 = arith.constant 0 : i32
    %c0_i32_0 = arith.constant 0 : i32
    %c0_i32_1 = arith.constant 0 : i32
    return %c0_i32, %c0_i32_0 : i32, i32
  }
  func.func @transform_9(%arg0: i32) -> (i32, i32) {
    %c0_i32 = arith.constant 0 : i32
    %c0_i32_0 = arith.constant 0 : i32
    %c0_i32_1 = arith.constant 0 : i32
    return %c0_i32, %c0_i32_0 : i32, i32
  }
  func.func @transform_10(%arg0: i32) -> (i32, i32, i32) {
    %c0_i32 = arith.constant 0 : i32
    %c0_i32_0 = arith.constant 0 : i32
    %c0_i32_1 = arith.constant 0 : i32
    return %arg0, %c0_i32, %c0_i32_0 : i32, i32, i32
  }
}

</mosaic_0001>

<llo_original>
// kernel: tpu_custom_call.1
$region0: #{tpu_custom_call.1}
  #allocation0 [shape = 'u32[]', space=smem, size = 0x4, offset = 0x4, fixed_abs, tag = 'smem constant byte address 0x4 - core index']
  #allocation1 [shape = 'u32[144,128]{1,0:T(1,128)}', space=vmem, size = 0x12000, scoped, tag = 'internal scratch']
  #allocation2 [shape = 's32[16,1]{1,0:T(8,128)}', space=vmem, size = 0x2000, scoped, tag = 'scratch operand']
  #allocation3 [shape = 'f32[16,32]{1,0:T(8,128)}', space=vmem, size = 0x2000, scoped, tag = 'scratch operand']
  #allocation4 [shape = 'f32[16,32]{1,0:T(8,128)}', space=vmem, size = 0x2000, scoped, tag = 'scratch operand']
  #allocation5 [shape = 'f32[16,8]{1,0:T(8,128)}', space=vmem, size = 0x2000, scoped, tag = 'scratch operand']
  %s0 = inlined_call_operand.vmem [shape: f32[2,16,3], index: 0, kind: input, shape index: {}]
  %s1 = inlined_call_operand.vmem [shape: f32[3,64], index: 1, kind: input, shape index: {}]
  %s2 = inlined_call_operand.vmem [shape: f32[1,64], index: 2, kind: input, shape index: {}]
  %s3 = inlined_call_operand.vmem [shape: f32[3,64,32], index: 3, kind: input, shape index: {}]
  %s4 = inlined_call_operand.vmem [shape: f32[3,32], index: 4, kind: input, shape index: {}]
  %s5 = inlined_call_operand.vmem [shape: f32[3,32,32], index: 5, kind: input, shape index: {}]
  %s6 = inlined_call_operand.vmem [shape: f32[3,32], index: 6, kind: input, shape index: {}]
  %s7 = inlined_call_operand.vmem [shape: f32[3,64,32], index: 7, kind: input, shape index: {}]
  %s8 = inlined_call_operand.vmem [shape: f32[32,8], index: 8, kind: input, shape index: {}]
  %s9 = inlined_call_operand.vmem [shape: f32[1,8], index: 9, kind: input, shape index: {}]
  %s10 = inlined_call_operand.hbm [shape: f32[2,8,128], index: 10, kind: output, shape index: {}]
  %s11 = sld [smem:[#allocation0]]
  $region73: #{tpu_custom_call.1} parent=0
    _
  %s13 = ssub.s32 1, %s11
  %s14 = scalar_select 0, %s13, %s11
  $region1: #{tpu_custom_call.1} parent=0
    #allocation6 [shape = 'u8[8192]{0}', space=vmem, size = 0x2000, scoped, tag = 'output window, operand 0']
    #allocation7 [shape = 's32[2]{0}', space=sflag, size = 0x8, scoped, tag = 'scoped memory for tpu_custom_call.1']
    %15 = vsyncpa [#allocation7], 0
    %s16 = scalar_lea.sflag [#allocation7], 1
    %17 = vsyncpa %s16, 0
    loop: start=0, step=1, limit=4
    $region2: #{tpu_custom_call.1} parent=1 // loop_pre_header
      _
    $region3: #{tpu_custom_call.1} parent=1 // loop_header
      %s19 = sphi 0, %s23
      %p20 = scmp.ge.s32.totalorder %s19, 4
      %s29 = sphi 0, %s31
      %s32 = sphi 0, %s29
      %s33 = sphi 0, %s32
      %s49 = sphi 0, %s33
      %s53 = sphi 0, %s53
      %s55 = sphi 0, %s53
      %s56 = sphi 0, %s55
      %s70 = sphi 0, %s56
      %s74 = sphi 0, %s74
      %s76 = sphi 0, %s74
      %s77 = sphi 0, %s76
      %s91 = sphi 0, %s77
      %s95 = sphi 0, %s95
      %s97 = sphi 0, %s95
      %s98 = sphi 0, %s97
      %s112 = sphi 0, %s98
      %s116 = sphi 0, %s116
      %s118 = sphi 0, %s116
      %s119 = sphi 0, %s118
      %s133 = sphi 0, %s119
      %s137 = sphi 0, %s137
      %s139 = sphi 0, %s137
      %s140 = sphi 0, %s139
      %s154 = sphi 0, %s140
      %s158 = sphi 0, %s158
      %s160 = sphi 0, %s158
      %s161 = sphi 0, %s160
      %s175 = sphi 0, %s161
      %s179 = sphi 0, %s179
      %s181 = sphi 0, %s179
      %s182 = sphi 0, %s181
      %s196 = sphi 0, %s182
      %s200 = sphi 0, %s200
      %s202 = sphi 0, %s200
      %s203 = sphi 0, %s202
      %s217 = sphi 0, %s203
      %s221 = sphi 0, %s221
      %s223 = sphi 0, %s221
      %s224 = sphi 0, %s223
      %s238 = sphi 0, %s224
      %s244 = sphi 0, %s246
      %s247 = sphi 0, %s244
      %s248 = sphi 0, %s247
      %s264 = sphi 0, %s248
    $region4: #{tpu_custom_call.1} parent=1 // loop_header_branch
      %22 = sbr.rel (%p20) target = $region8
    $region5: #{tpu_custom_call.1} parent=1 // loop_body
      %s24 = ssub.s32 %s19, 1
      %s25 = ssub.s32 %s19, 2
      %s26 = sadd.s32 %s19, 1
      %s27 = ssub.s32 %s19, %s26
      %p28 = scmp.eq.s32.totalorder %s27, 0
      %s30 = sadd.s32 %s29, 1
      %s31 = scalar_select %p28, %s29, %s30
      %p34 = pneg %p28
      %p35 = scmp.eq.s32.totalorder %s19, 1
      %p36 = por %p34, %p35
      %p37 = scmp.ne.s32.totalorder %s29, %s32
      %p38 = scmp.eq.s32.totalorder %s19, 0
      %p39 = por %p37, %p38
      %p40 = scmp.ne.s32.totalorder %s29, %s32
      %p41 = scmp.eq.s32.totalorder %s24, 1
      %p42 = por %p40, %p41
      %p43 = scmp.ne.s32.totalorder %s32, %s33
      %p44 = scmp.eq.s32.totalorder %s24, 0
      %p45 = por %p43, %p44
      %p46 = scmp.ne.s32.totalorder %s32, %s33
      %p47 = scmp.eq.s32.totalorder %s25, 1
      %p48 = por %p46, %p47
      %p50 = scmp.ne.s32.totalorder %s33, %s49
      %p51 = scmp.eq.s32.totalorder %s25, 0
      %p52 = por %p50, %p51
      %s54 = sadd.s32 %s53, 1
      %p57 = scmp.eq.s32.totalorder %s19, 1
      %p58 = scmp.ne.s32.totalorder %s53, %s55
      %p59 = scmp.eq.s32.totalorder %s19, 0
      %p60 = por %p58, %p59
      %p61 = scmp.ne.s32.totalorder %s53, %s55
      %p62 = scmp.eq.s32.totalorder %s24, 1
      %p63 = por %p61, %p62
      %p64 = scmp.ne.s32.totalorder %s55, %s56
      %p65 = scmp.eq.s32.totalorder %s24, 0
      %p66 = por %p64, %p65
      %p67 = scmp.ne.s32.totalorder %s55, %s56
      %p68 = scmp.eq.s32.totalorder %s25, 1
      %p69 = por %p67, %p68
      %p71 = scmp.ne.s32.totalorder %s56, %s70
      %p72 = scmp.eq.s32.totalorder %s25, 0
      %p73 = por %p71, %p72
      %s75 = sadd.s32 %s74, 1
      %p78 = scmp.eq.s32.totalorder %s19, 1
      %p79 = scmp.ne.s32.totalorder %s74, %s76
      %p80 = scmp.eq.s32.totalorder %s19, 0
      %p81 = por %p79, %p80
      %p82 = scmp.ne.s32.totalorder %s74, %s76
      %p83 = scmp.eq.s32.totalorder %s24, 1
      %p84 = por %p82, %p83
      %p85 = scmp.ne.s32.totalorder %s76, %s77
      %p86 = scmp.eq.s32.totalorder %s24, 0
      %p87 = por %p85, %p86
      %p88 = scmp.ne.s32.totalorder %s76, %s77
      %p89 = scmp.eq.s32.totalorder %s25, 1
      %p90 = por %p88, %p89
      %p92 = scmp.ne.s32.totalorder %s77, %s91
      %p93 = scmp.eq.s32.totalorder %s25, 0
      %p94 = por %p92, %p93
      %s96 = sadd.s32 %s95, 1
      %p99 = scmp.eq.s32.totalorder %s19, 1
      %p100 = scmp.ne.s32.totalorder %s95, %s97
      %p101 = scmp.eq.s32.totalorder %s19, 0
      %p102 = por %p100, %p101
      %p103 = scmp.ne.s32.totalorder %s95, %s97
      %p104 = scmp.eq.s32.totalorder %s24, 1
      %p105 = por %p103, %p104
      %p106 = scmp.ne.s32.totalorder %s97, %s98
      %p107 = scmp.eq.s32.totalorder %s24, 0
      %p108 = por %p106, %p107
      %p109 = scmp.ne.s32.totalorder %s97, %s98
      %p110 = scmp.eq.s32.totalorder %s25, 1
      %p111 = por %p109, %p110
      %p113 = scmp.ne.s32.totalorder %s98, %s112
      %p114 = scmp.eq.s32.totalorder %s25, 0
      %p115 = por %p113, %p114
      %s117 = sadd.s32 %s116, 1
      %p120 = scmp.eq.s32.totalorder %s19, 1
      %p121 = scmp.ne.s32.totalorder %s116, %s118
      %p122 = scmp.eq.s32.totalorder %s19, 0
      %p123 = por %p121, %p122
      %p124 = scmp.ne.s32.totalorder %s116, %s118
      %p125 = scmp.eq.s32.totalorder %s24, 1
      %p126 = por %p124, %p125
      %p127 = scmp.ne.s32.totalorder %s118, %s119
      %p128 = scmp.eq.s32.totalorder %s24, 0
      %p129 = por %p127, %p128
      %p130 = scmp.ne.s32.totalorder %s118, %s119
      %p131 = scmp.eq.s32.totalorder %s25, 1
      %p132 = por %p130, %p131
      %p134 = scmp.ne.s32.totalorder %s119, %s133
      %p135 = scmp.eq.s32.totalorder %s25, 0
      %p136 = por %p134, %p135
      %s138 = sadd.s32 %s137, 1
      %p141 = scmp.eq.s32.totalorder %s19, 1
      %p142 = scmp.ne.s32.totalorder %s137, %s139
      %p143 = scmp.eq.s32.totalorder %s19, 0
      %p144 = por %p142, %p143
      %p145 = scmp.ne.s32.totalorder %s137, %s139
      %p146 = scmp.eq.s32.totalorder %s24, 1
      %p147 = por %p145, %p146
      %p148 = scmp.ne.s32.totalorder %s139, %s140
      %p149 = scmp.eq.s32.totalorder %s24, 0
      %p150 = por %p148, %p149
      %p151 = scmp.ne.s32.totalorder %s139, %s140
      %p152 = scmp.eq.s32.totalorder %s25, 1
      %p153 = por %p151, %p152
      %p155 = scmp.ne.s32.totalorder %s140, %s154
      %p156 = scmp.eq.s32.totalorder %s25, 0
      %p157 = por %p155, %p156
      %s159 = sadd.s32 %s158, 1
      %p162 = scmp.eq.s32.totalorder %s19, 1
      %p163 = scmp.ne.s32.totalorder %s158, %s160
      %p164 = scmp.eq.s32.totalorder %s19, 0
      %p165 = por %p163, %p164
      %p166 = scmp.ne.s32.totalorder %s158, %s160
      %p167 = scmp.eq.s32.totalorder %s24, 1
      %p168 = por %p166, %p167
      %p169 = scmp.ne.s32.totalorder %s160, %s161
      %p170 = scmp.eq.s32.totalorder %s24, 0
      %p171 = por %p169, %p170
      %p172 = scmp.ne.s32.totalorder %s160, %s161
      %p173 = scmp.eq.s32.totalorder %s25, 1
      %p174 = por %p172, %p173
      %p176 = scmp.ne.s32.totalorder %s161, %s175
      %p177 = scmp.eq.s32.totalorder %s25, 0
      %p178 = por %p176, %p177
      %s180 = sadd.s32 %s179, 1
      %p183 = scmp.eq.s32.totalorder %s19, 1
      %p184 = scmp.ne.s32.totalorder %s179, %s181
      %p185 = scmp.eq.s32.totalorder %s19, 0
      %p186 = por %p184, %p185
      %p187 = scmp.ne.s32.totalorder %s179, %s181
      %p188 = scmp.eq.s32.totalorder %s24, 1
      %p189 = por %p187, %p188
      %p190 = scmp.ne.s32.totalorder %s181, %s182
      %p191 = scmp.eq.s32.totalorder %s24, 0
      %p192 = por %p190, %p191
      %p193 = scmp.ne.s32.totalorder %s181, %s182
      %p194 = scmp.eq.s32.totalorder %s25, 1
      %p195 = por %p193, %p194
      %p197 = scmp.ne.s32.totalorder %s182, %s196
      %p198 = scmp.eq.s32.totalorder %s25, 0
      %p199 = por %p197, %p198
      %s201 = sadd.s32 %s200, 1
      %p204 = scmp.eq.s32.totalorder %s19, 1
      %p205 = scmp.ne.s32.totalorder %s200, %s202
      %p206 = scmp.eq.s32.totalorder %s19, 0
      %p207 = por %p205, %p206
      %p208 = scmp.ne.s32.totalorder %s200, %s202
      %p209 = scmp.eq.s32.totalorder %s24, 1
      %p210 = por %p208, %p209
      %p211 = scmp.ne.s32.totalorder %s202, %s203
      %p212 = scmp.eq.s32.totalorder %s24, 0
      %p213 = por %p211, %p212
      %p214 = scmp.ne.s32.totalorder %s202, %s203
      %p215 = scmp.eq.s32.totalorder %s25, 1
      %p216 = por %p214, %p215
      %p218 = scmp.ne.s32.totalorder %s203, %s217
      %p219 = scmp.eq.s32.totalorder %s25, 0
      %p220 = por %p218, %p219
      %s222 = sadd.s32 %s221, 1
      %p225 = scmp.eq.s32.totalorder %s19, 1
      %p226 = scmp.ne.s32.totalorder %s221, %s223
      %p227 = scmp.eq.s32.totalorder %s19, 0
      %p228 = por %p226, %p227
      %p229 = scmp.ne.s32.totalorder %s221, %s223
      %p230 = scmp.eq.s32.totalorder %s24, 1
      %p231 = por %p229, %p230
      %p232 = scmp.ne.s32.totalorder %s223, %s224
      %p233 = scmp.eq.s32.totalorder %s24, 0
      %p234 = por %p232, %p233
      %p235 = scmp.ne.s32.totalorder %s223, %s224
      %p236 = scmp.eq.s32.totalorder %s25, 1
      %p237 = por %p235, %p236
      %p239 = scmp.ne.s32.totalorder %s224, %s238
      %p240 = scmp.eq.s32.totalorder %s25, 0
      %p241 = por %p239, %p240
      %s242 = ssub.s32 %s19, %s26
      %p243 = scmp.eq.s32.totalorder %s242, 0
      %s245 = sadd.s32 %s244, 1
      %s246 = scalar_select %p243, %s244, %s245
      %p249 = pneg %p243
      %p250 = scmp.eq.s32.totalorder %s19, 1
      %p251 = por %p249, %p250
      %p252 = scmp.ne.s32.totalorder %s244, %s247
      %p253 = scmp.eq.s32.totalorder %s19, 0
      %p254 = por %p252, %p253
      %p255 = scmp.ne.s32.totalorder %s244, %s247
      %p256 = scmp.eq.s32.totalorder %s24, 1
      %p257 = por %p255, %p256
      %p258 = scmp.ne.s32.totalorder %s247, %s248
      %p259 = scmp.eq.s32.totalorder %s24, 0
      %p260 = por %p258, %p259
      %p261 = scmp.ne.s32.totalorder %s247, %s248
      %p262 = scmp.eq.s32.totalorder %s25, 1
      %p263 = por %p261, %p262
      %p265 = scmp.ne.s32.totalorder %s248, %s264
      %p266 = scmp.eq.s32.totalorder %s25, 0
      %p267 = por %p265, %p266
      %p268 = scmp.le.s32.totalorder 1, %s19
      %p269 = scmp.lt.s32.totalorder %s19, 3
      %p270 = pnand %p268, %p269
      %p271 = pneg %p270
      // Predicated region
      $region9: #{tpu_custom_call.1} parent=5 // pred_check
        _
      $region10: #{tpu_custom_call.1} parent=5 // pred_check_branch
        %273 = sbr.rel (%p270) target = $region12
      $region11: #{tpu_custom_call.1} parent=5 // pred_region
        %s274 = ssub.s32 %s19, 1
        // Predicated region
        $region13: #{tpu_custom_call.1} parent=11 // pred_check
          %p275 = pneg %p66
        $region14: #{tpu_custom_call.1} parent=11 // pred_check_branch
          %277 = sbr.rel (%p275) target = $region16
        $region15: #{tpu_custom_call.1} parent=11 // pred_region
          _
        $region16: #{tpu_custom_call.1} parent=11 // pred_fallthru
          _
        // Predicated region
        $region17: #{tpu_custom_call.1} parent=11 // pred_check
          %p278 = pneg %p87
        $region18: #{tpu_custom_call.1} parent=11 // pred_check_branch
          %280 = sbr.rel (%p278) target = $region20
        $region19: #{tpu_custom_call.1} parent=11 // pred_region
          _
        $region20: #{tpu_custom_call.1} parent=11 // pred_fallthru
          _
        // Predicated region
        $region21: #{tpu_custom_call.1} parent=11 // pred_check
          %p281 = pneg %p108
        $region22: #{tpu_custom_call.1} parent=11 // pred_check_branch
          %283 = sbr.rel (%p281) target = $region24
        $region23: #{tpu_custom_call.1} parent=11 // pred_region
          _
        $region24: #{tpu_custom_call.1} parent=11 // pred_fallthru
          _
        // Predicated region
        $region25: #{tpu_custom_call.1} parent=11 // pred_check
          %p284 = pneg %p129
        $region26: #{tpu_custom_call.1} parent=11 // pred_check_branch
          %286 = sbr.rel (%p284) target = $region28
        $region27: #{tpu_custom_call.1} parent=11 // pred_region
          _
        $region28: #{tpu_custom_call.1} parent=11 // pred_fallthru
          _
        // Predicated region
        $region29: #{tpu_custom_call.1} parent=11 // pred_check
          %p287 = pneg %p150
        $region30: #{tpu_custom_call.1} parent=11 // pred_check_branch
          %289 = sbr.rel (%p287) target = $region32
        $region31: #{tpu_custom_call.1} parent=11 // pred_region
          _
        $region32: #{tpu_custom_call.1} parent=11 // pred_fallthru
          _
        // Predicated region
        $region33: #{tpu_custom_call.1} parent=11 // pred_check
          %p290 = pneg %p171
        $region34: #{tpu_custom_call.1} parent=11 // pred_check_branch
          %292 = sbr.rel (%p290) target = $region36
        $region35: #{tpu_custom_call.1} parent=11 // pred_region
          _
        $region36: #{tpu_custom_call.1} parent=11 // pred_fallthru
          _
        // Predicated region
        $region37: #{tpu_custom_call.1} parent=11 // pred_check
          %p293 = pneg %p192
        $region38: #{tpu_custom_call.1} parent=11 // pred_check_branch
          %295 = sbr.rel (%p293) target = $region40
        $region39: #{tpu_custom_call.1} parent=11 // pred_region
          _
        $region40: #{tpu_custom_call.1} parent=11 // pred_fallthru
          _
        // Predicated region
        $region41: #{tpu_custom_call.1} parent=11 // pred_check
          %p296 = pneg %p213
        $region42: #{tpu_custom_call.1} parent=11 // pred_check_branch
          %298 = sbr.rel (%p296) target = $region44
        $region43: #{tpu_custom_call.1} parent=11 // pred_region
          _
        $region44: #{tpu_custom_call.1} parent=11 // pred_fallthru
          _
        // Predicated region
        $region45: #{tpu_custom_call.1} parent=11 // pred_check
          %p299 = pneg %p234
        $region46: #{tpu_custom_call.1} parent=11 // pred_check_branch
          %301 = sbr.rel (%p299) target = $region48
        $region47: #{tpu_custom_call.1} parent=11 // pred_region
          _
        $region48: #{tpu_custom_call.1} parent=11 // pred_fallthru
          _
      $region12: #{tpu_custom_call.1} parent=5 // pred_fallthru
        _
      %p302 = scmp.lt.s32.totalorder %s19, 2
      // Predicated region
      $region49: #{tpu_custom_call.1} parent=5 // pred_check
        %p303 = pneg %p302
      $region50: #{tpu_custom_call.1} parent=5 // pred_check_branch
        %305 = sbr.rel (%p303) target = $region52
      $region51: #{tpu_custom_call.1} parent=5 // pred_region
        // Predicated region
        $region53: #{tpu_custom_call.1} parent=51 // pred_check
          %p306 = pneg %p39
        $region54: #{tpu_custom_call.1} parent=51 // pred_check_branch
          %308 = sbr.rel (%p306) target = $region56
        $region55: #{tpu_custom_call.1} parent=51 // pred_region
          %p309 = scmp.lt.s32.totalorder %s19, 1
          %s310 = scalar_select %p309, %s19, 1
          %s311 = smul.addr %s310, 2
          %s312 = smul.addr %s311, 8
          %s313 = scalar_lea.vmem %s0, %s312
        $region56: #{tpu_custom_call.1} parent=51 // pred_fallthru
          _
      $region52: #{tpu_custom_call.1} parent=5 // pred_fallthru
        _
      %p314 = scmp.le.s32.totalorder 1, %s19
      %p315 = scmp.lt.s32.totalorder %s19, 3
      %p316 = pnand %p314, %p315
      %p317 = pneg %p316
      // Predicated region
      $region57: #{tpu_custom_call.1} parent=5 // pred_check
        _
      $region58: #{tpu_custom_call.1} parent=5 // pred_check_branch
        %319 = sbr.rel (%p316) target = $region60
      $region59: #{tpu_custom_call.1} parent=5 // pred_region
        %s320 = ssub.s32 %s19, 1
        %p321 = scmp.lt.s32.totalorder %s24, 1
        %s322 = scalar_select %p321, %s24, 1
        %s323 = smul.addr %s322, 2
        %s324 = smul.addr %s323, 8
        %s325 = scalar_lea.vmem %s0, %s324
        %p326 = pneg %p45
        %p327 = pneg %p42
        %p328 = pneg %p66
        %p329 = pneg %p63
        %p330 = pneg %p87
        %p331 = pneg %p84
        %p332 = pneg %p108
        %p333 = pneg %p105
        %p334 = pneg %p129
        %p335 = pneg %p126
        %p336 = pneg %p150
        %p337 = pneg %p147
        %p338 = pneg %p171
        %p339 = pneg %p168
        %p340 = pneg %p192
        %p341 = pneg %p189
        %p342 = pneg %p213
        %p343 = pneg %p210
        %p344 = pneg %p234
        %p345 = pneg %p231
        %p346 = pneg %p260
        %p347 = pneg %p257
        %s348 = sand.u32 %s247, 1
        %s349 = scalar_lea.sflag [#allocation7], %s348
        %s350 = sand.u32 %s247, 1
        %s351 = smul.addr %s350, 8
        %s352 = scalar_lea.vmem [#allocation6], %s351
        %p353 = scmp.lt.s32.totalorder %s24, 1
        %s354 = scalar_select %p353, %s24, 1
        %s355 = smul.addr %s354, 2
        %s356 = smul.addr %s355, 8
        %s357 = scalar_lea.vmem %s0, %s356
        %v358 = vld [vmem:[%s357] sm:$0xff]
        %v359 = vld [vmem:[%s357 + $0x8] sm:$0xff]
        %v360 = vadd.f32 %v358, 1.0
        %v361 = vadd.f32 %v359, 1.0
        %vm362 = vcmp.ge.f32.partialorder %v360, 2.0
        %vm363 = vcmp.ge.f32.partialorder %v361, 2.0
        %v364 = vsel %vm362, 1.9999, %v360
        %v365 = vsel %vm363, 1.9999, %v361
        %vm366 = vcmp.lt.f32.partialorder %v364, 0.0
        %vm367 = vcmp.lt.f32.partialorder %v365, 0.0
        %v368 = vsel %vm366, 0.0, %v364
        %v369 = vsel %vm367, 0.0, %v365
        %v370 = vrcp.pop 2.0
        %v371 = vmul.f32 %v368, %v370
        %v372 = vmul.f32 %v369, %v370
        %v373 = vmul.f32 %v371, 4.0
        %v374 = vmul.f32 %v372, 4.0
        %v375 = vcvt.f32.s32.to.zero.pseudo %v373
        %v376 = vcvt.f32.s32.to.zero.pseudo %v374
        %v377 = vmul.u32 %v375, 4
        %v378 = vmul.u32 %v376, 4
        %379 = vrot.lane.b32.xlu0 %v377, 127
        %v380 = vpop.permute.xlu0 %379
        %381 = vrot.lane.b32.xlu0 %v378, 127
        %v382 = vpop.permute.xlu0 %381
        %v383 = vadd.s32 %v375, %v380
        %v384 = vadd.s32 %v376, %v382
        %v385 = vmul.u32 %v375, 16
        %v386 = vmul.u32 %v376, 16
        %387 = vrot.lane.b32.xlu0 %v385, 126
        %v388 = vpop.permute.xlu0 %387
        %389 = vrot.lane.b32.xlu0 %v386, 126
        %v390 = vpop.permute.xlu0 %389
        %v391 = vadd.s32 %v383, %v388
        %v392 = vadd.s32 %v384, %v390
        %v393 = vlaneseq
        %v394 = vshrl.u32 %v393, 7
        %v395 = vadd.s32 %v394, 8
        %vm396 = vcmp.lt.s32.totalorder %v394, 16
        %vm397 = vcmp.lt.s32.totalorder %v395, 16
        %v398 = vsel %vm396, %v391, 4294967295
        %v399 = vsel %vm397, %v392, 4294967295
        %vm400 = vcmask 7168
        %401 = vst.msk [vmem:[#allocation2] sm:$0xff] %vm400, %v398
        %402 = vst.msk [vmem:[#allocation2 + $0x8] sm:$0xff] %vm400, %v399
        %v403 = vld [vmem:[%s1] sm:$0x7]
        %405 = vset.pattern.permute.xlu0 0
        %406 = vperm.xlu0 %405, %v358
        %v407 = vpop.permute.xlu0 %406
        %410 = vset.pattern.permute.xlu0 0
        %411 = vperm.xlu0 %410, %v359
        %v412 = vpop.permute.xlu0 %411
        %v414 = vlaneseq
        %v415 = vshrl.u32 %v414, 7
        %v416 = vsub.s32 0, %v415
        %v417 = vrot.slane %v403, %v416
        %v418 = vmul.f32 %v407, %v417
        %v419 = vmul.f32 %v412, %v417
        %420 = vset.pattern.permute.xlu0 1
        %421 = vperm.xlu0 %420, %v358
        %v422 = vpop.permute.xlu0 %421
        %424 = vset.pattern.permute.xlu0 1
        %425 = vperm.xlu0 %424, %v359
        %v426 = vpop.permute.xlu0 %425
        %v428 = vlaneseq
        %v429 = vshrl.u32 %v428, 7
        %v430 = vsub.s32 1, %v429
        %v431 = vrot.slane %v403, %v430
        %v432 = vmul.f32 %v422, %v431
        %v433 = vmul.f32 %v426, %v431
        %v434 = vadd.f32 %v418, %v432
        %v435 = vadd.f32 %v419, %v433
        %436 = vset.pattern.permute.xlu0 2
        %437 = vperm.xlu0 %436, %v358
        %v438 = vpop.permute.xlu0 %437
        %440 = vset.pattern.permute.xlu0 2
        %441 = vperm.xlu0 %440, %v359
        %v442 = vpop.permute.xlu0 %441
        %v444 = vlaneseq
        %v445 = vshrl.u32 %v444, 7
        %v446 = vsub.s32 2, %v445
        %v447 = vrot.slane %v403, %v446
        %v448 = vmul.f32 %v438, %v447
        %v449 = vmul.f32 %v442, %v447
        %v450 = vadd.f32 %v434, %v448
        %v451 = vadd.f32 %v435, %v449
        %v452 = vld [vmem:[%s2] sm:$0x1]
        %v454 = vlaneseq
        %v455 = vshrl.u32 %v454, 7
        %v456 = vsub.s32 0, %v455
        %v457 = vrot.slane %v452, %v456
        %v459 = vadd.f32 %v450, %v457
        %v460 = vadd.f32 %v451, %v457
        %v461 = vmax.f32 %v459, 0.0
        %v462 = vmax.f32 %v460, 0.0
        %v463 = vld [vmem:[%s3] sm:$0xff]
        %v464 = vld [vmem:[%s3 + $0x8] sm:$0xff]
        %v465 = vld [vmem:[%s3 + $0x10] sm:$0xff]
        %v466 = vld [vmem:[%s3 + $0x18] sm:$0xff]
        %v467 = vld [vmem:[%s3 + $0x20] sm:$0xff]
        %v468 = vld [vmem:[%s3 + $0x28] sm:$0xff]
        %v469 = vld [vmem:[%s3 + $0x30] sm:$0xff]
        %v470 = vld [vmem:[%s3 + $0x38] sm:$0xff]
        %v471 = vld [vmem:[%s4] sm:$0x1]
        %v472 = vlaneseq
        %v473 = vshrl.u32 %v472, 7
        %v474 = vsub.s32 0, %v473
        %v475 = vrot.slane %v471, %v474
        %vm476 = vcmask 523264
        %v478 = vsel %vm476, %v461, 0
        %v481 = vsel %vm476, %v462, 0
        %483 = vmatprep.subr.mxu0 0.0
        %484 = vmatpush1.msra.mxu0 %v463
        %485 = vmatprep.subr.mxu0 0.0
        %486 = vmatpush1.msra.mxu0 %v464
        %487 = vmatprep.subr.mxu0 0.0
        %488 = vmatpush1.msra.mxu0 %v465
        %489 = vmatprep.subr.mxu0 0.0
        %490 = vmatpush1.msra.mxu0 %v466
        %491 = vmatprep.subr.mxu0 0.0
        %492 = vmatpush1.msra.mxu0 %v467
        %493 = vmatprep.subr.mxu0 0.0
        %494 = vmatpush1.msra.mxu0 %v468
        %495 = vmatprep.subr.mxu0 0.0
        %496 = vmatpush1.msra.mxu0 %v469
        %497 = vmatprep.subr.mxu0 0.0
        %498 = vmatpush1.msra.mxu0 %v470
        %499 = vmatprep.subr.mxu0 0.0
        %500 = vmatpush1.msra.mxu0 0.0
        %501 = vmatprep.subr.mxu0 0.0
        %502 = vmatpush1.msra.mxu0 0.0
        %503 = vmatprep.subr.mxu0 0.0
        %504 = vmatpush1.msra.mxu0 0.0
        %505 = vmatprep.subr.mxu0 0.0
        %506 = vmatpush1.msra.mxu0 0.0
        %507 = vmatprep.subr.mxu0 0.0
        %508 = vmatpush1.msra.mxu0 0.0
        %509 = vmatprep.subr.mxu0 0.0
        %510 = vmatpush1.msra.mxu0 0.0
        %511 = vmatprep.subr.mxu0 0.0
        %512 = vmatpush1.msra.mxu0 0.0
        %513 = vmatprep.subr.mxu0 0.0
        %514 = vmatpush1.msra.mxu0 0.0
        %515 = vmatprep.subr.mxu0 0.0
        %516 = vmatpush1.msra.mxu0 0.0
        %517 = vmatprep.subr.mxu0 0.0
        %518 = vmatpush1.msra.mxu0 0.0
        %519 = vmatprep.subr.mxu0 0.0
        %520 = vmatpush1.msra.mxu0 0.0
        %521 = vmatprep.subr.mxu0 0.0
        %522 = vmatpush1.msra.mxu0 0.0
        %523 = vmatprep.subr.mxu0 0.0
        %524 = vmatpush1.msra.mxu0 0.0
        %525 = vmatprep.subr.mxu0 0.0
        %526 = vmatpush1.msra.mxu0 0.0
        %527 = vmatprep.subr.mxu0 0.0
        %528 = vmatpush1.msra.mxu0 0.0
        %529 = vmatprep.subr.mxu0 0.0
        %530 = vmatpush1.msra.mxu0 0.0
        %531 = vmatprep.subr.mxu0 0.0
        %532 = vmatpush1.msra.mxu0 0.0
        %533 = vmatprep.subr.mxu0 0.0
        %534 = vmatpush1.msra.mxu0 0.0
        %535 = vmatprep.subr.mxu0 0.0
        %536 = vmatpush1.msra.mxu0 0.0
        %537 = vmatprep.subr.mxu0 0.0
        %538 = vmatpush1.msra.mxu0 0.0
        %539 = vmatprep.subr.mxu0 0.0
        %540 = vmatpush1.msra.mxu0 0.0
        %541 = vmatprep.subr.mxu0 0.0
        %542 = vmatpush1.msra.mxu0 0.0
        %543 = vmatprep.subr.mxu0 0.0
        %544 = vmatpush1.msra.mxu0 0.0
        %545 = vmatprep.subr.mxu0 0.0
        %546 = vmatpush1.msra.mxu0 0.0
        %547 = vmatprep.mubr.f32.mxu0 0.0
        %548 = vmatmul.mubr.f32.gmra.mrb[0].mxu0 %v478
        %v549 = vpop.f32.mrb[0].mxu0
        %v550 = vadd.f32 %v475, %v549
        %v551 = vpop.f32.mrb[0].mxu0
        %552 = vmatprep.mubr.f32.mxu0 0.0
        %553 = vmatmul.mubr.f32.gmra.mrb[0].mxu0 %v481
        %v554 = vpop.f32.mrb[0].mxu0
        %v555 = vadd.f32 %v475, %v554
        %v556 = vpop.f32.mrb[0].mxu0
        %557 = vdwg.mxu0
        %v558 = vmax.f32 %v550, 0.0
        %v559 = vmax.f32 %v555, 0.0
        %v560 = vld [vmem:[%s5] sm:$0xff]
        %v561 = vld [vmem:[%s5 + $0x8] sm:$0xff]
        %v562 = vld [vmem:[%s5 + $0x10] sm:$0xff]
        %v563 = vld [vmem:[%s5 + $0x18] sm:$0xff]
        %v564 = vld [vmem:[%s6] sm:$0x1]
        %v565 = vlaneseq
        %v566 = vshrl.u32 %v565, 7
        %v567 = vsub.s32 0, %v566
        %v568 = vrot.slane %v564, %v567
        %vm569 = vcmask 261120
        %v571 = vsel %vm569, %v558, 0
        %v574 = vsel %vm569, %v559, 0
        %576 = vmatprep.subr.mxu0 0.0
        %577 = vmatpush1.msra.mxu0 %v560
        %578 = vmatprep.subr.mxu0 0.0
        %579 = vmatpush1.msra.mxu0 %v561
        %580 = vmatprep.subr.mxu0 0.0
        %581 = vmatpush1.msra.mxu0 %v562
        %582 = vmatprep.subr.mxu0 0.0
        %583 = vmatpush1.msra.mxu0 %v563
        %584 = vmatprep.subr.mxu0 0.0
        %585 = vmatpush1.msra.mxu0 0.0
        %586 = vmatprep.subr.mxu0 0.0
        %587 = vmatpush1.msra.mxu0 0.0
        %588 = vmatprep.subr.mxu0 0.0
        %589 = vmatpush1.msra.mxu0 0.0
        %590 = vmatprep.subr.mxu0 0.0
        %591 = vmatpush1.msra.mxu0 0.0
        %592 = vmatprep.subr.mxu0 0.0
        %593 = vmatpush1.msra.mxu0 0.0
        %594 = vmatprep.subr.mxu0 0.0
        %595 = vmatpush1.msra.mxu0 0.0
        %596 = vmatprep.subr.mxu0 0.0
        %597 = vmatpush1.msra.mxu0 0.0
        %598 = vmatprep.subr.mxu0 0.0
        %599 = vmatpush1.msra.mxu0 0.0
        %600 = vmatprep.subr.mxu0 0.0
        %601 = vmatpush1.msra.mxu0 0.0
        %602 = vmatprep.subr.mxu0 0.0
        %603 = vmatpush1.msra.mxu0 0.0
        %604 = vmatprep.subr.mxu0 0.0
        %605 = vmatpush1.msra.mxu0 0.0
        %606 = vmatprep.subr.mxu0 0.0
        %607 = vmatpush1.msra.mxu0 0.0
        %608 = vmatprep.subr.mxu0 0.0
        %609 = vmatpush1.msra.mxu0 0.0
        %610 = vmatprep.subr.mxu0 0.0
        %611 = vmatpush1.msra.mxu0 0.0
        %612 = vmatprep.subr.mxu0 0.0
        %613 = vmatpush1.msra.mxu0 0.0
        %614 = vmatprep.subr.mxu0 0.0
        %615 = vmatpush1.msra.mxu0 0.0
        %616 = vmatprep.subr.mxu0 0.0
        %617 = vmatpush1.msra.mxu0 0.0
        %618 = vmatprep.subr.mxu0 0.0
        %619 = vmatpush1.msra.mxu0 0.0
        %620 = vmatprep.subr.mxu0 0.0
        %621 = vmatpush1.msra.mxu0 0.0
        %622 = vmatprep.subr.mxu0 0.0
        %623 = vmatpush1.msra.mxu0 0.0
        %624 = vmatprep.subr.mxu0 0.0
        %625 = vmatpush1.msra.mxu0 0.0
        %626 = vmatprep.subr.mxu0 0.0
        %627 = vmatpush1.msra.mxu0 0.0
        %628 = vmatprep.subr.mxu0 0.0
        %629 = vmatpush1.msra.mxu0 0.0
        %630 = vmatprep.subr.mxu0 0.0
        %631 = vmatpush1.msra.mxu0 0.0
        %632 = vmatprep.subr.mxu0 0.0
        %633 = vmatpush1.msra.mxu0 0.0
        %634 = vmatprep.subr.mxu0 0.0
        %635 = vmatpush1.msra.mxu0 0.0
        %636 = vmatprep.subr.mxu0 0.0
        %637 = vmatpush1.msra.mxu0 0.0
        %638 = vmatprep.subr.mxu0 0.0
        %639 = vmatpush1.msra.mxu0 0.0
        %640 = vmatprep.mubr.f32.mxu0 0.0
        %641 = vmatmul.mubr.f32.gmra.mrb[0].mxu0 %v571
        %v642 = vpop.f32.mrb[0].mxu0
        %v643 = vadd.f32 %v568, %v642
        %v644 = vpop.f32.mrb[0].mxu0
        %645 = vmatprep.mubr.f32.mxu0 0.0
        %646 = vmatmul.mubr.f32.gmra.mrb[0].mxu0 %v574
        %v647 = vpop.f32.mrb[0].mxu0
        %v648 = vadd.f32 %v568, %v647
        %v649 = vpop.f32.mrb[0].mxu0
        %650 = vdwg.mxu0
        %v651 = vld [vmem:[%s7] sm:$0xff]
        %v652 = vld [vmem:[%s7 + $0x8] sm:$0xff]
        %v653 = vld [vmem:[%s7 + $0x10] sm:$0xff]
        %v654 = vld [vmem:[%s7 + $0x18] sm:$0xff]
        %v655 = vld [vmem:[%s7 + $0x20] sm:$0xff]
        %v656 = vld [vmem:[%s7 + $0x28] sm:$0xff]
        %v657 = vld [vmem:[%s7 + $0x30] sm:$0xff]
        %v658 = vld [vmem:[%s7 + $0x38] sm:$0xff]
        %v660 = vsel %vm476, %v459, 0
        %v663 = vsel %vm476, %v460, 0
        %665 = vmatprep.subr.mxu0 0.0
        %666 = vmatpush1.msra.mxu0 %v651
        %667 = vmatprep.subr.mxu0 0.0
        %668 = vmatpush1.msra.mxu0 %v652
        %669 = vmatprep.subr.mxu0 0.0
        %670 = vmatpush1.msra.mxu0 %v653
        %671 = vmatprep.subr.mxu0 0.0
        %672 = vmatpush1.msra.mxu0 %v654
        %673 = vmatprep.subr.mxu0 0.0
        %674 = vmatpush1.msra.mxu0 %v655
        %675 = vmatprep.subr.mxu0 0.0
        %676 = vmatpush1.msra.mxu0 %v656
        %677 = vmatprep.subr.mxu0 0.0
        %678 = vmatpush1.msra.mxu0 %v657
        %679 = vmatprep.subr.mxu0 0.0
        %680 = vmatpush1.msra.mxu0 %v658
        %681 = vmatprep.subr.mxu0 0.0
        %682 = vmatpush1.msra.mxu0 0.0
        %683 = vmatprep.subr.mxu0 0.0
        %684 = vmatpush1.msra.mxu0 0.0
        %685 = vmatprep.subr.mxu0 0.0
        %686 = vmatpush1.msra.mxu0 0.0
        %687 = vmatprep.subr.mxu0 0.0
        %688 = vmatpush1.msra.mxu0 0.0
        %689 = vmatprep.subr.mxu0 0.0
        %690 = vmatpush1.msra.mxu0 0.0
        %691 = vmatprep.subr.mxu0 0.0
        %692 = vmatpush1.msra.mxu0 0.0
        %693 = vmatprep.subr.mxu0 0.0
        %694 = vmatpush1.msra.mxu0 0.0
        %695 = vmatprep.subr.mxu0 0.0
        %696 = vmatpush1.msra.mxu0 0.0
        %697 = vmatprep.subr.mxu0 0.0
        %698 = vmatpush1.msra.mxu0 0.0
        %699 = vmatprep.subr.mxu0 0.0
        %700 = vmatpush1.msra.mxu0 0.0
        %701 = vmatprep.subr.mxu0 0.0
        %702 = vmatpush1.msra.mxu0 0.0
        %703 = vmatprep.subr.mxu0 0.0
        %704 = vmatpush1.msra.mxu0 0.0
        %705 = vmatprep.subr.mxu0 0.0
        %706 = vmatpush1.msra.mxu0 0.0
        %707 = vmatprep.subr.mxu0 0.0
        %708 = vmatpush1.msra.mxu0 0.0
        %709 = vmatprep.subr.mxu0 0.0
        %710 = vmatpush1.msra.mxu0 0.0
        %711 = vmatprep.subr.mxu0 0.0
        %712 = vmatpush1.msra.mxu0 0.0
        %713 = vmatprep.subr.mxu0 0.0
        %714 = vmatpush1.msra.mxu0 0.0
        %715 = vmatprep.subr.mxu0 0.0
        %716 = vmatpush1.msra.mxu0 0.0
        %717 = vmatprep.subr.mxu0 0.0
        %718 = vmatpush1.msra.mxu0 0.0
        %719 = vmatprep.subr.mxu0 0.0
        %720 = vmatpush1.msra.mxu0 0.0
        %721 = vmatprep.subr.mxu0 0.0
        %722 = vmatpush1.msra.mxu0 0.0
        %723 = vmatprep.subr.mxu0 0.0
        %724 = vmatpush1.msra.mxu0 0.0
        %725 = vmatprep.subr.mxu0 0.0
        %726 = vmatpush1.msra.mxu0 0.0
        %727 = vmatprep.subr.mxu0 0.0
        %728 = vmatpush1.msra.mxu0 0.0
        %729 = vmatprep.mubr.f32.mxu0 0.0
        %730 = vmatmul.mubr.f32.gmra.mrb[0].mxu0 %v660
        %v731 = vpop.f32.mrb[0].mxu0
        %v732 = vadd.f32 %v643, %v731
        %v733 = vpop.f32.mrb[0].mxu0
        %734 = vmatprep.mubr.f32.mxu0 0.0
        %735 = vmatmul.mubr.f32.gmra.mrb[0].mxu0 %v663
        %v736 = vpop.f32.mrb[0].mxu0
        %v737 = vadd.f32 %v648, %v736
        %v738 = vpop.f32.mrb[0].mxu0
        %739 = vdwg.mxu0
        %740 = vst.msk [vmem:[#allocation3] sm:$0xff] %vm569, %v732
        %741 = vst.msk [vmem:[#allocation3 + $0x8] sm:$0xff] %vm569, %v737
        %742 = vst.msk [vmem:[#allocation4] sm:$0xff] %vm569, 0.0
        %743 = vst.msk [vmem:[#allocation4 + $0x8] sm:$0xff] %vm569, 0.0
        %v744 = vlaneseq
        %v745 = vand.u32 %v744, 127
        %v746 = vstv 0
        %v747 = vadd.s32 %v745, %v746
        %v748 = vld [vmem:[#allocation2] sm:$0xff]
        %v749 = vld [vmem:[#allocation2 + $0x8] sm:$0xff]
        %v750 = vld [vmem:[#allocation3] sm:$0xff]
        %v751 = vld [vmem:[#allocation3 + $0x8] sm:$0xff]
        %752 = vset.pattern.permute.xlu0 0
        %753 = vperm.xlu0 %752, %v748
        %v754 = vpop.permute.xlu0 %753
        %755 = vset.pattern.permute.xlu0 0
        %756 = vperm.xlu0 %755, %v749
        %v757 = vpop.permute.xlu0 %756
        %vm758 = vcmp.eq.s32.totalorder %v754, %v747
        %vm759 = vcmp.eq.s32.totalorder %v757, %v747
        %v760 = vsel %vm758, 1, 0
        %v761 = vsel %vm759, 1, 0
        %v762 = vcombine.high %v760, %v760
        %v764 = vunpack.c.l.s4 1966171168
        %v765 = vunpack.c.0.s8 %v764
        %v766 = vlaneseq
        %v767 = vshrl.u32 %v766, 7
        %v768 = vsub.s32 %v765, %v767
        %v769 = vrot.slane %v760, %v768
        %v771 = vunpack.c.l.s4 1966171168
        %v772 = vunpack.c.0.s8 %v771
        %v773 = vlaneseq
        %v774 = vshrl.u32 %v773, 7
        %v775 = vsub.s32 %v772, %v774
        %v776 = vrot.slane %v762, %v775
        %v777 = vcombine.high %v769, %v769
        %v778 = vcombine.high %v776, %v776
        %v780 = vunpack.c.l.s4 1966171168
        %v781 = vunpack.c.0.s8 %v780
        %v782 = vlaneseq
        %v783 = vshrl.u32 %v782, 7
        %v784 = vsub.s32 %v781, %v783
        %v785 = vrot.slane %v769, %v784
        %v787 = vunpack.c.l.s4 1966171168
        %v788 = vunpack.c.0.s8 %v787
        %v789 = vlaneseq
        %v790 = vshrl.u32 %v789, 7
        %v791 = vsub.s32 %v788, %v790
        %v792 = vrot.slane %v776, %v791
        %v794 = vunpack.c.l.s4 1966171168
        %v795 = vunpack.c.0.s8 %v794
        %v796 = vlaneseq
        %v797 = vshrl.u32 %v796, 7
        %v798 = vsub.s32 %v795, %v797
        %v799 = vrot.slane %v777, %v798
        %v801 = vunpack.c.l.s4 1966171168
        %v802 = vunpack.c.0.s8 %v801
        %v803 = vlaneseq
        %v804 = vshrl.u32 %v803, 7
        %v805 = vsub.s32 %v802, %v804
        %v806 = vrot.slane %v778, %v805
        %v807 = vcombine.high %v785, %v785
        %v808 = vcombine.high %v792, %v792
        %v809 = vcombine.high %v799, %v799
        %v810 = vcombine.high %v806, %v806
        %v811 = vcombine.high %v761, %v761
        %v813 = vunpack.c.l.s4 1966171168
        %v814 = vunpack.c.0.s8 %v813
        %v815 = vlaneseq
        %v816 = vshrl.u32 %v815, 7
        %v817 = vsub.s32 %v814, %v816
        %v818 = vrot.slane %v761, %v817
        %v820 = vunpack.c.l.s4 1966171168
        %v821 = vunpack.c.0.s8 %v820
        %v822 = vlaneseq
        %v823 = vshrl.u32 %v822, 7
        %v824 = vsub.s32 %v821, %v823
        %v825 = vrot.slane %v811, %v824
        %v826 = vcombine.high %v818, %v818
        %v827 = vcombine.high %v825, %v825
        %v829 = vunpack.c.l.s4 1966171168
        %v830 = vunpack.c.0.s8 %v829
        %v831 = vlaneseq
        %v832 = vshrl.u32 %v831, 7
        %v833 = vsub.s32 %v830, %v832
        %v834 = vrot.slane %v818, %v833
        %v836 = vunpack.c.l.s4 1966171168
        %v837 = vunpack.c.0.s8 %v836
        %v838 = vlaneseq
        %v839 = vshrl.u32 %v838, 7
        %v840 = vsub.s32 %v837, %v839
        %v841 = vrot.slane %v825, %v840
        %v843 = vunpack.c.l.s4 1966171168
        %v844 = vunpack.c.0.s8 %v843
        %v845 = vlaneseq
        %v846 = vshrl.u32 %v845, 7
        %v847 = vsub.s32 %v844, %v846
        %v848 = vrot.slane %v826, %v847
        %v850 = vunpack.c.l.s4 1966171168
        %v851 = vunpack.c.0.s8 %v850
        %v852 = vlaneseq
        %v853 = vshrl.u32 %v852, 7
        %v854 = vsub.s32 %v851, %v853
        %v855 = vrot.slane %v827, %v854
        %v856 = vcombine.high %v834, %v834
        %v857 = vcombine.high %v841, %v841
        %v858 = vcombine.high %v848, %v848
        %v859 = vcombine.high %v855, %v855
        %vm860 = vcmp.ne.s32.totalorder %v785, 0
        %vm861 = vcmp.ne.s32.totalorder %v799, 0
        %vm862 = vcmp.ne.s32.totalorder %v807, 0
        %vm863 = vcmp.ne.s32.totalorder %v809, 0
        %vm864 = vcmp.ne.s32.totalorder %v792, 0
        %vm865 = vcmp.ne.s32.totalorder %v806, 0
        %vm866 = vcmp.ne.s32.totalorder %v808, 0
        %vm867 = vcmp.ne.s32.totalorder %v810, 0
        %vm868 = vcmp.ne.s32.totalorder %v834, 0
        %vm869 = vcmp.ne.s32.totalorder %v848, 0
        %vm870 = vcmp.ne.s32.totalorder %v856, 0
        %vm871 = vcmp.ne.s32.totalorder %v858, 0
        %vm872 = vcmp.ne.s32.totalorder %v841, 0
        %vm873 = vcmp.ne.s32.totalorder %v855, 0
        %vm874 = vcmp.ne.s32.totalorder %v857, 0
        %vm875 = vcmp.ne.s32.totalorder %v859, 0
        %v876 = vlaneseq
        %v877 = vshrl.u32 %v876, 7
        %v878 = vsub.s32 0, %v877
        %v879 = vrot.slane %v750, %v878
        %881 = vbcast.lane.b32.xlu0 %v879, 256
        %v882 = vpop.permute.xlu0 %881
        %s884 = sor.u32 256, 8
        %885 = vbcast.lane.b32.xlu0 %v879, %s884
        %v886 = vpop.permute.xlu0 %885
        %s888 = sor.u32 256, 16
        %889 = vbcast.lane.b32.xlu0 %v879, %s888
        %v890 = vpop.permute.xlu0 %889
        %s892 = sor.u32 256, 24
        %893 = vbcast.lane.b32.xlu0 %v879, %s892
        %v894 = vpop.permute.xlu0 %893
        %v895 = vlaneseq
        %v896 = vshrl.u32 %v895, 7
        %v897 = vsub.s32 1, %v896
        %v898 = vrot.slane %v750, %v897
        %900 = vbcast.lane.b32.xlu0 %v898, 256
        %v901 = vpop.permute.xlu0 %900
        %s903 = sor.u32 256, 8
        %904 = vbcast.lane.b32.xlu0 %v898, %s903
        %v905 = vpop.permute.xlu0 %904
        %s907 = sor.u32 256, 16
        %908 = vbcast.lane.b32.xlu0 %v898, %s907
        %v909 = vpop.permute.xlu0 %908
        %s911 = sor.u32 256, 24
        %912 = vbcast.lane.b32.xlu0 %v898, %s911
        %v913 = vpop.permute.xlu0 %912
        %v914 = vlaneseq
        %v915 = vshrl.u32 %v914, 7
        %v916 = vsub.s32 2, %v915
        %v917 = vrot.slane %v750, %v916
        %919 = vbcast.lane.b32.xlu0 %v917, 256
        %v920 = vpop.permute.xlu0 %919
        %s922 = sor.u32 256, 8
        %923 = vbcast.lane.b32.xlu0 %v917, %s922
        %v924 = vpop.permute.xlu0 %923
        %s926 = sor.u32 256, 16
        %927 = vbcast.lane.b32.xlu0 %v917, %s926
        %v928 = vpop.permute.xlu0 %927
        %s930 = sor.u32 256, 24
        %931 = vbcast.lane.b32.xlu0 %v917, %s930
        %v932 = vpop.permute.xlu0 %931
        %v933 = vlaneseq
        %v934 = vshrl.u32 %v933, 7
        %v935 = vsub.s32 3, %v934
        %v936 = vrot.slane %v750, %v935
        %938 = vbcast.lane.b32.xlu0 %v936, 256
        %v939 = vpop.permute.xlu0 %938
        %s941 = sor.u32 256, 8
        %942 = vbcast.lane.b32.xlu0 %v936, %s941
        %v943 = vpop.permute.xlu0 %942
        %s945 = sor.u32 256, 16
        %946 = vbcast.lane.b32.xlu0 %v936, %s945
        %v947 = vpop.permute.xlu0 %946
        %s949 = sor.u32 256, 24
        %950 = vbcast.lane.b32.xlu0 %v936, %s949
        %v951 = vpop.permute.xlu0 %950
        %v952 = vlaneseq
        %v953 = vshrl.u32 %v952, 7
        %v954 = vsub.s32 4, %v953
        %v955 = vrot.slane %v750, %v954
        %957 = vbcast.lane.b32.xlu0 %v955, 256
        %v958 = vpop.permute.xlu0 %957
        %s960 = sor.u32 256, 8
        %961 = vbcast.lane.b32.xlu0 %v955, %s960
        %v962 = vpop.permute.xlu0 %961
        %s964 = sor.u32 256, 16
        %965 = vbcast.lane.b32.xlu0 %v955, %s964
        %v966 = vpop.permute.xlu0 %965
        %s968 = sor.u32 256, 24
        %969 = vbcast.lane.b32.xlu0 %v955, %s968
        %v970 = vpop.permute.xlu0 %969
        %v971 = vlaneseq
        %v972 = vshrl.u32 %v971, 7
        %v973 = vsub.s32 5, %v972
        %v974 = vrot.slane %v750, %v973
        %976 = vbcast.lane.b32.xlu0 %v974, 256
        %v977 = vpop.permute.xlu0 %976
        %s979 = sor.u32 256, 8
        %980 = vbcast.lane.b32.xlu0 %v974, %s979
        %v981 = vpop.permute.xlu0 %980
        %s983 = sor.u32 256, 16
        %984 = vbcast.lane.b32.xlu0 %v974, %s983
        %v985 = vpop.permute.xlu0 %984
        %s987 = sor.u32 256, 24
        %988 = vbcast.lane.b32.xlu0 %v974, %s987
        %v989 = vpop.permute.xlu0 %988
        %v990 = vlaneseq
        %v991 = vshrl.u32 %v990, 7
        %v992 = vsub.s32 6, %v991
        %v993 = vrot.slane %v750, %v992
        %995 = vbcast.lane.b32.xlu0 %v993, 256
        %v996 = vpop.permute.xlu0 %995
        %s998 = sor.u32 256, 8
        %999 = vbcast.lane.b32.xlu0 %v993, %s998
        %v1000 = vpop.permute.xlu0 %999
        %s1002 = sor.u32 256, 16
        %1003 = vbcast.lane.b32.xlu0 %v993, %s1002
        %v1004 = vpop.permute.xlu0 %1003
        %s1006 = sor.u32 256, 24
        %1007 = vbcast.lane.b32.xlu0 %v993, %s1006
        %v1008 = vpop.permute.xlu0 %1007
        %v1009 = vlaneseq
        %v1010 = vshrl.u32 %v1009, 7
        %v1011 = vsub.s32 7, %v1010
        %v1012 = vrot.slane %v750, %v1011
        %1014 = vbcast.lane.b32.xlu0 %v1012, 256
        %v1015 = vpop.permute.xlu0 %1014
        %s1017 = sor.u32 256, 8
        %1018 = vbcast.lane.b32.xlu0 %v1012, %s1017
        %v1019 = vpop.permute.xlu0 %1018
        %s1021 = sor.u32 256, 16
        %1022 = vbcast.lane.b32.xlu0 %v1012, %s1021
        %v1023 = vpop.permute.xlu0 %1022
        %s1025 = sor.u32 256, 24
        %1026 = vbcast.lane.b32.xlu0 %v1012, %s1025
        %v1027 = vpop.permute.xlu0 %1026
        %v1028 = vlaneseq
        %v1029 = vshrl.u32 %v1028, 7
        %v1030 = vsub.s32 0, %v1029
        %v1031 = vrot.slane %v751, %v1030
        %1033 = vbcast.lane.b32.xlu0 %v1031, 256
        %v1034 = vpop.permute.xlu0 %1033
        %s1036 = sor.u32 256, 8
        %1037 = vbcast.lane.b32.xlu0 %v1031, %s1036
        %v1038 = vpop.permute.xlu0 %1037
        %s1040 = sor.u32 256, 16
        %1041 = vbcast.lane.b32.xlu0 %v1031, %s1040
        %v1042 = vpop.permute.xlu0 %1041
        %s1044 = sor.u32 256, 24
        %1045 = vbcast.lane.b32.xlu0 %v1031, %s1044
        %v1046 = vpop.permute.xlu0 %1045
        %v1047 = vlaneseq
        %v1048 = vshrl.u32 %v1047, 7
        %v1049 = vsub.s32 1, %v1048
        %v1050 = vrot.slane %v751, %v1049
        %1052 = vbcast.lane.b32.xlu0 %v1050, 256
        %v1053 = vpop.permute.xlu0 %1052
        %s1055 = sor.u32 256, 8
        %1056 = vbcast.lane.b32.xlu0 %v1050, %s1055
        %v1057 = vpop.permute.xlu0 %1056
        %s1059 = sor.u32 256, 16
        %1060 = vbcast.lane.b32.xlu0 %v1050, %s1059
        %v1061 = vpop.permute.xlu0 %1060
        %s1063 = sor.u32 256, 24
        %1064 = vbcast.lane.b32.xlu0 %v1050, %s1063
        %v1065 = vpop.permute.xlu0 %1064
        %v1066 = vlaneseq
        %v1067 = vshrl.u32 %v1066, 7
        %v1068 = vsub.s32 2, %v1067
        %v1069 = vrot.slane %v751, %v1068
        %1071 = vbcast.lane.b32.xlu0 %v1069, 256
        %v1072 = vpop.permute.xlu0 %1071
        %s1074 = sor.u32 256, 8
        %1075 = vbcast.lane.b32.xlu0 %v1069, %s1074
        %v1076 = vpop.permute.xlu0 %1075
        %s1078 = sor.u32 256, 16
        %1079 = vbcast.lane.b32.xlu0 %v1069, %s1078
        %v1080 = vpop.permute.xlu0 %1079
        %s1082 = sor.u32 256, 24
        %1083 = vbcast.lane.b32.xlu0 %v1069, %s1082
        %v1084 = vpop.permute.xlu0 %1083
        %v1085 = vlaneseq
        %v1086 = vshrl.u32 %v1085, 7
        %v1087 = vsub.s32 3, %v1086
        %v1088 = vrot.slane %v751, %v1087
        %1090 = vbcast.lane.b32.xlu0 %v1088, 256
        %v1091 = vpop.permute.xlu0 %1090
        %s1093 = sor.u32 256, 8
        %1094 = vbcast.lane.b32.xlu0 %v1088, %s1093
        %v1095 = vpop.permute.xlu0 %1094
        %s1097 = sor.u32 256, 16
        %1098 = vbcast.lane.b32.xlu0 %v1088, %s1097
        %v1099 = vpop.permute.xlu0 %1098
        %s1101 = sor.u32 256, 24
        %1102 = vbcast.lane.b32.xlu0 %v1088, %s1101
        %v1103 = vpop.permute.xlu0 %1102
        %v1104 = vlaneseq
        %v1105 = vshrl.u32 %v1104, 7
        %v1106 = vsub.s32 4, %v1105
        %v1107 = vrot.slane %v751, %v1106
        %1109 = vbcast.lane.b32.xlu0 %v1107, 256
        %v1110 = vpop.permute.xlu0 %1109
        %s1112 = sor.u32 256, 8
        %1113 = vbcast.lane.b32.xlu0 %v1107, %s1112
        %v1114 = vpop.permute.xlu0 %1113
        %s1116 = sor.u32 256, 16
        %1117 = vbcast.lane.b32.xlu0 %v1107, %s1116
        %v1118 = vpop.permute.xlu0 %1117
        %s1120 = sor.u32 256, 24
        %1121 = vbcast.lane.b32.xlu0 %v1107, %s1120
        %v1122 = vpop.permute.xlu0 %1121
        %v1123 = vlaneseq
        %v1124 = vshrl.u32 %v1123, 7
        %v1125 = vsub.s32 5, %v1124
        %v1126 = vrot.slane %v751, %v1125
        %1128 = vbcast.lane.b32.xlu0 %v1126, 256
        %v1129 = vpop.permute.xlu0 %1128
        %s1131 = sor.u32 256, 8
        %1132 = vbcast.lane.b32.xlu0 %v1126, %s1131
        %v1133 = vpop.permute.xlu0 %1132
        %s1135 = sor.u32 256, 16
        %1136 = vbcast.lane.b32.xlu0 %v1126, %s1135
        %v1137 = vpop.permute.xlu0 %1136
        %s1139 = sor.u32 256, 24
        %1140 = vbcast.lane.b32.xlu0 %v1126, %s1139
        %v1141 = vpop.permute.xlu0 %1140
        %v1142 = vlaneseq
        %v1143 = vshrl.u32 %v1142, 7
        %v1144 = vsub.s32 6, %v1143
        %v1145 = vrot.slane %v751, %v1144
        %1147 = vbcast.lane.b32.xlu0 %v1145, 256
        %v1148 = vpop.permute.xlu0 %1147
        %s1150 = sor.u32 256, 8
        %1151 = vbcast.lane.b32.xlu0 %v1145, %s1150
        %v1152 = vpop.permute.xlu0 %1151
        %s1154 = sor.u32 256, 16
        %1155 = vbcast.lane.b32.xlu0 %v1145, %s1154
        %v1156 = vpop.permute.xlu0 %1155
        %s1158 = sor.u32 256, 24
        %1159 = vbcast.lane.b32.xlu0 %v1145, %s1158
        %v1160 = vpop.permute.xlu0 %1159
        %v1161 = vlaneseq
        %v1162 = vshrl.u32 %v1161, 7
        %v1163 = vsub.s32 7, %v1162
        %v1164 = vrot.slane %v751, %v1163
        %1166 = vbcast.lane.b32.xlu0 %v1164, 256
        %v1167 = vpop.permute.xlu0 %1166
        %s1169 = sor.u32 256, 8
        %1170 = vbcast.lane.b32.xlu0 %v1164, %s1169
        %v1171 = vpop.permute.xlu0 %1170
        %s1173 = sor.u32 256, 16
        %1174 = vbcast.lane.b32.xlu0 %v1164, %s1173
        %v1175 = vpop.permute.xlu0 %1174
        %s1177 = sor.u32 256, 24
        %1178 = vbcast.lane.b32.xlu0 %v1164, %s1177
        %v1179 = vpop.permute.xlu0 %1178
        %v1180 = vsel %vm860, 1, 0
        %v1181 = vsel %vm861, 1, 0
        %v1182 = vsel %vm862, 1, 0
        %v1183 = vsel %vm863, 1, 0
        %v1184 = vsel %vm864, 1, 0
        %v1185 = vsel %vm865, 1, 0
        %v1186 = vsel %vm866, 1, 0
        %v1187 = vsel %vm867, 1, 0
        %v1188 = vsel %vm868, 1, 0
        %v1189 = vsel %vm869, 1, 0
        %v1190 = vsel %vm870, 1, 0
        %v1191 = vsel %vm871, 1, 0
        %v1192 = vsel %vm872, 1, 0
        %v1193 = vsel %vm873, 1, 0
        %v1194 = vsel %vm874, 1, 0
        %v1195 = vsel %vm875, 1, 0
        %v1196 = vlaneseq
        %v1197 = vshrl.u32 %v1196, 7
        %v1198 = vsub.s32 0, %v1197
        %v1199 = vrot.slane %v1180, %v1198
        %v1200 = vlaneseq
        %v1201 = vshrl.u32 %v1200, 7
        %v1202 = vsub.s32 0, %v1201
        %v1203 = vrot.slane %v1181, %v1202
        %v1204 = vlaneseq
        %v1205 = vshrl.u32 %v1204, 7
        %v1206 = vsub.s32 0, %v1205
        %v1207 = vrot.slane %v1182, %v1206
        %v1208 = vlaneseq
        %v1209 = vshrl.u32 %v1208, 7
        %v1210 = vsub.s32 0, %v1209
        %v1211 = vrot.slane %v1183, %v1210
        %v1212 = vlaneseq
        %v1213 = vshrl.u32 %v1212, 7
        %v1214 = vsub.s32 0, %v1213
        %v1215 = vrot.slane %v1184, %v1214
        %v1216 = vlaneseq
        %v1217 = vshrl.u32 %v1216, 7
        %v1218 = vsub.s32 0, %v1217
        %v1219 = vrot.slane %v1185, %v1218
        %v1220 = vlaneseq
        %v1221 = vshrl.u32 %v1220, 7
        %v1222 = vsub.s32 0, %v1221
        %v1223 = vrot.slane %v1186, %v1222
        %v1224 = vlaneseq
        %v1225 = vshrl.u32 %v1224, 7
        %v1226 = vsub.s32 0, %v1225
        %v1227 = vrot.slane %v1187, %v1226
        %v1228 = vlaneseq
        %v1229 = vshrl.u32 %v1228, 7
        %v1230 = vsub.s32 0, %v1229
        %v1231 = vrot.slane %v1188, %v1230
        %v1232 = vlaneseq
        %v1233 = vshrl.u32 %v1232, 7
        %v1234 = vsub.s32 0, %v1233
        %v1235 = vrot.slane %v1189, %v1234
        %v1236 = vlaneseq
        %v1237 = vshrl.u32 %v1236, 7
        %v1238 = vsub.s32 0, %v1237
        %v1239 = vrot.slane %v1190, %v1238
        %v1240 = vlaneseq
        %v1241 = vshrl.u32 %v1240, 7
        %v1242 = vsub.s32 0, %v1241
        %v1243 = vrot.slane %v1191, %v1242
        %v1244 = vlaneseq
        %v1245 = vshrl.u32 %v1244, 7
        %v1246 = vsub.s32 0, %v1245
        %v1247 = vrot.slane %v1192, %v1246
        %v1248 = vlaneseq
        %v1249 = vshrl.u32 %v1248, 7
        %v1250 = vsub.s32 0, %v1249
        %v1251 = vrot.slane %v1193, %v1250
        %v1252 = vlaneseq
        %v1253 = vshrl.u32 %v1252, 7
        %v1254 = vsub.s32 0, %v1253
        %v1255 = vrot.slane %v1194, %v1254
        %v1256 = vlaneseq
        %v1257 = vshrl.u32 %v1256, 7
        %v1258 = vsub.s32 0, %v1257
        %v1259 = vrot.slane %v1195, %v1258
        %vm1260 = vcmp.eq.s32.totalorder %v1199, 1
        %vm1261 = vcmp.eq.s32.totalorder %v1203, 1
        %vm1262 = vcmp.eq.s32.totalorder %v1207, 1
        %vm1263 = vcmp.eq.s32.totalorder %v1211, 1
        %vm1264 = vcmp.eq.s32.totalorder %v1215, 1
        %vm1265 = vcmp.eq.s32.totalorder %v1219, 1
        %vm1266 = vcmp.eq.s32.totalorder %v1223, 1
        %vm1267 = vcmp.eq.s32.totalorder %v1227, 1
        %vm1268 = vcmp.eq.s32.totalorder %v1231, 1
        %vm1269 = vcmp.eq.s32.totalorder %v1235, 1
        %vm1270 = vcmp.eq.s32.totalorder %v1239, 1
        %vm1271 = vcmp.eq.s32.totalorder %v1243, 1
        %vm1272 = vcmp.eq.s32.totalorder %v1247, 1
        %vm1273 = vcmp.eq.s32.totalorder %v1251, 1
        %vm1274 = vcmp.eq.s32.totalorder %v1255, 1
        %vm1275 = vcmp.eq.s32.totalorder %v1259, 1
        %v1276 = vsel %vm1260, %v882, -1e+30
        %v1277 = vsel %vm1260, %v886, -1e+30
        %v1278 = vsel %vm1260, %v890, -1e+30
        %v1279 = vsel %vm1260, %v894, -1e+30
        %v1280 = vsel %vm1261, %v901, -1e+30
        %v1281 = vsel %vm1261, %v905, -1e+30
        %v1282 = vsel %vm1261, %v909, -1e+30
        %v1283 = vsel %vm1261, %v913, -1e+30
        %v1284 = vsel %vm1262, %v920, -1e+30
        %v1285 = vsel %vm1262, %v924, -1e+30
        %v1286 = vsel %vm1262, %v928, -1e+30
        %v1287 = vsel %vm1262, %v932, -1e+30
        %v1288 = vsel %vm1263, %v939, -1e+30
        %v1289 = vsel %vm1263, %v943, -1e+30
        %v1290 = vsel %vm1263, %v947, -1e+30
        %v1291 = vsel %vm1263, %v951, -1e+30
        %v1292 = vsel %vm1264, %v958, -1e+30
        %v1293 = vsel %vm1264, %v962, -1e+30
        %v1294 = vsel %vm1264, %v966, -1e+30
        %v1295 = vsel %vm1264, %v970, -1e+30
        %v1296 = vsel %vm1265, %v977, -1e+30
        %v1297 = vsel %vm1265, %v981, -1e+30
        %v1298 = vsel %vm1265, %v985, -1e+30
        %v1299 = vsel %vm1265, %v989, -1e+30
        %v1300 = vsel %vm1266, %v996, -1e+30
        %v1301 = vsel %vm1266, %v1000, -1e+30
        %v1302 = vsel %vm1266, %v1004, -1e+30
        %v1303 = vsel %vm1266, %v1008, -1e+30
        %v1304 = vsel %vm1267, %v1015, -1e+30
        %v1305 = vsel %vm1267, %v1019, -1e+30
        %v1306 = vsel %vm1267, %v1023, -1e+30
        %v1307 = vsel %vm1267, %v1027, -1e+30
        %v1308 = vsel %vm1268, %v1034, -1e+30
        %v1309 = vsel %vm1268, %v1038, -1e+30
        %v1310 = vsel %vm1268, %v1042, -1e+30
        %v1311 = vsel %vm1268, %v1046, -1e+30
        %v1312 = vsel %vm1269, %v1053, -1e+30
        %v1313 = vsel %vm1269, %v1057, -1e+30
        %v1314 = vsel %vm1269, %v1061, -1e+30
        %v1315 = vsel %vm1269, %v1065, -1e+30
        %v1316 = vsel %vm1270, %v1072, -1e+30
        %v1317 = vsel %vm1270, %v1076, -1e+30
        %v1318 = vsel %vm1270, %v1080, -1e+30
        %v1319 = vsel %vm1270, %v1084, -1e+30
        %v1320 = vsel %vm1271, %v1091, -1e+30
        %v1321 = vsel %vm1271, %v1095, -1e+30
        %v1322 = vsel %vm1271, %v1099, -1e+30
        %v1323 = vsel %vm1271, %v1103, -1e+30
        %v1324 = vsel %vm1272, %v1110, -1e+30
        %v1325 = vsel %vm1272, %v1114, -1e+30
        %v1326 = vsel %vm1272, %v1118, -1e+30
        %v1327 = vsel %vm1272, %v1122, -1e+30
        %v1328 = vsel %vm1273, %v1129, -1e+30
        %v1329 = vsel %vm1273, %v1133, -1e+30
        %v1330 = vsel %vm1273, %v1137, -1e+30
        %v1331 = vsel %vm1273, %v1141, -1e+30
        %v1332 = vsel %vm1274, %v1148, -1e+30
        %v1333 = vsel %vm1274, %v1152, -1e+30
        %v1334 = vsel %vm1274, %v1156, -1e+30
        %v1335 = vsel %vm1274, %v1160, -1e+30
        %v1336 = vsel %vm1275, %v1167, -1e+30
        %v1337 = vsel %vm1275, %v1171, -1e+30
        %v1338 = vsel %vm1275, %v1175, -1e+30
        %v1339 = vsel %vm1275, %v1179, -1e+30
        %v1340 = vmax.f32 %v1276, %v1280
        %v1341 = vmax.f32 %v1340, %v1284
        %v1342 = vmax.f32 %v1341, %v1288
        %v1343 = vmax.f32 %v1342, %v1292
        %v1344 = vmax.f32 %v1343, %v1296
        %v1345 = vmax.f32 %v1344, %v1300
        %v1346 = vmax.f32 %v1345, %v1304
        %v1347 = vmax.f32 %v1346, %v1308
        %v1348 = vmax.f32 %v1347, %v1312
        %v1349 = vmax.f32 %v1348, %v1316
        %v1350 = vmax.f32 %v1349, %v1320
        %v1351 = vmax.f32 %v1350, %v1324
        %v1352 = vmax.f32 %v1351, %v1328
        %v1353 = vmax.f32 %v1352, %v1332
        %v1354 = vmax.f32 %v1353, %v1336
        %v1355 = vmax.f32 %v1277, %v1281
        %v1356 = vmax.f32 %v1355, %v1285
        %v1357 = vmax.f32 %v1356, %v1289
        %v1358 = vmax.f32 %v1357, %v1293
        %v1359 = vmax.f32 %v1358, %v1297
        %v1360 = vmax.f32 %v1359, %v1301
        %v1361 = vmax.f32 %v1360, %v1305
        %v1362 = vmax.f32 %v1361, %v1309
        %v1363 = vmax.f32 %v1362, %v1313
        %v1364 = vmax.f32 %v1363, %v1317
        %v1365 = vmax.f32 %v1364, %v1321
        %v1366 = vmax.f32 %v1365, %v1325
        %v1367 = vmax.f32 %v1366, %v1329
        %v1368 = vmax.f32 %v1367, %v1333
        %v1369 = vmax.f32 %v1368, %v1337
        %v1370 = vmax.f32 %v1278, %v1282
        %v1371 = vmax.f32 %v1370, %v1286
        %v1372 = vmax.f32 %v1371, %v1290
        %v1373 = vmax.f32 %v1372, %v1294
        %v1374 = vmax.f32 %v1373, %v1298
        %v1375 = vmax.f32 %v1374, %v1302
        %v1376 = vmax.f32 %v1375, %v1306
        %v1377 = vmax.f32 %v1376, %v1310
        %v1378 = vmax.f32 %v1377, %v1314
        %v1379 = vmax.f32 %v1378, %v1318
        %v1380 = vmax.f32 %v1379, %v1322
        %v1381 = vmax.f32 %v1380, %v1326
        %v1382 = vmax.f32 %v1381, %v1330
        %v1383 = vmax.f32 %v1382, %v1334
        %v1384 = vmax.f32 %v1383, %v1338
        %v1385 = vmax.f32 %v1279, %v1283
        %v1386 = vmax.f32 %v1385, %v1287
        %v1387 = vmax.f32 %v1386, %v1291
        %v1388 = vmax.f32 %v1387, %v1295
        %v1389 = vmax.f32 %v1388, %v1299
        %v1390 = vmax.f32 %v1389, %v1303
        %v1391 = vmax.f32 %v1390, %v1307
        %v1392 = vmax.f32 %v1391, %v1311
        %v1393 = vmax.f32 %v1392, %v1315
        %v1394 = vmax.f32 %v1393, %v1319
        %v1395 = vmax.f32 %v1394, %v1323
        %v1396 = vmax.f32 %v1395, %v1327
        %v1397 = vmax.f32 %v1396, %v1331
        %v1398 = vmax.f32 %v1397, %v1335
        %v1399 = vmax.f32 %v1398, %v1339
        %v1400 = vmax.f32 %v1354, -1e+30
        %v1401 = vmax.f32 %v1369, -1e+30
        %v1402 = vmax.f32 %v1384, -1e+30
        %v1403 = vmax.f32 %v1399, -1e+30
        %v1404 = vcvt.s32.f32 %v760
        %v1405 = vcvt.s32.f32 %v761
        %1406 = vmatprep.subr.mxu0 0.0
        %1407 = vmatpush1.xpose.msra.mxu0 %v1400
        %1408 = vmatprep.subr.mxu0 0.0
        %1409 = vmatpush1.xpose.msra.mxu0 %v1401
        %1410 = vmatprep.subr.mxu0 0.0
        %1411 = vmatpush1.xpose.msra.mxu0 %v1402
        %1412 = vmatprep.subr.mxu0 0.0
        %1413 = vmatpush1.xpose.msra.mxu0 %v1403
        %1414 = vmatprep.subr.mxu0 0.0
        %1415 = vmatpush1.xpose.msra.mxu0 0.0
        %1416 = vmatprep.subr.mxu0 0.0
        %1417 = vmatpush1.xpose.msra.mxu0 0.0
        %1418 = vmatprep.subr.mxu0 0.0
        %1419 = vmatpush1.xpose.msra.mxu0 0.0
        %1420 = vmatprep.subr.mxu0 0.0
        %1421 = vmatpush1.xpose.msra.mxu0 0.0
        %1422 = vmatprep.subr.mxu0 0.0
        %1423 = vmatpush1.xpose.msra.mxu0 0.0
        %1424 = vmatprep.subr.mxu0 0.0
        %1425 = vmatpush1.xpose.msra.mxu0 0.0
        %1426 = vmatprep.subr.mxu0 0.0
        %1427 = vmatpush1.xpose.msra.mxu0 0.0
        %1428 = vmatprep.subr.mxu0 0.0
        %1429 = vmatpush1.xpose.msra.mxu0 0.0
        %1430 = vmatprep.subr.mxu0 0.0
        %1431 = vmatpush1.xpose.msra.mxu0 0.0
        %1432 = vmatprep.subr.mxu0 0.0
        %1433 = vmatpush1.xpose.msra.mxu0 0.0
        %1434 = vmatprep.subr.mxu0 0.0
        %1435 = vmatpush1.xpose.msra.mxu0 0.0
        %1436 = vmatprep.subr.mxu0 0.0
        %1437 = vmatpush1.xpose.msra.mxu0 0.0
        %1438 = vmatprep.subr.mxu0 0.0
        %1439 = vmatpush1.xpose.msra.mxu0 0.0
        %1440 = vmatprep.subr.mxu0 0.0
        %1441 = vmatpush1.xpose.msra.mxu0 0.0
        %1442 = vmatprep.subr.mxu0 0.0
        %1443 = vmatpush1.xpose.msra.mxu0 0.0
        %1444 = vmatprep.subr.mxu0 0.0
        %1445 = vmatpush1.xpose.msra.mxu0 0.0
        %1446 = vmatprep.subr.mxu0 0.0
        %1447 = vmatpush1.xpose.msra.mxu0 0.0
        %1448 = vmatprep.subr.mxu0 0.0
        %1449 = vmatpush1.xpose.msra.mxu0 0.0
        %1450 = vmatprep.subr.mxu0 0.0
        %1451 = vmatpush1.xpose.msra.mxu0 0.0
        %1452 = vmatprep.subr.mxu0 0.0
        %1453 = vmatpush1.xpose.msra.mxu0 0.0
        %1454 = vmatprep.subr.mxu0 0.0
        %1455 = vmatpush1.xpose.msra.mxu0 0.0
        %1456 = vmatprep.subr.mxu0 0.0
        %1457 = vmatpush1.xpose.msra.mxu0 0.0
        %1458 = vmatprep.subr.mxu0 0.0
        %1459 = vmatpush1.xpose.msra.mxu0 0.0
        %1460 = vmatprep.subr.mxu0 0.0
        %1461 = vmatpush1.xpose.msra.mxu0 0.0
        %1462 = vmatprep.subr.mxu0 0.0
        %1463 = vmatpush1.xpose.msra.mxu0 0.0
        %1464 = vmatprep.subr.mxu0 0.0
        %1465 = vmatpush1.xpose.msra.mxu0 0.0
        %1466 = vmatprep.subr.mxu0 0.0
        %1467 = vmatpush1.xpose.msra.mxu0 0.0
        %1468 = vmatprep.subr.mxu0 0.0
        %1469 = vmatpush1.xpose.msra.mxu0 0.0
        %1470 = vmatprep.mubr.f32.mxu0 0.0
        %1471 = vmatmul.mubr.f32.gmra.mrb[0].mxu0 %v1404
        %v1472 = vpop.f32.mrb[0].mxu0
        %v1473 = vadd.f32 0.0, %v1472
        %v1474 = vpop.f32.mrb[0].mxu0
        %1475 = vmatprep.mubr.f32.mxu0 0.0
        %1476 = vmatmul.mubr.f32.gmra.mrb[0].mxu0 %v1405
        %v1477 = vpop.f32.mrb[0].mxu0
        %v1478 = vadd.f32 0.0, %v1477
        %v1479 = vpop.f32.mrb[0].mxu0
        %1480 = vdwg.mxu0
        %v1481 = vld [vmem:[#allocation4] sm:$0xff]
        %v1482 = vld [vmem:[#allocation4 + $0x8] sm:$0xff]
        %v1483 = vadd.f32 %v1481, %v1473
        %v1484 = vadd.f32 %v1482, %v1478
        %1485 = vst.msk [vmem:[#allocation4] sm:$0xff] %vm569, %v1483
        %1486 = vst.msk [vmem:[#allocation4 + $0x8] sm:$0xff] %vm569, %v1484
        %v1487 = vld [vmem:[#allocation4] sm:$0xff]
        %v1488 = vld [vmem:[#allocation4 + $0x8] sm:$0xff]
        %1491 = vrot.lane.b32.xlu0 %v1487, 32
        %v1492 = vpop.permute.xlu0 %1491
        %1493 = vrot.lane.b32.xlu0 %v1488, 32
        %v1494 = vpop.permute.xlu0 %1493
        %v1497 = vsel %vm569, %v732, %v1492
        %v1498 = vsel %vm569, %v737, %v1494
        %v1499 = vmax.f32 %v1497, 0.0
        %v1500 = vmax.f32 %v1498, 0.0
        %s1501 = scalar_lea.vmem %s3, 64
        %v1502 = vld [vmem:[%s1501] sm:$0xff]
        %v1503 = vld [vmem:[%s1501 + $0x8] sm:$0xff]
        %v1504 = vld [vmem:[%s1501 + $0x10] sm:$0xff]
        %v1505 = vld [vmem:[%s1501 + $0x18] sm:$0xff]
        %v1506 = vld [vmem:[%s1501 + $0x20] sm:$0xff]
        %v1507 = vld [vmem:[%s1501 + $0x28] sm:$0xff]
        %v1508 = vld [vmem:[%s1501 + $0x30] sm:$0xff]
        %v1509 = vld [vmem:[%s1501 + $0x38] sm:$0xff]
        %v1510 = vld [vmem:[%s4 + $0x1] sm:$0x1]
        %v1511 = vlaneseq
        %v1512 = vshrl.u32 %v1511, 7
        %v1513 = vsub.s32 0, %v1512
        %v1514 = vrot.slane %v1510, %v1513
        %v1516 = vsel %vm476, %v1499, 0
        %v1519 = vsel %vm476, %v1500, 0
        %1521 = vmatprep.subr.mxu0 0.0
        %1522 = vmatpush1.msra.mxu0 %v1502
        %1523 = vmatprep.subr.mxu0 0.0
        %1524 = vmatpush1.msra.mxu0 %v1503
        %1525 = vmatprep.subr.mxu0 0.0
        %1526 = vmatpush1.msra.mxu0 %v1504
        %1527 = vmatprep.subr.mxu0 0.0
        %1528 = vmatpush1.msra.mxu0 %v1505
        %1529 = vmatprep.subr.mxu0 0.0
        %1530 = vmatpush1.msra.mxu0 %v1506
        %1531 = vmatprep.subr.mxu0 0.0
        %1532 = vmatpush1.msra.mxu0 %v1507
        %1533 = vmatprep.subr.mxu0 0.0
        %1534 = vmatpush1.msra.mxu0 %v1508
        %1535 = vmatprep.subr.mxu0 0.0
        %1536 = vmatpush1.msra.mxu0 %v1509
        %1537 = vmatprep.subr.mxu0 0.0
        %1538 = vmatpush1.msra.mxu0 0.0
        %1539 = vmatprep.subr.mxu0 0.0
        %1540 = vmatpush1.msra.mxu0 0.0
        %1541 = vmatprep.subr.mxu0 0.0
        %1542 = vmatpush1.msra.mxu0 0.0
        %1543 = vmatprep.subr.mxu0 0.0
        %1544 = vmatpush1.msra.mxu0 0.0
        %1545 = vmatprep.subr.mxu0 0.0
        %1546 = vmatpush1.msra.mxu0 0.0
        %1547 = vmatprep.subr.mxu0 0.0
        %1548 = vmatpush1.msra.mxu0 0.0
        %1549 = vmatprep.subr.mxu0 0.0
        %1550 = vmatpush1.msra.mxu0 0.0
        %1551 = vmatprep.subr.mxu0 0.0
        %1552 = vmatpush1.msra.mxu0 0.0
        %1553 = vmatprep.subr.mxu0 0.0
        %1554 = vmatpush1.msra.mxu0 0.0
        %1555 = vmatprep.subr.mxu0 0.0
        %1556 = vmatpush1.msra.mxu0 0.0
        %1557 = vmatprep.subr.mxu0 0.0
        %1558 = vmatpush1.msra.mxu0 0.0
        %1559 = vmatprep.subr.mxu0 0.0
        %1560 = vmatpush1.msra.mxu0 0.0
        %1561 = vmatprep.subr.mxu0 0.0
        %1562 = vmatpush1.msra.mxu0 0.0
        %1563 = vmatprep.subr.mxu0 0.0
        %1564 = vmatpush1.msra.mxu0 0.0
        %1565 = vmatprep.subr.mxu0 0.0
        %1566 = vmatpush1.msra.mxu0 0.0
        %1567 = vmatprep.subr.mxu0 0.0
        %1568 = vmatpush1.msra.mxu0 0.0
        %1569 = vmatprep.subr.mxu0 0.0
        %1570 = vmatpush1.msra.mxu0 0.0
        %1571 = vmatprep.subr.mxu0 0.0
        %1572 = vmatpush1.msra.mxu0 0.0
        %1573 = vmatprep.subr.mxu0 0.0
        %1574 = vmatpush1.msra.mxu0 0.0
        %1575 = vmatprep.subr.mxu0 0.0
        %1576 = vmatpush1.msra.mxu0 0.0
        %1577 = vmatprep.subr.mxu0 0.0
        %1578 = vmatpush1.msra.mxu0 0.0
        %1579 = vmatprep.subr.mxu0 0.0
        %1580 = vmatpush1.msra.mxu0 0.0
        %1581 = vmatprep.subr.mxu0 0.0
        %1582 = vmatpush1.msra.mxu0 0.0
        %1583 = vmatprep.subr.mxu0 0.0
        %1584 = vmatpush1.msra.mxu0 0.0
        %1585 = vmatprep.mubr.f32.mxu0 0.0
        %1586 = vmatmul.mubr.f32.gmra.mrb[0].mxu0 %v1516
        %v1587 = vpop.f32.mrb[0].mxu0
        %v1588 = vadd.f32 %v1514, %v1587
        %v1589 = vpop.f32.mrb[0].mxu0
        %1590 = vmatprep.mubr.f32.mxu0 0.0
        %1591 = vmatmul.mubr.f32.gmra.mrb[0].mxu0 %v1519
        %v1592 = vpop.f32.mrb[0].mxu0
        %v1593 = vadd.f32 %v1514, %v1592
        %v1594 = vpop.f32.mrb[0].mxu0
        %1595 = vdwg.mxu0
        %v1596 = vmax.f32 %v1588, 0.0
        %v1597 = vmax.f32 %v1593, 0.0
        %s1598 = scalar_lea.vmem %s5, 32
        %v1599 = vld [vmem:[%s1598] sm:$0xff]
        %v1600 = vld [vmem:[%s1598 + $0x8] sm:$0xff]
        %v1601 = vld [vmem:[%s1598 + $0x10] sm:$0xff]
        %v1602 = vld [vmem:[%s1598 + $0x18] sm:$0xff]
        %v1603 = vld [vmem:[%s6 + $0x1] sm:$0x1]
        %v1604 = vlaneseq
        %v1605 = vshrl.u32 %v1604, 7
        %v1606 = vsub.s32 0, %v1605
        %v1607 = vrot.slane %v1603, %v1606
        %v1609 = vsel %vm569, %v1596, 0
        %v1612 = vsel %vm569, %v1597, 0
        %1614 = vmatprep.subr.mxu0 0.0
        %1615 = vmatpush1.msra.mxu0 %v1599
        %1616 = vmatprep.subr.mxu0 0.0
        %1617 = vmatpush1.msra.mxu0 %v1600
        %1618 = vmatprep.subr.mxu0 0.0
        %1619 = vmatpush1.msra.mxu0 %v1601
        %1620 = vmatprep.subr.mxu0 0.0
        %1621 = vmatpush1.msra.mxu0 %v1602
        %1622 = vmatprep.subr.mxu0 0.0
        %1623 = vmatpush1.msra.mxu0 0.0
        %1624 = vmatprep.subr.mxu0 0.0
        %1625 = vmatpush1.msra.mxu0 0.0
        %1626 = vmatprep.subr.mxu0 0.0
        %1627 = vmatpush1.msra.mxu0 0.0
        %1628 = vmatprep.subr.mxu0 0.0
        %1629 = vmatpush1.msra.mxu0 0.0
        %1630 = vmatprep.subr.mxu0 0.0
        %1631 = vmatpush1.msra.mxu0 0.0
        %1632 = vmatprep.subr.mxu0 0.0
        %1633 = vmatpush1.msra.mxu0 0.0
        %1634 = vmatprep.subr.mxu0 0.0
        %1635 = vmatpush1.msra.mxu0 0.0
        %1636 = vmatprep.subr.mxu0 0.0
        %1637 = vmatpush1.msra.mxu0 0.0
        %1638 = vmatprep.subr.mxu0 0.0
        %1639 = vmatpush1.msra.mxu0 0.0
        %1640 = vmatprep.subr.mxu0 0.0
        %1641 = vmatpush1.msra.mxu0 0.0
        %1642 = vmatprep.subr.mxu0 0.0
        %1643 = vmatpush1.msra.mxu0 0.0
        %1644 = vmatprep.subr.mxu0 0.0
        %1645 = vmatpush1.msra.mxu0 0.0
        %1646 = vmatprep.subr.mxu0 0.0
        %1647 = vmatpush1.msra.mxu0 0.0
        %1648 = vmatprep.subr.mxu0 0.0
        %1649 = vmatpush1.msra.mxu0 0.0
        %1650 = vmatprep.subr.mxu0 0.0
        %1651 = vmatpush1.msra.mxu0 0.0
        %1652 = vmatprep.subr.mxu0 0.0
        %1653 = vmatpush1.msra.mxu0 0.0
        %1654 = vmatprep.subr.mxu0 0.0
        %1655 = vmatpush1.msra.mxu0 0.0
        %1656 = vmatprep.subr.mxu0 0.0
        %1657 = vmatpush1.msra.mxu0 0.0
        %1658 = vmatprep.subr.mxu0 0.0
        %1659 = vmatpush1.msra.mxu0 0.0
        %1660 = vmatprep.subr.mxu0 0.0
        %1661 = vmatpush1.msra.mxu0 0.0
        %1662 = vmatprep.subr.mxu0 0.0
        %1663 = vmatpush1.msra.mxu0 0.0
        %1664 = vmatprep.subr.mxu0 0.0
        %1665 = vmatpush1.msra.mxu0 0.0
        %1666 = vmatprep.subr.mxu0 0.0
        %1667 = vmatpush1.msra.mxu0 0.0
        %1668 = vmatprep.subr.mxu0 0.0
        %1669 = vmatpush1.msra.mxu0 0.0
        %1670 = vmatprep.subr.mxu0 0.0
        %1671 = vmatpush1.msra.mxu0 0.0
        %1672 = vmatprep.subr.mxu0 0.0
        %1673 = vmatpush1.msra.mxu0 0.0
        %1674 = vmatprep.subr.mxu0 0.0
        %1675 = vmatpush1.msra.mxu0 0.0
        %1676 = vmatprep.subr.mxu0 0.0
        %1677 = vmatpush1.msra.mxu0 0.0
        %1678 = vmatprep.mubr.f32.mxu0 0.0
        %1679 = vmatmul.mubr.f32.gmra.mrb[0].mxu0 %v1609
        %v1680 = vpop.f32.mrb[0].mxu0
        %v1681 = vadd.f32 %v1607, %v1680
        %v1682 = vpop.f32.mrb[0].mxu0
        %1683 = vmatprep.mubr.f32.mxu0 0.0
        %1684 = vmatmul.mubr.f32.gmra.mrb[0].mxu0 %v1612
        %v1685 = vpop.f32.mrb[0].mxu0
        %v1686 = vadd.f32 %v1607, %v1685
        %v1687 = vpop.f32.mrb[0].mxu0
        %1688 = vdwg.mxu0
        %s1689 = scalar_lea.vmem %s7, 64
        %v1690 = vld [vmem:[%s1689] sm:$0xff]
        %v1691 = vld [vmem:[%s1689 + $0x8] sm:$0xff]
        %v1692 = vld [vmem:[%s1689 + $0x10] sm:$0xff]
        %v1693 = vld [vmem:[%s1689 + $0x18] sm:$0xff]
        %v1694 = vld [vmem:[%s1689 + $0x20] sm:$0xff]
        %v1695 = vld [vmem:[%s1689 + $0x28] sm:$0xff]
        %v1696 = vld [vmem:[%s1689 + $0x30] sm:$0xff]
        %v1697 = vld [vmem:[%s1689 + $0x38] sm:$0xff]
        %v1699 = vsel %vm476, %v1497, 0
        %v1702 = vsel %vm476, %v1498, 0
        %1704 = vmatprep.subr.mxu0 0.0
        %1705 = vmatpush1.msra.mxu0 %v1690
        %1706 = vmatprep.subr.mxu0 0.0
        %1707 = vmatpush1.msra.mxu0 %v1691
        %1708 = vmatprep.subr.mxu0 0.0
        %1709 = vmatpush1.msra.mxu0 %v1692
        %1710 = vmatprep.subr.mxu0 0.0
        %1711 = vmatpush1.msra.mxu0 %v1693
        %1712 = vmatprep.subr.mxu0 0.0
        %1713 = vmatpush1.msra.mxu0 %v1694
        %1714 = vmatprep.subr.mxu0 0.0
        %1715 = vmatpush1.msra.mxu0 %v1695
        %1716 = vmatprep.subr.mxu0 0.0
        %1717 = vmatpush1.msra.mxu0 %v1696
        %1718 = vmatprep.subr.mxu0 0.0
        %1719 = vmatpush1.msra.mxu0 %v1697
        %1720 = vmatprep.subr.mxu0 0.0
        %1721 = vmatpush1.msra.mxu0 0.0
        %1722 = vmatprep.subr.mxu0 0.0
        %1723 = vmatpush1.msra.mxu0 0.0
        %1724 = vmatprep.subr.mxu0 0.0
        %1725 = vmatpush1.msra.mxu0 0.0
        %1726 = vmatprep.subr.mxu0 0.0
        %1727 = vmatpush1.msra.mxu0 0.0
        %1728 = vmatprep.subr.mxu0 0.0
        %1729 = vmatpush1.msra.mxu0 0.0
        %1730 = vmatprep.subr.mxu0 0.0
        %1731 = vmatpush1.msra.mxu0 0.0
        %1732 = vmatprep.subr.mxu0 0.0
        %1733 = vmatpush1.msra.mxu0 0.0
        %1734 = vmatprep.subr.mxu0 0.0
        %1735 = vmatpush1.msra.mxu0 0.0
        %1736 = vmatprep.subr.mxu0 0.0
        %1737 = vmatpush1.msra.mxu0 0.0
        %1738 = vmatprep.subr.mxu0 0.0
        %1739 = vmatpush1.msra.mxu0 0.0
        %1740 = vmatprep.subr.mxu0 0.0
        %1741 = vmatpush1.msra.mxu0 0.0
        %1742 = vmatprep.subr.mxu0 0.0
        %1743 = vmatpush1.msra.mxu0 0.0
        %1744 = vmatprep.subr.mxu0 0.0
        %1745 = vmatpush1.msra.mxu0 0.0
        %1746 = vmatprep.subr.mxu0 0.0
        %1747 = vmatpush1.msra.mxu0 0.0
        %1748 = vmatprep.subr.mxu0 0.0
        %1749 = vmatpush1.msra.mxu0 0.0
        %1750 = vmatprep.subr.mxu0 0.0
        %1751 = vmatpush1.msra.mxu0 0.0
        %1752 = vmatprep.subr.mxu0 0.0
        %1753 = vmatpush1.msra.mxu0 0.0
        %1754 = vmatprep.subr.mxu0 0.0
        %1755 = vmatpush1.msra.mxu0 0.0
        %1756 = vmatprep.subr.mxu0 0.0
        %1757 = vmatpush1.msra.mxu0 0.0
        %1758 = vmatprep.subr.mxu0 0.0
        %1759 = vmatpush1.msra.mxu0 0.0
        %1760 = vmatprep.subr.mxu0 0.0
        %1761 = vmatpush1.msra.mxu0 0.0
        %1762 = vmatprep.subr.mxu0 0.0
        %1763 = vmatpush1.msra.mxu0 0.0
        %1764 = vmatprep.subr.mxu0 0.0
        %1765 = vmatpush1.msra.mxu0 0.0
        %1766 = vmatprep.subr.mxu0 0.0
        %1767 = vmatpush1.msra.mxu0 0.0
        %1768 = vmatprep.mubr.f32.mxu0 0.0
        %1769 = vmatmul.mubr.f32.gmra.mrb[0].mxu0 %v1699
        %v1770 = vpop.f32.mrb[0].mxu0
        %v1771 = vadd.f32 %v1681, %v1770
        %v1772 = vpop.f32.mrb[0].mxu0
        %1773 = vmatprep.mubr.f32.mxu0 0.0
        %1774 = vmatmul.mubr.f32.gmra.mrb[0].mxu0 %v1702
        %v1775 = vpop.f32.mrb[0].mxu0
        %v1776 = vadd.f32 %v1686, %v1775
        %v1777 = vpop.f32.mrb[0].mxu0
        %1778 = vdwg.mxu0
        %1779 = vst.msk [vmem:[#allocation3] sm:$0xff] %vm569, %v1771
        %1780 = vst.msk [vmem:[#allocation3 + $0x8] sm:$0xff] %vm569, %v1776
        %1781 = vst.msk [vmem:[#allocation4] sm:$0xff] %vm569, 0.0
        %1782 = vst.msk [vmem:[#allocation4 + $0x8] sm:$0xff] %vm569, 0.0
        %v1783 = vld [vmem:[#allocation2] sm:$0xff]
        %v1784 = vld [vmem:[#allocation2 + $0x8] sm:$0xff]
        %v1785 = vld [vmem:[#allocation3] sm:$0xff]
        %v1786 = vld [vmem:[#allocation3 + $0x8] sm:$0xff]
        %1787 = vset.pattern.permute.xlu0 0
        %1788 = vperm.xlu0 %1787, %v1783
        %v1789 = vpop.permute.xlu0 %1788
        %1790 = vset.pattern.permute.xlu0 0
        %1791 = vperm.xlu0 %1790, %v1784
        %v1792 = vpop.permute.xlu0 %1791
        %vm1793 = vcmp.eq.s32.totalorder %v1789, %v747
        %vm1794 = vcmp.eq.s32.totalorder %v1792, %v747
        %v1795 = vsel %vm1793, 1, 0
        %v1796 = vsel %vm1794, 1, 0
        %v1797 = vcombine.high %v1795, %v1795
        %v1799 = vunpack.c.l.s4 1966171168
        %v1800 = vunpack.c.0.s8 %v1799
        %v1801 = vlaneseq
        %v1802 = vshrl.u32 %v1801, 7
        %v1803 = vsub.s32 %v1800, %v1802
        %v1804 = vrot.slane %v1795, %v1803
        %v1806 = vunpack.c.l.s4 1966171168
        %v1807 = vunpack.c.0.s8 %v1806
        %v1808 = vlaneseq
        %v1809 = vshrl.u32 %v1808, 7
        %v1810 = vsub.s32 %v1807, %v1809
        %v1811 = vrot.slane %v1797, %v1810
        %v1812 = vcombine.high %v1804, %v1804
        %v1813 = vcombine.high %v1811, %v1811
        %v1815 = vunpack.c.l.s4 1966171168
        %v1816 = vunpack.c.0.s8 %v1815
        %v1817 = vlaneseq
        %v1818 = vshrl.u32 %v1817, 7
        %v1819 = vsub.s32 %v1816, %v1818
        %v1820 = vrot.slane %v1804, %v1819
        %v1822 = vunpack.c.l.s4 1966171168
        %v1823 = vunpack.c.0.s8 %v1822
        %v1824 = vlaneseq
        %v1825 = vshrl.u32 %v1824, 7
        %v1826 = vsub.s32 %v1823, %v1825
        %v1827 = vrot.slane %v1811, %v1826
        %v1829 = vunpack.c.l.s4 1966171168
        %v1830 = vunpack.c.0.s8 %v1829
        %v1831 = vlaneseq
        %v1832 = vshrl.u32 %v1831, 7
        %v1833 = vsub.s32 %v1830, %v1832
        %v1834 = vrot.slane %v1812, %v1833
        %v1836 = vunpack.c.l.s4 1966171168
        %v1837 = vunpack.c.0.s8 %v1836
        %v1838 = vlaneseq
        %v1839 = vshrl.u32 %v1838, 7
        %v1840 = vsub.s32 %v1837, %v1839
        %v1841 = vrot.slane %v1813, %v1840
        %v1842 = vcombine.high %v1820, %v1820
        %v1843 = vcombine.high %v1827, %v1827
        %v1844 = vcombine.high %v1834, %v1834
        %v1845 = vcombine.high %v1841, %v1841
        %v1846 = vcombine.high %v1796, %v1796
        %v1848 = vunpack.c.l.s4 1966171168
        %v1849 = vunpack.c.0.s8 %v1848
        %v1850 = vlaneseq
        %v1851 = vshrl.u32 %v1850, 7
        %v1852 = vsub.s32 %v1849, %v1851
        %v1853 = vrot.slane %v1796, %v1852
        %v1855 = vunpack.c.l.s4 1966171168
        %v1856 = vunpack.c.0.s8 %v1855
        %v1857 = vlaneseq
        %v1858 = vshrl.u32 %v1857, 7
        %v1859 = vsub.s32 %v1856, %v1858
        %v1860 = vrot.slane %v1846, %v1859
        %v1861 = vcombine.high %v1853, %v1853
        %v1862 = vcombine.high %v1860, %v1860
        %v1864 = vunpack.c.l.s4 1966171168
        %v1865 = vunpack.c.0.s8 %v1864
        %v1866 = vlaneseq
        %v1867 = vshrl.u32 %v1866, 7
        %v1868 = vsub.s32 %v1865, %v1867
        %v1869 = vrot.slane %v1853, %v1868
        %v1871 = vunpack.c.l.s4 1966171168
        %v1872 = vunpack.c.0.s8 %v1871
        %v1873 = vlaneseq
        %v1874 = vshrl.u32 %v1873, 7
        %v1875 = vsub.s32 %v1872, %v1874
        %v1876 = vrot.slane %v1860, %v1875
        %v1878 = vunpack.c.l.s4 1966171168
        %v1879 = vunpack.c.0.s8 %v1878
        %v1880 = vlaneseq
        %v1881 = vshrl.u32 %v1880, 7
        %v1882 = vsub.s32 %v1879, %v1881
        %v1883 = vrot.slane %v1861, %v1882
        %v1885 = vunpack.c.l.s4 1966171168
        %v1886 = vunpack.c.0.s8 %v1885
        %v1887 = vlaneseq
        %v1888 = vshrl.u32 %v1887, 7
        %v1889 = vsub.s32 %v1886, %v1888
        %v1890 = vrot.slane %v1862, %v1889
        %v1891 = vcombine.high %v1869, %v1869
        %v1892 = vcombine.high %v1876, %v1876
        %v1893 = vcombine.high %v1883, %v1883
        %v1894 = vcombine.high %v1890, %v1890
        %vm1895 = vcmp.ne.s32.totalorder %v1820, 0
        %vm1896 = vcmp.ne.s32.totalorder %v1834, 0
        %vm1897 = vcmp.ne.s32.totalorder %v1842, 0
        %vm1898 = vcmp.ne.s32.totalorder %v1844, 0
        %vm1899 = vcmp.ne.s32.totalorder %v1827, 0
        %vm1900 = vcmp.ne.s32.totalorder %v1841, 0
        %vm1901 = vcmp.ne.s32.totalorder %v1843, 0
        %vm1902 = vcmp.ne.s32.totalorder %v1845, 0
        %vm1903 = vcmp.ne.s32.totalorder %v1869, 0
        %vm1904 = vcmp.ne.s32.totalorder %v1883, 0
        %vm1905 = vcmp.ne.s32.totalorder %v1891, 0
        %vm1906 = vcmp.ne.s32.totalorder %v1893, 0
        %vm1907 = vcmp.ne.s32.totalorder %v1876, 0
        %vm1908 = vcmp.ne.s32.totalorder %v1890, 0
        %vm1909 = vcmp.ne.s32.totalorder %v1892, 0
        %vm1910 = vcmp.ne.s32.totalorder %v1894, 0
        %v1911 = vlaneseq
        %v1912 = vshrl.u32 %v1911, 7
        %v1913 = vsub.s32 0, %v1912
        %v1914 = vrot.slane %v1785, %v1913
        %1916 = vbcast.lane.b32.xlu0 %v1914, 256
        %v1917 = vpop.permute.xlu0 %1916
        %s1919 = sor.u32 256, 8
        %1920 = vbcast.lane.b32.xlu0 %v1914, %s1919
        %v1921 = vpop.permute.xlu0 %1920
        %s1923 = sor.u32 256, 16
        %1924 = vbcast.lane.b32.xlu0 %v1914, %s1923
        %v1925 = vpop.permute.xlu0 %1924
        %s1927 = sor.u32 256, 24
        %1928 = vbcast.lane.b32.xlu0 %v1914, %s1927
        %v1929 = vpop.permute.xlu0 %1928
        %v1930 = vlaneseq
        %v1931 = vshrl.u32 %v1930, 7
        %v1932 = vsub.s32 1, %v1931
        %v1933 = vrot.slane %v1785, %v1932
        %1935 = vbcast.lane.b32.xlu0 %v1933, 256
        %v1936 = vpop.permute.xlu0 %1935
        %s1938 = sor.u32 256, 8
        %1939 = vbcast.lane.b32.xlu0 %v1933, %s1938
        %v1940 = vpop.permute.xlu0 %1939
        %s1942 = sor.u32 256, 16
        %1943 = vbcast.lane.b32.xlu0 %v1933, %s1942
        %v1944 = vpop.permute.xlu0 %1943
        %s1946 = sor.u32 256, 24
        %1947 = vbcast.lane.b32.xlu0 %v1933, %s1946
        %v1948 = vpop.permute.xlu0 %1947
        %v1949 = vlaneseq
        %v1950 = vshrl.u32 %v1949, 7
        %v1951 = vsub.s32 2, %v1950
        %v1952 = vrot.slane %v1785, %v1951
        %1954 = vbcast.lane.b32.xlu0 %v1952, 256
        %v1955 = vpop.permute.xlu0 %1954
        %s1957 = sor.u32 256, 8
        %1958 = vbcast.lane.b32.xlu0 %v1952, %s1957
        %v1959 = vpop.permute.xlu0 %1958
        %s1961 = sor.u32 256, 16
        %1962 = vbcast.lane.b32.xlu0 %v1952, %s1961
        %v1963 = vpop.permute.xlu0 %1962
        %s1965 = sor.u32 256, 24
        %1966 = vbcast.lane.b32.xlu0 %v1952, %s1965
        %v1967 = vpop.permute.xlu0 %1966
        %v1968 = vlaneseq
        %v1969 = vshrl.u32 %v1968, 7
        %v1970 = vsub.s32 3, %v1969
        %v1971 = vrot.slane %v1785, %v1970
        %1973 = vbcast.lane.b32.xlu0 %v1971, 256
        %v1974 = vpop.permute.xlu0 %1973
        %s1976 = sor.u32 256, 8
        %1977 = vbcast.lane.b32.xlu0 %v1971, %s1976
        %v1978 = vpop.permute.xlu0 %1977
        %s1980 = sor.u32 256, 16
        %1981 = vbcast.lane.b32.xlu0 %v1971, %s1980
        %v1982 = vpop.permute.xlu0 %1981
        %s1984 = sor.u32 256, 24
        %1985 = vbcast.lane.b32.xlu0 %v1971, %s1984
        %v1986 = vpop.permute.xlu0 %1985
        %v1987 = vlaneseq
        %v1988 = vshrl.u32 %v1987, 7
        %v1989 = vsub.s32 4, %v1988
        %v1990 = vrot.slane %v1785, %v1989
        %1992 = vbcast.lane.b32.xlu0 %v1990, 256
        %v1993 = vpop.permute.xlu0 %1992
        %s1995 = sor.u32 256, 8
        %1996 = vbcast.lane.b32.xlu0 %v1990, %s1995
        %v1997 = vpop.permute.xlu0 %1996
        %s1999 = sor.u32 256, 16
        %2000 = vbcast.lane.b32.xlu0 %v1990, %s1999
        %v2001 = vpop.permute.xlu0 %2000
        %s2003 = sor.u32 256, 24
        %2004 = vbcast.lane.b32.xlu0 %v1990, %s2003
        %v2005 = vpop.permute.xlu0 %2004
        %v2006 = vlaneseq
        %v2007 = vshrl.u32 %v2006, 7
        %v2008 = vsub.s32 5, %v2007
        %v2009 = vrot.slane %v1785, %v2008
        %2011 = vbcast.lane.b32.xlu0 %v2009, 256
        %v2012 = vpop.permute.xlu0 %2011
        %s2014 = sor.u32 256, 8
        %2015 = vbcast.lane.b32.xlu0 %v2009, %s2014
        %v2016 = vpop.permute.xlu0 %2015
        %s2018 = sor.u32 256, 16
        %2019 = vbcast.lane.b32.xlu0 %v2009, %s2018
        %v2020 = vpop.permute.xlu0 %2019
        %s2022 = sor.u32 256, 24
        %2023 = vbcast.lane.b32.xlu0 %v2009, %s2022
        %v2024 = vpop.permute.xlu0 %2023
        %v2025 = vlaneseq
        %v2026 = vshrl.u32 %v2025, 7
        %v2027 = vsub.s32 6, %v2026
        %v2028 = vrot.slane %v1785, %v2027
        %2030 = vbcast.lane.b32.xlu0 %v2028, 256
        %v2031 = vpop.permute.xlu0 %2030
        %s2033 = sor.u32 256, 8
        %2034 = vbcast.lane.b32.xlu0 %v2028, %s2033
        %v2035 = vpop.permute.xlu0 %2034
        %s2037 = sor.u32 256, 16
        %2038 = vbcast.lane.b32.xlu0 %v2028, %s2037
        %v2039 = vpop.permute.xlu0 %2038
        %s2041 = sor.u32 256, 24
        %2042 = vbcast.lane.b32.xlu0 %v2028, %s2041
        %v2043 = vpop.permute.xlu0 %2042
        %v2044 = vlaneseq
        %v2045 = vshrl.u32 %v2044, 7
        %v2046 = vsub.s32 7, %v2045
        %v2047 = vrot.slane %v1785, %v2046
        %2049 = vbcast.lane.b32.xlu0 %v2047, 256
        %v2050 = vpop.permute.xlu0 %2049
        %s2052 = sor.u32 256, 8
        %2053 = vbcast.lane.b32.xlu0 %v2047, %s2052
        %v2054 = vpop.permute.xlu0 %2053
        %s2056 = sor.u32 256, 16
        %2057 = vbcast.lane.b32.xlu0 %v2047, %s2056
        %v2058 = vpop.permute.xlu0 %2057
        %s2060 = sor.u32 256, 24
        %2061 = vbcast.lane.b32.xlu0 %v2047, %s2060
        %v2062 = vpop.permute.xlu0 %2061
        %v2063 = vlaneseq
        %v2064 = vshrl.u32 %v2063, 7
        %v2065 = vsub.s32 0, %v2064
        %v2066 = vrot.slane %v1786, %v2065
        %2068 = vbcast.lane.b32.xlu0 %v2066, 256
        %v2069 = vpop.permute.xlu0 %2068
        %s2071 = sor.u32 256, 8
        %2072 = vbcast.lane.b32.xlu0 %v2066, %s2071
        %v2073 = vpop.permute.xlu0 %2072
        %s2075 = sor.u32 256, 16
        %2076 = vbcast.lane.b32.xlu0 %v2066, %s2075
        %v2077 = vpop.permute.xlu0 %2076
        %s2079 = sor.u32 256, 24
        %2080 = vbcast.lane.b32.xlu0 %v2066, %s2079
        %v2081 = vpop.permute.xlu0 %2080
        %v2082 = vlaneseq
        %v2083 = vshrl.u32 %v2082, 7
        %v2084 = vsub.s32 1, %v2083
        %v2085 = vrot.slane %v1786, %v2084
        %2087 = vbcast.lane.b32.xlu0 %v2085, 256
        %v2088 = vpop.permute.xlu0 %2087
        %s2090 = sor.u32 256, 8
        %2091 = vbcast.lane.b32.xlu0 %v2085, %s2090
        %v2092 = vpop.permute.xlu0 %2091
        %s2094 = sor.u32 256, 16
        %2095 = vbcast.lane.b32.xlu0 %v2085, %s2094
        %v2096 = vpop.permute.xlu0 %2095
        %s2098 = sor.u32 256, 24
        %2099 = vbcast.lane.b32.xlu0 %v2085, %s2098
        %v2100 = vpop.permute.xlu0 %2099
        %v2101 = vlaneseq
        %v2102 = vshrl.u32 %v2101, 7
        %v2103 = vsub.s32 2, %v2102
        %v2104 = vrot.slane %v1786, %v2103
        %2106 = vbcast.lane.b32.xlu0 %v2104, 256
        %v2107 = vpop.permute.xlu0 %2106
        %s2109 = sor.u32 256, 8
        %2110 = vbcast.lane.b32.xlu0 %v2104, %s2109
        %v2111 = vpop.permute.xlu0 %2110
        %s2113 = sor.u32 256, 16
        %2114 = vbcast.lane.b32.xlu0 %v2104, %s2113
        %v2115 = vpop.permute.xlu0 %2114
        %s2117 = sor.u32 256, 24
        %2118 = vbcast.lane.b32.xlu0 %v2104, %s2117
        %v2119 = vpop.permute.xlu0 %2118
        %v2120 = vlaneseq
        %v2121 = vshrl.u32 %v2120, 7
        %v2122 = vsub.s32 3, %v2121
        %v2123 = vrot.slane %v1786, %v2122
        %2125 = vbcast.lane.b32.xlu0 %v2123, 256
        %v2126 = vpop.permute.xlu0 %2125
        %s2128 = sor.u32 256, 8
        %2129 = vbcast.lane.b32.xlu0 %v2123, %s2128
        %v2130 = vpop.permute.xlu0 %2129
        %s2132 = sor.u32 256, 16
        %2133 = vbcast.lane.b32.xlu0 %v2123, %s2132
        %v2134 = vpop.permute.xlu0 %2133
        %s2136 = sor.u32 256, 24
        %2137 = vbcast.lane.b32.xlu0 %v2123, %s2136
        %v2138 = vpop.permute.xlu0 %2137
        %v2139 = vlaneseq
        %v2140 = vshrl.u32 %v2139, 7
        %v2141 = vsub.s32 4, %v2140
        %v2142 = vrot.slane %v1786, %v2141
        %2144 = vbcast.lane.b32.xlu0 %v2142, 256
        %v2145 = vpop.permute.xlu0 %2144
        %s2147 = sor.u32 256, 8
        %2148 = vbcast.lane.b32.xlu0 %v2142, %s2147
        %v2149 = vpop.permute.xlu0 %2148
        %s2151 = sor.u32 256, 16
        %2152 = vbcast.lane.b32.xlu0 %v2142, %s2151
        %v2153 = vpop.permute.xlu0 %2152
        %s2155 = sor.u32 256, 24
        %2156 = vbcast.lane.b32.xlu0 %v2142, %s2155
        %v2157 = vpop.permute.xlu0 %2156
        %v2158 = vlaneseq
        %v2159 = vshrl.u32 %v2158, 7
        %v2160 = vsub.s32 5, %v2159
        %v2161 = vrot.slane %v1786, %v2160
        %2163 = vbcast.lane.b32.xlu0 %v2161, 256
        %v2164 = vpop.permute.xlu0 %2163
        %s2166 = sor.u32 256, 8
        %2167 = vbcast.lane.b32.xlu0 %v2161, %s2166
        %v2168 = vpop.permute.xlu0 %2167
        %s2170 = sor.u32 256, 16
        %2171 = vbcast.lane.b32.xlu0 %v2161, %s2170
        %v2172 = vpop.permute.xlu0 %2171
        %s2174 = sor.u32 256, 24
        %2175 = vbcast.lane.b32.xlu0 %v2161, %s2174
        %v2176 = vpop.permute.xlu0 %2175
        %v2177 = vlaneseq
        %v2178 = vshrl.u32 %v2177, 7
        %v2179 = vsub.s32 6, %v2178
        %v2180 = vrot.slane %v1786, %v2179
        %2182 = vbcast.lane.b32.xlu0 %v2180, 256
        %v2183 = vpop.permute.xlu0 %2182
        %s2185 = sor.u32 256, 8
        %2186 = vbcast.lane.b32.xlu0 %v2180, %s2185
        %v2187 = vpop.permute.xlu0 %2186
        %s2189 = sor.u32 256, 16
        %2190 = vbcast.lane.b32.xlu0 %v2180, %s2189
        %v2191 = vpop.permute.xlu0 %2190
        %s2193 = sor.u32 256, 24
        %2194 = vbcast.lane.b32.xlu0 %v2180, %s2193
        %v2195 = vpop.permute.xlu0 %2194
        %v2196 = vlaneseq
        %v2197 = vshrl.u32 %v2196, 7
        %v2198 = vsub.s32 7, %v2197
        %v2199 = vrot.slane %v1786, %v2198
        %2201 = vbcast.lane.b32.xlu0 %v2199, 256
        %v2202 = vpop.permute.xlu0 %2201
        %s2204 = sor.u32 256, 8
        %2205 = vbcast.lane.b32.xlu0 %v2199, %s2204
        %v2206 = vpop.permute.xlu0 %2205
        %s2208 = sor.u32 256, 16
        %2209 = vbcast.lane.b32.xlu0 %v2199, %s2208
        %v2210 = vpop.permute.xlu0 %2209
        %s2212 = sor.u32 256, 24
        %2213 = vbcast.lane.b32.xlu0 %v2199, %s2212
        %v2214 = vpop.permute.xlu0 %2213
        %v2215 = vsel %vm1895, 1, 0
        %v2216 = vsel %vm1896, 1, 0
        %v2217 = vsel %vm1897, 1, 0
        %v2218 = vsel %vm1898, 1, 0
        %v2219 = vsel %vm1899, 1, 0
        %v2220 = vsel %vm1900, 1, 0
        %v2221 = vsel %vm1901, 1, 0
        %v2222 = vsel %vm1902, 1, 0
        %v2223 = vsel %vm1903, 1, 0
        %v2224 = vsel %vm1904, 1, 0
        %v2225 = vsel %vm1905, 1, 0
        %v2226 = vsel %vm1906, 1, 0
        %v2227 = vsel %vm1907, 1, 0
        %v2228 = vsel %vm1908, 1, 0
        %v2229 = vsel %vm1909, 1, 0
        %v2230 = vsel %vm1910, 1, 0
        %v2231 = vlaneseq
        %v2232 = vshrl.u32 %v2231, 7
        %v2233 = vsub.s32 0, %v2232
        %v2234 = vrot.slane %v2215, %v2233
        %v2235 = vlaneseq
        %v2236 = vshrl.u32 %v2235, 7
        %v2237 = vsub.s32 0, %v2236
        %v2238 = vrot.slane %v2216, %v2237
        %v2239 = vlaneseq
        %v2240 = vshrl.u32 %v2239, 7
        %v2241 = vsub.s32 0, %v2240
        %v2242 = vrot.slane %v2217, %v2241
        %v2243 = vlaneseq
        %v2244 = vshrl.u32 %v2243, 7
        %v2245 = vsub.s32 0, %v2244
        %v2246 = vrot.slane %v2218, %v2245
        %v2247 = vlaneseq
        %v2248 = vshrl.u32 %v2247, 7
        %v2249 = vsub.s32 0, %v2248
        %v2250 = vrot.slane %v2219, %v2249
        %v2251 = vlaneseq
        %v2252 = vshrl.u32 %v2251, 7
        %v2253 = vsub.s32 0, %v2252
        %v2254 = vrot.slane %v2220, %v2253
        %v2255 = vlaneseq
        %v2256 = vshrl.u32 %v2255, 7
        %v2257 = vsub.s32 0, %v2256
        %v2258 = vrot.slane %v2221, %v2257
        %v2259 = vlaneseq
        %v2260 = vshrl.u32 %v2259, 7
        %v2261 = vsub.s32 0, %v2260
        %v2262 = vrot.slane %v2222, %v2261
        %v2263 = vlaneseq
        %v2264 = vshrl.u32 %v2263, 7
        %v2265 = vsub.s32 0, %v2264
        %v2266 = vrot.slane %v2223, %v2265
        %v2267 = vlaneseq
        %v2268 = vshrl.u32 %v2267, 7
        %v2269 = vsub.s32 0, %v2268
        %v2270 = vrot.slane %v2224, %v2269
        %v2271 = vlaneseq
        %v2272 = vshrl.u32 %v2271, 7
        %v2273 = vsub.s32 0, %v2272
        %v2274 = vrot.slane %v2225, %v2273
        %v2275 = vlaneseq
        %v2276 = vshrl.u32 %v2275, 7
        %v2277 = vsub.s32 0, %v2276
        %v2278 = vrot.slane %v2226, %v2277
        %v2279 = vlaneseq
        %v2280 = vshrl.u32 %v2279, 7
        %v2281 = vsub.s32 0, %v2280
        %v2282 = vrot.slane %v2227, %v2281
        %v2283 = vlaneseq
        %v2284 = vshrl.u32 %v2283, 7
        %v2285 = vsub.s32 0, %v2284
        %v2286 = vrot.slane %v2228, %v2285
        %v2287 = vlaneseq
        %v2288 = vshrl.u32 %v2287, 7
        %v2289 = vsub.s32 0, %v2288
        %v2290 = vrot.slane %v2229, %v2289
        %v2291 = vlaneseq
        %v2292 = vshrl.u32 %v2291, 7
        %v2293 = vsub.s32 0, %v2292
        %v2294 = vrot.slane %v2230, %v2293
        %vm2295 = vcmp.eq.s32.totalorder %v2234, 1
        %vm2296 = vcmp.eq.s32.totalorder %v2238, 1
        %vm2297 = vcmp.eq.s32.totalorder %v2242, 1
        %vm2298 = vcmp.eq.s32.totalorder %v2246, 1
        %vm2299 = vcmp.eq.s32.totalorder %v2250, 1
        %vm2300 = vcmp.eq.s32.totalorder %v2254, 1
        %vm2301 = vcmp.eq.s32.totalorder %v2258, 1
        %vm2302 = vcmp.eq.s32.totalorder %v2262, 1
        %vm2303 = vcmp.eq.s32.totalorder %v2266, 1
        %vm2304 = vcmp.eq.s32.totalorder %v2270, 1
        %vm2305 = vcmp.eq.s32.totalorder %v2274, 1
        %vm2306 = vcmp.eq.s32.totalorder %v2278, 1
        %vm2307 = vcmp.eq.s32.totalorder %v2282, 1
        %vm2308 = vcmp.eq.s32.totalorder %v2286, 1
        %vm2309 = vcmp.eq.s32.totalorder %v2290, 1
        %vm2310 = vcmp.eq.s32.totalorder %v2294, 1
        %v2311 = vsel %vm2295, %v1917, -1e+30
        %v2312 = vsel %vm2295, %v1921, -1e+30
        %v2313 = vsel %vm2295, %v1925, -1e+30
        %v2314 = vsel %vm2295, %v1929, -1e+30
        %v2315 = vsel %vm2296, %v1936, -1e+30
        %v2316 = vsel %vm2296, %v1940, -1e+30
        %v2317 = vsel %vm2296, %v1944, -1e+30
        %v2318 = vsel %vm2296, %v1948, -1e+30
        %v2319 = vsel %vm2297, %v1955, -1e+30
        %v2320 = vsel %vm2297, %v1959, -1e+30
        %v2321 = vsel %vm2297, %v1963, -1e+30
        %v2322 = vsel %vm2297, %v1967, -1e+30
        %v2323 = vsel %vm2298, %v1974, -1e+30
        %v2324 = vsel %vm2298, %v1978, -1e+30
        %v2325 = vsel %vm2298, %v1982, -1e+30
        %v2326 = vsel %vm2298, %v1986, -1e+30
        %v2327 = vsel %vm2299, %v1993, -1e+30
        %v2328 = vsel %vm2299, %v1997, -1e+30
        %v2329 = vsel %vm2299, %v2001, -1e+30
        %v2330 = vsel %vm2299, %v2005, -1e+30
        %v2331 = vsel %vm2300, %v2012, -1e+30
        %v2332 = vsel %vm2300, %v2016, -1e+30
        %v2333 = vsel %vm2300, %v2020, -1e+30
        %v2334 = vsel %vm2300, %v2024, -1e+30
        %v2335 = vsel %vm2301, %v2031, -1e+30
        %v2336 = vsel %vm2301, %v2035, -1e+30
        %v2337 = vsel %vm2301, %v2039, -1e+30
        %v2338 = vsel %vm2301, %v2043, -1e+30
        %v2339 = vsel %vm2302, %v2050, -1e+30
        %v2340 = vsel %vm2302, %v2054, -1e+30
        %v2341 = vsel %vm2302, %v2058, -1e+30
        %v2342 = vsel %vm2302, %v2062, -1e+30
        %v2343 = vsel %vm2303, %v2069, -1e+30
        %v2344 = vsel %vm2303, %v2073, -1e+30
        %v2345 = vsel %vm2303, %v2077, -1e+30
        %v2346 = vsel %vm2303, %v2081, -1e+30
        %v2347 = vsel %vm2304, %v2088, -1e+30
        %v2348 = vsel %vm2304, %v2092, -1e+30
        %v2349 = vsel %vm2304, %v2096, -1e+30
        %v2350 = vsel %vm2304, %v2100, -1e+30
        %v2351 = vsel %vm2305, %v2107, -1e+30
        %v2352 = vsel %vm2305, %v2111, -1e+30
        %v2353 = vsel %vm2305, %v2115, -1e+30
        %v2354 = vsel %vm2305, %v2119, -1e+30
        %v2355 = vsel %vm2306, %v2126, -1e+30
        %v2356 = vsel %vm2306, %v2130, -1e+30
        %v2357 = vsel %vm2306, %v2134, -1e+30
        %v2358 = vsel %vm2306, %v2138, -1e+30
        %v2359 = vsel %vm2307, %v2145, -1e+30
        %v2360 = vsel %vm2307, %v2149, -1e+30
        %v2361 = vsel %vm2307, %v2153, -1e+30
        %v2362 = vsel %vm2307, %v2157, -1e+30
        %v2363 = vsel %vm2308, %v2164, -1e+30
        %v2364 = vsel %vm2308, %v2168, -1e+30
        %v2365 = vsel %vm2308, %v2172, -1e+30
        %v2366 = vsel %vm2308, %v2176, -1e+30
        %v2367 = vsel %vm2309, %v2183, -1e+30
        %v2368 = vsel %vm2309, %v2187, -1e+30
        %v2369 = vsel %vm2309, %v2191, -1e+30
        %v2370 = vsel %vm2309, %v2195, -1e+30
        %v2371 = vsel %vm2310, %v2202, -1e+30
        %v2372 = vsel %vm2310, %v2206, -1e+30
        %v2373 = vsel %vm2310, %v2210, -1e+30
        %v2374 = vsel %vm2310, %v2214, -1e+30
        %v2375 = vmax.f32 %v2311, %v2315
        %v2376 = vmax.f32 %v2375, %v2319
        %v2377 = vmax.f32 %v2376, %v2323
        %v2378 = vmax.f32 %v2377, %v2327
        %v2379 = vmax.f32 %v2378, %v2331
        %v2380 = vmax.f32 %v2379, %v2335
        %v2381 = vmax.f32 %v2380, %v2339
        %v2382 = vmax.f32 %v2381, %v2343
        %v2383 = vmax.f32 %v2382, %v2347
        %v2384 = vmax.f32 %v2383, %v2351
        %v2385 = vmax.f32 %v2384, %v2355
        %v2386 = vmax.f32 %v2385, %v2359
        %v2387 = vmax.f32 %v2386, %v2363
        %v2388 = vmax.f32 %v2387, %v2367
        %v2389 = vmax.f32 %v2388, %v2371
        %v2390 = vmax.f32 %v2312, %v2316
        %v2391 = vmax.f32 %v2390, %v2320
        %v2392 = vmax.f32 %v2391, %v2324
        %v2393 = vmax.f32 %v2392, %v2328
        %v2394 = vmax.f32 %v2393, %v2332
        %v2395 = vmax.f32 %v2394, %v2336
        %v2396 = vmax.f32 %v2395, %v2340
        %v2397 = vmax.f32 %v2396, %v2344
        %v2398 = vmax.f32 %v2397, %v2348
        %v2399 = vmax.f32 %v2398, %v2352
        %v2400 = vmax.f32 %v2399, %v2356
        %v2401 = vmax.f32 %v2400, %v2360
        %v2402 = vmax.f32 %v2401, %v2364
        %v2403 = vmax.f32 %v2402, %v2368
        %v2404 = vmax.f32 %v2403, %v2372
        %v2405 = vmax.f32 %v2313, %v2317
        %v2406 = vmax.f32 %v2405, %v2321
        %v2407 = vmax.f32 %v2406, %v2325
        %v2408 = vmax.f32 %v2407, %v2329
        %v2409 = vmax.f32 %v2408, %v2333
        %v2410 = vmax.f32 %v2409, %v2337
        %v2411 = vmax.f32 %v2410, %v2341
        %v2412 = vmax.f32 %v2411, %v2345
        %v2413 = vmax.f32 %v2412, %v2349
        %v2414 = vmax.f32 %v2413, %v2353
        %v2415 = vmax.f32 %v2414, %v2357
        %v2416 = vmax.f32 %v2415, %v2361
        %v2417 = vmax.f32 %v2416, %v2365
        %v2418 = vmax.f32 %v2417, %v2369
        %v2419 = vmax.f32 %v2418, %v2373
        %v2420 = vmax.f32 %v2314, %v2318
        %v2421 = vmax.f32 %v2420, %v2322
        %v2422 = vmax.f32 %v2421, %v2326
        %v2423 = vmax.f32 %v2422, %v2330
        %v2424 = vmax.f32 %v2423, %v2334
        %v2425 = vmax.f32 %v2424, %v2338
        %v2426 = vmax.f32 %v2425, %v2342
        %v2427 = vmax.f32 %v2426, %v2346
        %v2428 = vmax.f32 %v2427, %v2350
        %v2429 = vmax.f32 %v2428, %v2354
        %v2430 = vmax.f32 %v2429, %v2358
        %v2431 = vmax.f32 %v2430, %v2362
        %v2432 = vmax.f32 %v2431, %v2366
        %v2433 = vmax.f32 %v2432, %v2370
        %v2434 = vmax.f32 %v2433, %v2374
        %v2435 = vmax.f32 %v2389, -1e+30
        %v2436 = vmax.f32 %v2404, -1e+30
        %v2437 = vmax.f32 %v2419, -1e+30
        %v2438 = vmax.f32 %v2434, -1e+30
        %v2439 = vcvt.s32.f32 %v1795
        %v2440 = vcvt.s32.f32 %v1796
        %2441 = vmatprep.subr.mxu0 0.0
        %2442 = vmatpush1.xpose.msra.mxu0 %v2435
        %2443 = vmatprep.subr.mxu0 0.0
        %2444 = vmatpush1.xpose.msra.mxu0 %v2436
        %2445 = vmatprep.subr.mxu0 0.0
        %2446 = vmatpush1.xpose.msra.mxu0 %v2437
        %2447 = vmatprep.subr.mxu0 0.0
        %2448 = vmatpush1.xpose.msra.mxu0 %v2438
        %2449 = vmatprep.subr.mxu0 0.0
        %2450 = vmatpush1.xpose.msra.mxu0 0.0
        %2451 = vmatprep.subr.mxu0 0.0
        %2452 = vmatpush1.xpose.msra.mxu0 0.0
        %2453 = vmatprep.subr.mxu0 0.0
        %2454 = vmatpush1.xpose.msra.mxu0 0.0
        %2455 = vmatprep.subr.mxu0 0.0
        %2456 = vmatpush1.xpose.msra.mxu0 0.0
        %2457 = vmatprep.subr.mxu0 0.0
        %2458 = vmatpush1.xpose.msra.mxu0 0.0
        %2459 = vmatprep.subr.mxu0 0.0
        %2460 = vmatpush1.xpose.msra.mxu0 0.0
        %2461 = vmatprep.subr.mxu0 0.0
        %2462 = vmatpush1.xpose.msra.mxu0 0.0
        %2463 = vmatprep.subr.mxu0 0.0
        %2464 = vmatpush1.xpose.msra.mxu0 0.0
        %2465 = vmatprep.subr.mxu0 0.0
        %2466 = vmatpush1.xpose.msra.mxu0 0.0
        %2467 = vmatprep.subr.mxu0 0.0
        %2468 = vmatpush1.xpose.msra.mxu0 0.0
        %2469 = vmatprep.subr.mxu0 0.0
        %2470 = vmatpush1.xpose.msra.mxu0 0.0
        %2471 = vmatprep.subr.mxu0 0.0
        %2472 = vmatpush1.xpose.msra.mxu0 0.0
        %2473 = vmatprep.subr.mxu0 0.0
        %2474 = vmatpush1.xpose.msra.mxu0 0.0
        %2475 = vmatprep.subr.mxu0 0.0
        %2476 = vmatpush1.xpose.msra.mxu0 0.0
        %2477 = vmatprep.subr.mxu0 0.0
        %2478 = vmatpush1.xpose.msra.mxu0 0.0
        %2479 = vmatprep.subr.mxu0 0.0
        %2480 = vmatpush1.xpose.msra.mxu0 0.0
        %2481 = vmatprep.subr.mxu0 0.0
        %2482 = vmatpush1.xpose.msra.mxu0 0.0
        %2483 = vmatprep.subr.mxu0 0.0
        %2484 = vmatpush1.xpose.msra.mxu0 0.0
        %2485 = vmatprep.subr.mxu0 0.0
        %2486 = vmatpush1.xpose.msra.mxu0 0.0
        %2487 = vmatprep.subr.mxu0 0.0
        %2488 = vmatpush1.xpose.msra.mxu0 0.0
        %2489 = vmatprep.subr.mxu0 0.0
        %2490 = vmatpush1.xpose.msra.mxu0 0.0
        %2491 = vmatprep.subr.mxu0 0.0
        %2492 = vmatpush1.xpose.msra.mxu0 0.0
        %2493 = vmatprep.subr.mxu0 0.0
        %2494 = vmatpush1.xpose.msra.mxu0 0.0
        %2495 = vmatprep.subr.mxu0 0.0
        %2496 = vmatpush1.xpose.msra.mxu0 0.0
        %2497 = vmatprep.subr.mxu0 0.0
        %2498 = vmatpush1.xpose.msra.mxu0 0.0
        %2499 = vmatprep.subr.mxu0 0.0
        %2500 = vmatpush1.xpose.msra.mxu0 0.0
        %2501 = vmatprep.subr.mxu0 0.0
        %2502 = vmatpush1.xpose.msra.mxu0 0.0
        %2503 = vmatprep.subr.mxu0 0.0
        %2504 = vmatpush1.xpose.msra.mxu0 0.0
        %2505 = vmatprep.mubr.f32.mxu0 0.0
        %2506 = vmatmul.mubr.f32.gmra.mrb[0].mxu0 %v2439
        %v2507 = vpop.f32.mrb[0].mxu0
        %v2508 = vadd.f32 0.0, %v2507
        %v2509 = vpop.f32.mrb[0].mxu0
        %2510 = vmatprep.mubr.f32.mxu0 0.0
        %2511 = vmatmul.mubr.f32.gmra.mrb[0].mxu0 %v2440
        %v2512 = vpop.f32.mrb[0].mxu0
        %v2513 = vadd.f32 0.0, %v2512
        %v2514 = vpop.f32.mrb[0].mxu0
        %2515 = vdwg.mxu0
        %v2516 = vld [vmem:[#allocation4] sm:$0xff]
        %v2517 = vld [vmem:[#allocation4 + $0x8] sm:$0xff]
        %v2518 = vadd.f32 %v2516, %v2508
        %v2519 = vadd.f32 %v2517, %v2513
        %2520 = vst.msk [vmem:[#allocation4] sm:$0xff] %vm569, %v2518
        %2521 = vst.msk [vmem:[#allocation4 + $0x8] sm:$0xff] %vm569, %v2519
        %v2522 = vld [vmem:[#allocation4] sm:$0xff]
        %v2523 = vld [vmem:[#allocation4 + $0x8] sm:$0xff]
        %2526 = vrot.lane.b32.xlu0 %v2522, 32
        %v2527 = vpop.permute.xlu0 %2526
        %2528 = vrot.lane.b32.xlu0 %v2523, 32
        %v2529 = vpop.permute.xlu0 %2528
        %v2532 = vsel %vm569, %v1771, %v2527
        %v2533 = vsel %vm569, %v1776, %v2529
        %v2534 = vmax.f32 %v2532, 0.0
        %v2535 = vmax.f32 %v2533, 0.0
        %s2536 = scalar_lea.vmem %s3, 128
        %v2537 = vld [vmem:[%s2536] sm:$0xff]
        %v2538 = vld [vmem:[%s2536 + $0x8] sm:$0xff]
        %v2539 = vld [vmem:[%s2536 + $0x10] sm:$0xff]
        %v2540 = vld [vmem:[%s2536 + $0x18] sm:$0xff]
        %v2541 = vld [vmem:[%s2536 + $0x20] sm:$0xff]
        %v2542 = vld [vmem:[%s2536 + $0x28] sm:$0xff]
        %v2543 = vld [vmem:[%s2536 + $0x30] sm:$0xff]
        %v2544 = vld [vmem:[%s2536 + $0x38] sm:$0xff]
        %v2545 = vld [vmem:[%s4 + $0x2] sm:$0x1]
        %v2546 = vlaneseq
        %v2547 = vshrl.u32 %v2546, 7
        %v2548 = vsub.s32 0, %v2547
        %v2549 = vrot.slane %v2545, %v2548
        %v2551 = vsel %vm476, %v2534, 0
        %v2554 = vsel %vm476, %v2535, 0
        %2556 = vmatprep.subr.mxu0 0.0
        %2557 = vmatpush1.msra.mxu0 %v2537
        %2558 = vmatprep.subr.mxu0 0.0
        %2559 = vmatpush1.msra.mxu0 %v2538
        %2560 = vmatprep.subr.mxu0 0.0
        %2561 = vmatpush1.msra.mxu0 %v2539
        %2562 = vmatprep.subr.mxu0 0.0
        %2563 = vmatpush1.msra.mxu0 %v2540
        %2564 = vmatprep.subr.mxu0 0.0
        %2565 = vmatpush1.msra.mxu0 %v2541
        %2566 = vmatprep.subr.mxu0 0.0
        %2567 = vmatpush1.msra.mxu0 %v2542
        %2568 = vmatprep.subr.mxu0 0.0
        %2569 = vmatpush1.msra.mxu0 %v2543
        %2570 = vmatprep.subr.mxu0 0.0
        %2571 = vmatpush1.msra.mxu0 %v2544
        %2572 = vmatprep.subr.mxu0 0.0
        %2573 = vmatpush1.msra.mxu0 0.0
        %2574 = vmatprep.subr.mxu0 0.0
        %2575 = vmatpush1.msra.mxu0 0.0
        %2576 = vmatprep.subr.mxu0 0.0
        %2577 = vmatpush1.msra.mxu0 0.0
        %2578 = vmatprep.subr.mxu0 0.0
        %2579 = vmatpush1.msra.mxu0 0.0
        %2580 = vmatprep.subr.mxu0 0.0
        %2581 = vmatpush1.msra.mxu0 0.0
        %2582 = vmatprep.subr.mxu0 0.0
        %2583 = vmatpush1.msra.mxu0 0.0
        %2584 = vmatprep.subr.mxu0 0.0
        %2585 = vmatpush1.msra.mxu0 0.0
        %2586 = vmatprep.subr.mxu0 0.0
        %2587 = vmatpush1.msra.mxu0 0.0
        %2588 = vmatprep.subr.mxu0 0.0
        %2589 = vmatpush1.msra.mxu0 0.0
        %2590 = vmatprep.subr.mxu0 0.0
        %2591 = vmatpush1.msra.mxu0 0.0
        %2592 = vmatprep.subr.mxu0 0.0
        %2593 = vmatpush1.msra.mxu0 0.0
        %2594 = vmatprep.subr.mxu0 0.0
        %2595 = vmatpush1.msra.mxu0 0.0
        %2596 = vmatprep.subr.mxu0 0.0
        %2597 = vmatpush1.msra.mxu0 0.0
        %2598 = vmatprep.subr.mxu0 0.0
        %2599 = vmatpush1.msra.mxu0 0.0
        %2600 = vmatprep.subr.mxu0 0.0
        %2601 = vmatpush1.msra.mxu0 0.0
        %2602 = vmatprep.subr.mxu0 0.0
        %2603 = vmatpush1.msra.mxu0 0.0
        %2604 = vmatprep.subr.mxu0 0.0
        %2605 = vmatpush1.msra.mxu0 0.0
        %2606 = vmatprep.subr.mxu0 0.0
        %2607 = vmatpush1.msra.mxu0 0.0
        %2608 = vmatprep.subr.mxu0 0.0
        %2609 = vmatpush1.msra.mxu0 0.0
        %2610 = vmatprep.subr.mxu0 0.0
        %2611 = vmatpush1.msra.mxu0 0.0
        %2612 = vmatprep.subr.mxu0 0.0
        %2613 = vmatpush1.msra.mxu0 0.0
        %2614 = vmatprep.subr.mxu0 0.0
        %2615 = vmatpush1.msra.mxu0 0.0
        %2616 = vmatprep.subr.mxu0 0.0
        %2617 = vmatpush1.msra.mxu0 0.0
        %2618 = vmatprep.subr.mxu0 0.0
        %2619 = vmatpush1.msra.mxu0 0.0
        %2620 = vmatprep.mubr.f32.mxu0 0.0
        %2621 = vmatmul.mubr.f32.gmra.mrb[0].mxu0 %v2551
        %v2622 = vpop.f32.mrb[0].mxu0
        %v2623 = vadd.f32 %v2549, %v2622
        %v2624 = vpop.f32.mrb[0].mxu0
        %2625 = vmatprep.mubr.f32.mxu0 0.0
        %2626 = vmatmul.mubr.f32.gmra.mrb[0].mxu0 %v2554
        %v2627 = vpop.f32.mrb[0].mxu0
        %v2628 = vadd.f32 %v2549, %v2627
        %v2629 = vpop.f32.mrb[0].mxu0
        %2630 = vdwg.mxu0
        %v2631 = vmax.f32 %v2623, 0.0
        %v2632 = vmax.f32 %v2628, 0.0
        %s2633 = scalar_lea.vmem %s5, 64
        %v2634 = vld [vmem:[%s2633] sm:$0xff]
        %v2635 = vld [vmem:[%s2633 + $0x8] sm:$0xff]
        %v2636 = vld [vmem:[%s2633 + $0x10] sm:$0xff]
        %v2637 = vld [vmem:[%s2633 + $0x18] sm:$0xff]
        %v2638 = vld [vmem:[%s6 + $0x2] sm:$0x1]
        %v2639 = vlaneseq
        %v2640 = vshrl.u32 %v2639, 7
        %v2641 = vsub.s32 0, %v2640
        %v2642 = vrot.slane %v2638, %v2641
        %v2644 = vsel %vm569, %v2631, 0
        %v2647 = vsel %vm569, %v2632, 0
        %2649 = vmatprep.subr.mxu0 0.0
        %2650 = vmatpush1.msra.mxu0 %v2634
        %2651 = vmatprep.subr.mxu0 0.0
        %2652 = vmatpush1.msra.mxu0 %v2635
        %2653 = vmatprep.subr.mxu0 0.0
        %2654 = vmatpush1.msra.mxu0 %v2636
        %2655 = vmatprep.subr.mxu0 0.0
        %2656 = vmatpush1.msra.mxu0 %v2637
        %2657 = vmatprep.subr.mxu0 0.0
        %2658 = vmatpush1.msra.mxu0 0.0
        %2659 = vmatprep.subr.mxu0 0.0
        %2660 = vmatpush1.msra.mxu0 0.0
        %2661 = vmatprep.subr.mxu0 0.0
        %2662 = vmatpush1.msra.mxu0 0.0
        %2663 = vmatprep.subr.mxu0 0.0
        %2664 = vmatpush1.msra.mxu0 0.0
        %2665 = vmatprep.subr.mxu0 0.0
        %2666 = vmatpush1.msra.mxu0 0.0
        %2667 = vmatprep.subr.mxu0 0.0
        %2668 = vmatpush1.msra.mxu0 0.0
        %2669 = vmatprep.subr.mxu0 0.0
        %2670 = vmatpush1.msra.mxu0 0.0
        %2671 = vmatprep.subr.mxu0 0.0
        %2672 = vmatpush1.msra.mxu0 0.0
        %2673 = vmatprep.subr.mxu0 0.0
        %2674 = vmatpush1.msra.mxu0 0.0
        %2675 = vmatprep.subr.mxu0 0.0
        %2676 = vmatpush1.msra.mxu0 0.0
        %2677 = vmatprep.subr.mxu0 0.0
        %2678 = vmatpush1.msra.mxu0 0.0
        %2679 = vmatprep.subr.mxu0 0.0
        %2680 = vmatpush1.msra.mxu0 0.0
        %2681 = vmatprep.subr.mxu0 0.0
        %2682 = vmatpush1.msra.mxu0 0.0
        %2683 = vmatprep.subr.mxu0 0.0
        %2684 = vmatpush1.msra.mxu0 0.0
        %2685 = vmatprep.subr.mxu0 0.0
        %2686 = vmatpush1.msra.mxu0 0.0
        %2687 = vmatprep.subr.mxu0 0.0
        %2688 = vmatpush1.msra.mxu0 0.0
        %2689 = vmatprep.subr.mxu0 0.0
        %2690 = vmatpush1.msra.mxu0 0.0
        %2691 = vmatprep.subr.mxu0 0.0
        %2692 = vmatpush1.msra.mxu0 0.0
        %2693 = vmatprep.subr.mxu0 0.0
        %2694 = vmatpush1.msra.mxu0 0.0
        %2695 = vmatprep.subr.mxu0 0.0
        %2696 = vmatpush1.msra.mxu0 0.0
        %2697 = vmatprep.subr.mxu0 0.0
        %2698 = vmatpush1.msra.mxu0 0.0
        %2699 = vmatprep.subr.mxu0 0.0
        %2700 = vmatpush1.msra.mxu0 0.0
        %2701 = vmatprep.subr.mxu0 0.0
        %2702 = vmatpush1.msra.mxu0 0.0
        %2703 = vmatprep.subr.mxu0 0.0
        %2704 = vmatpush1.msra.mxu0 0.0
        %2705 = vmatprep.subr.mxu0 0.0
        %2706 = vmatpush1.msra.mxu0 0.0
        %2707 = vmatprep.subr.mxu0 0.0
        %2708 = vmatpush1.msra.mxu0 0.0
        %2709 = vmatprep.subr.mxu0 0.0
        %2710 = vmatpush1.msra.mxu0 0.0
        %2711 = vmatprep.subr.mxu0 0.0
        %2712 = vmatpush1.msra.mxu0 0.0
        %2713 = vmatprep.mubr.f32.mxu0 0.0
        %2714 = vmatmul.mubr.f32.gmra.mrb[0].mxu0 %v2644
        %v2715 = vpop.f32.mrb[0].mxu0
        %v2716 = vadd.f32 %v2642, %v2715
        %v2717 = vpop.f32.mrb[0].mxu0
        %2718 = vmatprep.mubr.f32.mxu0 0.0
        %2719 = vmatmul.mubr.f32.gmra.mrb[0].mxu0 %v2647
        %v2720 = vpop.f32.mrb[0].mxu0
        %v2721 = vadd.f32 %v2642, %v2720
        %v2722 = vpop.f32.mrb[0].mxu0
        %2723 = vdwg.mxu0
        %s2724 = scalar_lea.vmem %s7, 128
        %v2725 = vld [vmem:[%s2724] sm:$0xff]
        %v2726 = vld [vmem:[%s2724 + $0x8] sm:$0xff]
        %v2727 = vld [vmem:[%s2724 + $0x10] sm:$0xff]
        %v2728 = vld [vmem:[%s2724 + $0x18] sm:$0xff]
        %v2729 = vld [vmem:[%s2724 + $0x20] sm:$0xff]
        %v2730 = vld [vmem:[%s2724 + $0x28] sm:$0xff]
        %v2731 = vld [vmem:[%s2724 + $0x30] sm:$0xff]
        %v2732 = vld [vmem:[%s2724 + $0x38] sm:$0xff]
        %v2734 = vsel %vm476, %v2532, 0
        %v2737 = vsel %vm476, %v2533, 0
        %2739 = vmatprep.subr.mxu0 0.0
        %2740 = vmatpush1.msra.mxu0 %v2725
        %2741 = vmatprep.subr.mxu0 0.0
        %2742 = vmatpush1.msra.mxu0 %v2726
        %2743 = vmatprep.subr.mxu0 0.0
        %2744 = vmatpush1.msra.mxu0 %v2727
        %2745 = vmatprep.subr.mxu0 0.0
        %2746 = vmatpush1.msra.mxu0 %v2728
        %2747 = vmatprep.subr.mxu0 0.0
        %2748 = vmatpush1.msra.mxu0 %v2729
        %2749 = vmatprep.subr.mxu0 0.0
        %2750 = vmatpush1.msra.mxu0 %v2730
        %2751 = vmatprep.subr.mxu0 0.0
        %2752 = vmatpush1.msra.mxu0 %v2731
        %2753 = vmatprep.subr.mxu0 0.0
        %2754 = vmatpush1.msra.mxu0 %v2732
        %2755 = vmatprep.subr.mxu0 0.0
        %2756 = vmatpush1.msra.mxu0 0.0
        %2757 = vmatprep.subr.mxu0 0.0
        %2758 = vmatpush1.msra.mxu0 0.0
        %2759 = vmatprep.subr.mxu0 0.0
        %2760 = vmatpush1.msra.mxu0 0.0
        %2761 = vmatprep.subr.mxu0 0.0
        %2762 = vmatpush1.msra.mxu0 0.0
        %2763 = vmatprep.subr.mxu0 0.0
        %2764 = vmatpush1.msra.mxu0 0.0
        %2765 = vmatprep.subr.mxu0 0.0
        %2766 = vmatpush1.msra.mxu0 0.0
        %2767 = vmatprep.subr.mxu0 0.0
        %2768 = vmatpush1.msra.mxu0 0.0
        %2769 = vmatprep.subr.mxu0 0.0
        %2770 = vmatpush1.msra.mxu0 0.0
        %2771 = vmatprep.subr.mxu0 0.0
        %2772 = vmatpush1.msra.mxu0 0.0
        %2773 = vmatprep.subr.mxu0 0.0
        %2774 = vmatpush1.msra.mxu0 0.0
        %2775 = vmatprep.subr.mxu0 0.0
        %2776 = vmatpush1.msra.mxu0 0.0
        %2777 = vmatprep.subr.mxu0 0.0
        %2778 = vmatpush1.msra.mxu0 0.0
        %2779 = vmatprep.subr.mxu0 0.0
        %2780 = vmatpush1.msra.mxu0 0.0
        %2781 = vmatprep.subr.mxu0 0.0
        %2782 = vmatpush1.msra.mxu0 0.0
        %2783 = vmatprep.subr.mxu0 0.0
        %2784 = vmatpush1.msra.mxu0 0.0
        %2785 = vmatprep.subr.mxu0 0.0
        %2786 = vmatpush1.msra.mxu0 0.0
        %2787 = vmatprep.subr.mxu0 0.0
        %2788 = vmatpush1.msra.mxu0 0.0
        %2789 = vmatprep.subr.mxu0 0.0
        %2790 = vmatpush1.msra.mxu0 0.0
        %2791 = vmatprep.subr.mxu0 0.0
        %2792 = vmatpush1.msra.mxu0 0.0
        %2793 = vmatprep.subr.mxu0 0.0
        %2794 = vmatpush1.msra.mxu0 0.0
        %2795 = vmatprep.subr.mxu0 0.0
        %2796 = vmatpush1.msra.mxu0 0.0
        %2797 = vmatprep.subr.mxu0 0.0
        %2798 = vmatpush1.msra.mxu0 0.0
        %2799 = vmatprep.subr.mxu0 0.0
        %2800 = vmatpush1.msra.mxu0 0.0
        %2801 = vmatprep.subr.mxu0 0.0
        %2802 = vmatpush1.msra.mxu0 0.0
        %2803 = vmatprep.mubr.f32.mxu0 0.0
        %2804 = vmatmul.mubr.f32.gmra.mrb[0].mxu0 %v2734
        %v2805 = vpop.f32.mrb[0].mxu0
        %v2806 = vadd.f32 %v2716, %v2805
        %v2807 = vpop.f32.mrb[0].mxu0
        %2808 = vmatprep.mubr.f32.mxu0 0.0
        %2809 = vmatmul.mubr.f32.gmra.mrb[0].mxu0 %v2737
        %v2810 = vpop.f32.mrb[0].mxu0
        %v2811 = vadd.f32 %v2721, %v2810
        %v2812 = vpop.f32.mrb[0].mxu0
        %2813 = vdwg.mxu0
        %v2814 = vld [vmem:[%s8] sm:$0xff]
        %v2815 = vld [vmem:[%s8 + $0x8] sm:$0xff]
        %v2816 = vld [vmem:[%s8 + $0x10] sm:$0xff]
        %v2817 = vld [vmem:[%s8 + $0x18] sm:$0xff]
        %v2818 = vld [vmem:[%s9] sm:$0x1]
        %v2820 = vlaneseq
        %v2821 = vshrl.u32 %v2820, 7
        %v2822 = vsub.s32 0, %v2821
        %v2823 = vrot.slane %v2818, %v2822
        %v2826 = vsel %vm569, %v2806, 0
        %v2829 = vsel %vm569, %v2811, 0
        %2831 = vmatprep.subr.mxu0 0.0
        %2832 = vmatpush1.msra.mxu0 %v2814
        %2833 = vmatprep.subr.mxu0 0.0
        %2834 = vmatpush1.msra.mxu0 %v2815
        %2835 = vmatprep.subr.mxu0 0.0
        %2836 = vmatpush1.msra.mxu0 %v2816
        %2837 = vmatprep.subr.mxu0 0.0
        %2838 = vmatpush1.msra.mxu0 %v2817
        %2839 = vmatprep.subr.mxu0 0.0
        %2840 = vmatpush1.msra.mxu0 0.0
        %2841 = vmatprep.subr.mxu0 0.0
        %2842 = vmatpush1.msra.mxu0 0.0
        %2843 = vmatprep.subr.mxu0 0.0
        %2844 = vmatpush1.msra.mxu0 0.0
        %2845 = vmatprep.subr.mxu0 0.0
        %2846 = vmatpush1.msra.mxu0 0.0
        %2847 = vmatprep.subr.mxu0 0.0
        %2848 = vmatpush1.msra.mxu0 0.0
        %2849 = vmatprep.subr.mxu0 0.0
        %2850 = vmatpush1.msra.mxu0 0.0
        %2851 = vmatprep.subr.mxu0 0.0
        %2852 = vmatpush1.msra.mxu0 0.0
        %2853 = vmatprep.subr.mxu0 0.0
        %2854 = vmatpush1.msra.mxu0 0.0
        %2855 = vmatprep.subr.mxu0 0.0
        %2856 = vmatpush1.msra.mxu0 0.0
        %2857 = vmatprep.subr.mxu0 0.0
        %2858 = vmatpush1.msra.mxu0 0.0
        %2859 = vmatprep.subr.mxu0 0.0
        %2860 = vmatpush1.msra.mxu0 0.0
        %2861 = vmatprep.subr.mxu0 0.0
        %2862 = vmatpush1.msra.mxu0 0.0
        %2863 = vmatprep.subr.mxu0 0.0
        %2864 = vmatpush1.msra.mxu0 0.0
        %2865 = vmatprep.subr.mxu0 0.0
        %2866 = vmatpush1.msra.mxu0 0.0
        %2867 = vmatprep.subr.mxu0 0.0
        %2868 = vmatpush1.msra.mxu0 0.0
        %2869 = vmatprep.subr.mxu0 0.0
        %2870 = vmatpush1.msra.mxu0 0.0
        %2871 = vmatprep.subr.mxu0 0.0
        %2872 = vmatpush1.msra.mxu0 0.0
        %2873 = vmatprep.subr.mxu0 0.0
        %2874 = vmatpush1.msra.mxu0 0.0
        %2875 = vmatprep.subr.mxu0 0.0
        %2876 = vmatpush1.msra.mxu0 0.0
        %2877 = vmatprep.subr.mxu0 0.0
        %2878 = vmatpush1.msra.mxu0 0.0
        %2879 = vmatprep.subr.mxu0 0.0
        %2880 = vmatpush1.msra.mxu0 0.0
        %2881 = vmatprep.subr.mxu0 0.0
        %2882 = vmatpush1.msra.mxu0 0.0
        %2883 = vmatprep.subr.mxu0 0.0
        %2884 = vmatpush1.msra.mxu0 0.0
        %2885 = vmatprep.subr.mxu0 0.0
        %2886 = vmatpush1.msra.mxu0 0.0
        %2887 = vmatprep.subr.mxu0 0.0
        %2888 = vmatpush1.msra.mxu0 0.0
        %2889 = vmatprep.subr.mxu0 0.0
        %2890 = vmatpush1.msra.mxu0 0.0
        %2891 = vmatprep.subr.mxu0 0.0
        %2892 = vmatpush1.msra.mxu0 0.0
        %2893 = vmatprep.subr.mxu0 0.0
        %2894 = vmatpush1.msra.mxu0 0.0
        %2895 = vmatprep.mubr.f32.mxu0 0.0
        %2896 = vmatmul.mubr.f32.gmra.mrb[0].mxu0 %v2826
        %v2897 = vpop.f32.mrb[0].mxu0
        %v2898 = vadd.f32 %v2823, %v2897
        %v2899 = vpop.f32.mrb[0].mxu0
        %2900 = vmatprep.mubr.f32.mxu0 0.0
        %2901 = vmatmul.mubr.f32.gmra.mrb[0].mxu0 %v2829
        %v2902 = vpop.f32.mrb[0].mxu0
        %v2903 = vadd.f32 %v2823, %v2902
        %v2904 = vpop.f32.mrb[0].mxu0
        %2905 = vdwg.mxu0
        %vm2906 = vcmask 64512
        %2907 = vst.msk [vmem:[#allocation5] sm:$0xff] %vm2906, %v2898
        %2908 = vst.msk [vmem:[#allocation5 + $0x8] sm:$0xff] %vm2906, %v2903
        %v2909 = vld [vmem:[#allocation2] sm:$0xff]
        %v2910 = vld [vmem:[#allocation2 + $0x8] sm:$0xff]
        %v2911 = vld [vmem:[#allocation5] sm:$0xff]
        %v2912 = vld [vmem:[#allocation5 + $0x8] sm:$0xff]
        %2913 = vset.pattern.permute.xlu0 0
        %2914 = vperm.xlu0 %2913, %v2909
        %v2915 = vpop.permute.xlu0 %2914
        %2916 = vset.pattern.permute.xlu0 0
        %2917 = vperm.xlu0 %2916, %v2910
        %v2918 = vpop.permute.xlu0 %2917
        %vm2919 = vcmp.eq.s32.totalorder %v2915, %v747
        %vm2920 = vcmp.eq.s32.totalorder %v2918, %v747
        %v2921 = vsel %vm2919, 1, 0
        %v2922 = vsel %vm2920, 1, 0
        %v2923 = vcombine.high %v2921, %v2921
        %v2925 = vunpack.c.l.s4 1966171168
        %v2926 = vunpack.c.0.s8 %v2925
        %v2927 = vlaneseq
        %v2928 = vshrl.u32 %v2927, 7
        %v2929 = vsub.s32 %v2926, %v2928
        %v2930 = vrot.slane %v2921, %v2929
        %v2932 = vunpack.c.l.s4 1966171168
        %v2933 = vunpack.c.0.s8 %v2932
        %v2934 = vlaneseq
        %v2935 = vshrl.u32 %v2934, 7
        %v2936 = vsub.s32 %v2933, %v2935
        %v2937 = vrot.slane %v2923, %v2936
        %v2938 = vcombine.high %v2930, %v2930
        %v2939 = vcombine.high %v2937, %v2937
        %v2941 = vunpack.c.l.s4 1966171168
        %v2942 = vunpack.c.0.s8 %v2941
        %v2943 = vlaneseq
        %v2944 = vshrl.u32 %v2943, 7
        %v2945 = vsub.s32 %v2942, %v2944
        %v2946 = vrot.slane %v2930, %v2945
        %v2948 = vunpack.c.l.s4 1966171168
        %v2949 = vunpack.c.0.s8 %v2948
        %v2950 = vlaneseq
        %v2951 = vshrl.u32 %v2950, 7
        %v2952 = vsub.s32 %v2949, %v2951
        %v2953 = vrot.slane %v2937, %v2952
        %v2955 = vunpack.c.l.s4 1966171168
        %v2956 = vunpack.c.0.s8 %v2955
        %v2957 = vlaneseq
        %v2958 = vshrl.u32 %v2957, 7
        %v2959 = vsub.s32 %v2956, %v2958
        %v2960 = vrot.slane %v2938, %v2959
        %v2962 = vunpack.c.l.s4 1966171168
        %v2963 = vunpack.c.0.s8 %v2962
        %v2964 = vlaneseq
        %v2965 = vshrl.u32 %v2964, 7
        %v2966 = vsub.s32 %v2963, %v2965
        %v2967 = vrot.slane %v2939, %v2966
        %v2968 = vcombine.high %v2946, %v2946
        %v2969 = vcombine.high %v2953, %v2953
        %v2970 = vcombine.high %v2960, %v2960
        %v2971 = vcombine.high %v2967, %v2967
        %v2972 = vcombine.high %v2922, %v2922
        %v2974 = vunpack.c.l.s4 1966171168
        %v2975 = vunpack.c.0.s8 %v2974
        %v2976 = vlaneseq
        %v2977 = vshrl.u32 %v2976, 7
        %v2978 = vsub.s32 %v2975, %v2977
        %v2979 = vrot.slane %v2922, %v2978
        %v2981 = vunpack.c.l.s4 1966171168
        %v2982 = vunpack.c.0.s8 %v2981
        %v2983 = vlaneseq
        %v2984 = vshrl.u32 %v2983, 7
        %v2985 = vsub.s32 %v2982, %v2984
        %v2986 = vrot.slane %v2972, %v2985
        %v2987 = vcombine.high %v2979, %v2979
        %v2988 = vcombine.high %v2986, %v2986
        %v2990 = vunpack.c.l.s4 1966171168
        %v2991 = vunpack.c.0.s8 %v2990
        %v2992 = vlaneseq
        %v2993 = vshrl.u32 %v2992, 7
        %v2994 = vsub.s32 %v2991, %v2993
        %v2995 = vrot.slane %v2979, %v2994
        %v2997 = vunpack.c.l.s4 1966171168
        %v2998 = vunpack.c.0.s8 %v2997
        %v2999 = vlaneseq
        %v3000 = vshrl.u32 %v2999, 7
        %v3001 = vsub.s32 %v2998, %v3000
        %v3002 = vrot.slane %v2986, %v3001
        %v3004 = vunpack.c.l.s4 1966171168
        %v3005 = vunpack.c.0.s8 %v3004
        %v3006 = vlaneseq
        %v3007 = vshrl.u32 %v3006, 7
        %v3008 = vsub.s32 %v3005, %v3007
        %v3009 = vrot.slane %v2987, %v3008
        %v3011 = vunpack.c.l.s4 1966171168
        %v3012 = vunpack.c.0.s8 %v3011
        %v3013 = vlaneseq
        %v3014 = vshrl.u32 %v3013, 7
        %v3015 = vsub.s32 %v3012, %v3014
        %v3016 = vrot.slane %v2988, %v3015
        %v3017 = vcombine.high %v2995, %v2995
        %v3018 = vcombine.high %v3002, %v3002
        %v3019 = vcombine.high %v3009, %v3009
        %v3020 = vcombine.high %v3016, %v3016
        %vm3021 = vcmp.ne.s32.totalorder %v2946, 0
        %vm3022 = vcmp.ne.s32.totalorder %v2960, 0
        %vm3023 = vcmp.ne.s32.totalorder %v2968, 0
        %vm3024 = vcmp.ne.s32.totalorder %v2970, 0
        %vm3025 = vcmp.ne.s32.totalorder %v2953, 0
        %vm3026 = vcmp.ne.s32.totalorder %v2967, 0
        %vm3027 = vcmp.ne.s32.totalorder %v2969, 0
        %vm3028 = vcmp.ne.s32.totalorder %v2971, 0
        %vm3029 = vcmp.ne.s32.totalorder %v2995, 0
        %vm3030 = vcmp.ne.s32.totalorder %v3009, 0
        %vm3031 = vcmp.ne.s32.totalorder %v3017, 0
        %vm3032 = vcmp.ne.s32.totalorder %v3019, 0
        %vm3033 = vcmp.ne.s32.totalorder %v3002, 0
        %vm3034 = vcmp.ne.s32.totalorder %v3016, 0
        %vm3035 = vcmp.ne.s32.totalorder %v3018, 0
        %vm3036 = vcmp.ne.s32.totalorder %v3020, 0
        %v3037 = vlaneseq
        %v3038 = vshrl.u32 %v3037, 7
        %v3039 = vsub.s32 0, %v3038
        %v3040 = vrot.slane %v2911, %v3039
        %3042 = vbcast.lane.b32.xlu0 %v3040, 256
        %v3043 = vpop.permute.xlu0 %3042
        %v3044 = vlaneseq
        %v3045 = vshrl.u32 %v3044, 7
        %v3046 = vsub.s32 1, %v3045
        %v3047 = vrot.slane %v2911, %v3046
        %3049 = vbcast.lane.b32.xlu0 %v3047, 256
        %v3050 = vpop.permute.xlu0 %3049
        %v3051 = vlaneseq
        %v3052 = vshrl.u32 %v3051, 7
        %v3053 = vsub.s32 2, %v3052
        %v3054 = vrot.slane %v2911, %v3053
        %3056 = vbcast.lane.b32.xlu0 %v3054, 256
        %v3057 = vpop.permute.xlu0 %3056
        %v3058 = vlaneseq
        %v3059 = vshrl.u32 %v3058, 7
        %v3060 = vsub.s32 3, %v3059
        %v3061 = vrot.slane %v2911, %v3060
        %3063 = vbcast.lane.b32.xlu0 %v3061, 256
        %v3064 = vpop.permute.xlu0 %3063
        %v3065 = vlaneseq
        %v3066 = vshrl.u32 %v3065, 7
        %v3067 = vsub.s32 4, %v3066
        %v3068 = vrot.slane %v2911, %v3067
        %3070 = vbcast.lane.b32.xlu0 %v3068, 256
        %v3071 = vpop.permute.xlu0 %3070
        %v3072 = vlaneseq
        %v3073 = vshrl.u32 %v3072, 7
        %v3074 = vsub.s32 5, %v3073
        %v3075 = vrot.slane %v2911, %v3074
        %3077 = vbcast.lane.b32.xlu0 %v3075, 256
        %v3078 = vpop.permute.xlu0 %3077
        %v3079 = vlaneseq
        %v3080 = vshrl.u32 %v3079, 7
        %v3081 = vsub.s32 6, %v3080
        %v3082 = vrot.slane %v2911, %v3081
        %3084 = vbcast.lane.b32.xlu0 %v3082, 256
        %v3085 = vpop.permute.xlu0 %3084
        %v3086 = vlaneseq
        %v3087 = vshrl.u32 %v3086, 7
        %v3088 = vsub.s32 7, %v3087
        %v3089 = vrot.slane %v2911, %v3088
        %3091 = vbcast.lane.b32.xlu0 %v3089, 256
        %v3092 = vpop.permute.xlu0 %3091
        %v3093 = vlaneseq
        %v3094 = vshrl.u32 %v3093, 7
        %v3095 = vsub.s32 0, %v3094
        %v3096 = vrot.slane %v2912, %v3095
        %3098 = vbcast.lane.b32.xlu0 %v3096, 256
        %v3099 = vpop.permute.xlu0 %3098
        %v3100 = vlaneseq
        %v3101 = vshrl.u32 %v3100, 7
        %v3102 = vsub.s32 1, %v3101
        %v3103 = vrot.slane %v2912, %v3102
        %3105 = vbcast.lane.b32.xlu0 %v3103, 256
        %v3106 = vpop.permute.xlu0 %3105
        %v3107 = vlaneseq
        %v3108 = vshrl.u32 %v3107, 7
        %v3109 = vsub.s32 2, %v3108
        %v3110 = vrot.slane %v2912, %v3109
        %3112 = vbcast.lane.b32.xlu0 %v3110, 256
        %v3113 = vpop.permute.xlu0 %3112
        %v3114 = vlaneseq
        %v3115 = vshrl.u32 %v3114, 7
        %v3116 = vsub.s32 3, %v3115
        %v3117 = vrot.slane %v2912, %v3116
        %3119 = vbcast.lane.b32.xlu0 %v3117, 256
        %v3120 = vpop.permute.xlu0 %3119
        %v3121 = vlaneseq
        %v3122 = vshrl.u32 %v3121, 7
        %v3123 = vsub.s32 4, %v3122
        %v3124 = vrot.slane %v2912, %v3123
        %3126 = vbcast.lane.b32.xlu0 %v3124, 256
        %v3127 = vpop.permute.xlu0 %3126
        %v3128 = vlaneseq
        %v3129 = vshrl.u32 %v3128, 7
        %v3130 = vsub.s32 5, %v3129
        %v3131 = vrot.slane %v2912, %v3130
        %3133 = vbcast.lane.b32.xlu0 %v3131, 256
        %v3134 = vpop.permute.xlu0 %3133
        %v3135 = vlaneseq
        %v3136 = vshrl.u32 %v3135, 7
        %v3137 = vsub.s32 6, %v3136
        %v3138 = vrot.slane %v2912, %v3137
        %3140 = vbcast.lane.b32.xlu0 %v3138, 256
        %v3141 = vpop.permute.xlu0 %3140
        %v3142 = vlaneseq
        %v3143 = vshrl.u32 %v3142, 7
        %v3144 = vsub.s32 7, %v3143
        %v3145 = vrot.slane %v2912, %v3144
        %3147 = vbcast.lane.b32.xlu0 %v3145, 256
        %v3148 = vpop.permute.xlu0 %3147
        %v3149 = vsel %vm3021, 1, 0
        %v3150 = vsel %vm3022, 1, 0
        %v3151 = vsel %vm3023, 1, 0
        %v3152 = vsel %vm3024, 1, 0
        %v3153 = vsel %vm3025, 1, 0
        %v3154 = vsel %vm3026, 1, 0
        %v3155 = vsel %vm3027, 1, 0
        %v3156 = vsel %vm3028, 1, 0
        %v3157 = vsel %vm3029, 1, 0
        %v3158 = vsel %vm3030, 1, 0
        %v3159 = vsel %vm3031, 1, 0
        %v3160 = vsel %vm3032, 1, 0
        %v3161 = vsel %vm3033, 1, 0
        %v3162 = vsel %vm3034, 1, 0
        %v3163 = vsel %vm3035, 1, 0
        %v3164 = vsel %vm3036, 1, 0
        %v3165 = vlaneseq
        %v3166 = vshrl.u32 %v3165, 7
        %v3167 = vsub.s32 0, %v3166
        %v3168 = vrot.slane %v3149, %v3167
        %v3169 = vlaneseq
        %v3170 = vshrl.u32 %v3169, 7
        %v3171 = vsub.s32 0, %v3170
        %v3172 = vrot.slane %v3150, %v3171
        %v3173 = vlaneseq
        %v3174 = vshrl.u32 %v3173, 7
        %v3175 = vsub.s32 0, %v3174
        %v3176 = vrot.slane %v3151, %v3175
        %v3177 = vlaneseq
        %v3178 = vshrl.u32 %v3177, 7
        %v3179 = vsub.s32 0, %v3178
        %v3180 = vrot.slane %v3152, %v3179
        %v3181 = vlaneseq
        %v3182 = vshrl.u32 %v3181, 7
        %v3183 = vsub.s32 0, %v3182
        %v3184 = vrot.slane %v3153, %v3183
        %v3185 = vlaneseq
        %v3186 = vshrl.u32 %v3185, 7
        %v3187 = vsub.s32 0, %v3186
        %v3188 = vrot.slane %v3154, %v3187
        %v3189 = vlaneseq
        %v3190 = vshrl.u32 %v3189, 7
        %v3191 = vsub.s32 0, %v3190
        %v3192 = vrot.slane %v3155, %v3191
        %v3193 = vlaneseq
        %v3194 = vshrl.u32 %v3193, 7
        %v3195 = vsub.s32 0, %v3194
        %v3196 = vrot.slane %v3156, %v3195
        %v3197 = vlaneseq
        %v3198 = vshrl.u32 %v3197, 7
        %v3199 = vsub.s32 0, %v3198
        %v3200 = vrot.slane %v3157, %v3199
        %v3201 = vlaneseq
        %v3202 = vshrl.u32 %v3201, 7
        %v3203 = vsub.s32 0, %v3202
        %v3204 = vrot.slane %v3158, %v3203
        %v3205 = vlaneseq
        %v3206 = vshrl.u32 %v3205, 7
        %v3207 = vsub.s32 0, %v3206
        %v3208 = vrot.slane %v3159, %v3207
        %v3209 = vlaneseq
        %v3210 = vshrl.u32 %v3209, 7
        %v3211 = vsub.s32 0, %v3210
        %v3212 = vrot.slane %v3160, %v3211
        %v3213 = vlaneseq
        %v3214 = vshrl.u32 %v3213, 7
        %v3215 = vsub.s32 0, %v3214
        %v3216 = vrot.slane %v3161, %v3215
        %v3217 = vlaneseq
        %v3218 = vshrl.u32 %v3217, 7
        %v3219 = vsub.s32 0, %v3218
        %v3220 = vrot.slane %v3162, %v3219
        %v3221 = vlaneseq
        %v3222 = vshrl.u32 %v3221, 7
        %v3223 = vsub.s32 0, %v3222
        %v3224 = vrot.slane %v3163, %v3223
        %v3225 = vlaneseq
        %v3226 = vshrl.u32 %v3225, 7
        %v3227 = vsub.s32 0, %v3226
        %v3228 = vrot.slane %v3164, %v3227
        %vm3229 = vcmp.eq.s32.totalorder %v3168, 1
        %vm3230 = vcmp.eq.s32.totalorder %v3172, 1
        %vm3231 = vcmp.eq.s32.totalorder %v3176, 1
        %vm3232 = vcmp.eq.s32.totalorder %v3180, 1
        %vm3233 = vcmp.eq.s32.totalorder %v3184, 1
        %vm3234 = vcmp.eq.s32.totalorder %v3188, 1
        %vm3235 = vcmp.eq.s32.totalorder %v3192, 1
        %vm3236 = vcmp.eq.s32.totalorder %v3196, 1
        %vm3237 = vcmp.eq.s32.totalorder %v3200, 1
        %vm3238 = vcmp.eq.s32.totalorder %v3204, 1
        %vm3239 = vcmp.eq.s32.totalorder %v3208, 1
        %vm3240 = vcmp.eq.s32.totalorder %v3212, 1
        %vm3241 = vcmp.eq.s32.totalorder %v3216, 1
        %vm3242 = vcmp.eq.s32.totalorder %v3220, 1
        %vm3243 = vcmp.eq.s32.totalorder %v3224, 1
        %vm3244 = vcmp.eq.s32.totalorder %v3228, 1
        %v3245 = vsel %vm3229, %v3043, -1e+30
        %v3246 = vsel %vm3230, %v3050, -1e+30
        %v3247 = vsel %vm3231, %v3057, -1e+30
        %v3248 = vsel %vm3232, %v3064, -1e+30
        %v3249 = vsel %vm3233, %v3071, -1e+30
        %v3250 = vsel %vm3234, %v3078, -1e+30
        %v3251 = vsel %vm3235, %v3085, -1e+30
        %v3252 = vsel %vm3236, %v3092, -1e+30
        %v3253 = vsel %vm3237, %v3099, -1e+30
        %v3254 = vsel %vm3238, %v3106, -1e+30
        %v3255 = vsel %vm3239, %v3113, -1e+30
        %v3256 = vsel %vm3240, %v3120, -1e+30
        %v3257 = vsel %vm3241, %v3127, -1e+30
        %v3258 = vsel %vm3242, %v3134, -1e+30
        %v3259 = vsel %vm3243, %v3141, -1e+30
        %v3260 = vsel %vm3244, %v3148, -1e+30
        %v3261 = vmax.f32 %v3245, %v3249
        %v3262 = vmax.f32 %v3246, %v3250
        %v3263 = vmax.f32 %v3247, %v3251
        %v3264 = vmax.f32 %v3248, %v3252
        %v3265 = vmax.f32 %v3261, %v3253
        %v3266 = vmax.f32 %v3262, %v3254
        %v3267 = vmax.f32 %v3263, %v3255
        %v3268 = vmax.f32 %v3264, %v3256
        %v3269 = vmax.f32 %v3265, %v3257
        %v3270 = vmax.f32 %v3266, %v3258
        %v3271 = vmax.f32 %v3267, %v3259
        %v3272 = vmax.f32 %v3268, %v3260
        %v3273 = vmax.f32 %v3269, %v3270
        %v3274 = vmax.f32 %v3271, %v3272
        %v3275 = vmax.f32 %v3273, %v3274
        %v3276 = vmax.f32 %v3275, -1e+30
        %v3277 = vmax.f32 %v3276, 0.0
        %3278 = vst [vmem:[%s352] sm:$0xff] %v3277
        %s3279 = sand.u32 %s247, 1
        %s3280 = scalar_lea.sflag [#allocation7], %s3279
        %s3281 = sand.u32 %s247, 1
        %s3282 = smul.addr %s3281, 8
        %s3283 = scalar_lea.vmem [#allocation6], %s3282
        // Predicated region
        $region61: #{tpu_custom_call.1} parent=59 // pred_check
          %p3284 = pneg %p257
        $region62: #{tpu_custom_call.1} parent=59 // pred_check_branch
          %3286 = sbr.rel (%p3284) target = $region64
        $region63: #{tpu_custom_call.1} parent=59 // pred_region
          %s3288 = ssub.s32 128, 128
          %3289 = vsyncadd %s3280, %s3288
          %s3290 = smul.addr %s24, 128
          %s3291 = scalar_lea.hbm %s10, %s3290
          %s3293 = sshll.u32 %s3283, 4
          %s3294 = int_to_ptr.vmem [resolvable:$true] %s3293
          %3296 = dma.vmem_to_hbm [thread:$0]  %s3294, 128, %s3291, %s3280
        $region64: #{tpu_custom_call.1} parent=59 // pred_fallthru
          _
      $region60: #{tpu_custom_call.1} parent=5 // pred_fallthru
        _
      %p3297 = scmp.le.s32.totalorder 2, %s19
      // Predicated region
      $region65: #{tpu_custom_call.1} parent=5 // pred_check
        %p3298 = pneg %p3297
      $region66: #{tpu_custom_call.1} parent=5 // pred_check_branch
        %3300 = sbr.rel (%p3298) target = $region68
      $region67: #{tpu_custom_call.1} parent=5 // pred_region
        %s3301 = ssub.s32 %s19, 2
        // Predicated region
        $region69: #{tpu_custom_call.1} parent=67 // pred_check
          %p3302 = pneg %p263
        $region70: #{tpu_custom_call.1} parent=67 // pred_check_branch
          %3304 = sbr.rel (%p3302) target = $region72
        $region71: #{tpu_custom_call.1} parent=67 // pred_region
          %s3305 = sand.u32 %s248, 1
          %s3306 = scalar_lea.sflag [#allocation7], %s3305
          %s3307 = sand.u32 %s248, 1
          %s3308 = smul.addr %s3307, 8
          %s3309 = scalar_lea.vmem [#allocation6], %s3308
          %3310 = dma.done %s3306, 128
        $region72: #{tpu_custom_call.1} parent=67 // pred_fallthru
          _
      $region68: #{tpu_custom_call.1} parent=5 // pred_fallthru
        _
    $region6: #{tpu_custom_call.1} parent=1 // loop_footer
      %s23 = sadd.s32 1, %s19
    $region7: #{tpu_custom_call.1} parent=1 // loop_footer_branch
      %18 = sbr.rel target = $region3
    $region8: #{tpu_custom_call.1} parent=1 // loop_exit
      _
    %3311 = vsyncpa [#allocation7], 1
    %s3312 = scalar_lea.sflag [#allocation7], 1
    %3313 = vsyncpa %s3312, 1

</llo_original>
